<compile_context>
chip_gen: v6e
topology: v6e:2x2x1
jax: 0.10.0
libtpu: 0.0.40
codegen_flags: <defaults>
</compile_context>

<pallas_src>
import math
from types import SimpleNamespace

import jax
import jax.numpy as jnp
from jax import lax
from jax.experimental import pallas as pl
from jax.experimental.pallas import tpu as pltpu


# -----------------------------------------------------------------------------
# Fused kernel: bilinear attention + context add + batch-vectorized BiGRU
# -----------------------------------------------------------------------------
def nl_encoder_kernel(lens_ref,      # (B, 1) int32
                      text_ref,      # (B, T, H)
                      schema_ref,    # (B, S, H)
                      watt_ref,      # (H, H)
                      wih_ref,       # (H, 6H)   [fwd 3H | bwd 3H]
                      bgx_ref,       # (1, 6H)   bih + bhh(r,z) folded, per direction
                      whh_f_ref,     # (H, 3H)
                      whh_b_ref,     # (H, 3H)
                      bhhn_ref,      # (2, H)    row0 = bhh_n fwd, row1 = bhh_n bwd
                      out_ref,       # (B, T, H)
                      gxf_ref,       # (T*B, 3H) scratch: hoisted fwd input gates
                      gxb_ref,       # (T*B, 3H) scratch: hoisted bwd input gates
                      out_tm_ref):   # (T, B, H) scratch: time-major output
    B, T, H = text_ref.shape
    H3 = 3 * H

    text = text_ref[...]                                   # (B, T, H)
    schema = schema_ref[...]                               # (B, S, H)

    # ---- attention: x = text + softmax(text @ Watt @ schema^T) @ schema ------
    q = jnp.dot(text.reshape(B * T, H), watt_ref[...],
                preferred_element_type=jnp.float32).reshape(B, T, H)
    logits = jnp.einsum("bth,bsh->bts", q, schema,
                        preferred_element_type=jnp.float32)        # (B, T, S)
    m = jnp.max(logits, axis=-1, keepdims=True)
    e = jnp.exp(logits - m)
    # Exact division: softmax runs once, off the serial critical path.
    p = e / jnp.sum(e, axis=-1, keepdims=True)
    ctx = jnp.einsum("bts,bsh->bth", p, schema,
                     preferred_element_type=jnp.float32)           # (B, T, H)
    x = text + ctx

    # ---- hoisted input projection: one (T*B, H) @ (H, 6H) matmul -------------
    x_tm = jnp.transpose(x, (1, 0, 2)).reshape(T * B, H)   # time-major rows
    gx = jnp.dot(x_tm, wih_ref[...],
                 preferred_element_type=jnp.float32) + bgx_ref[...]  # (T*B, 6H)
    gxf_ref[...] = gx[:, :H3]
    gxb_ref[...] = gx[:, H3:]

    lens = lens_ref[...]                                    # (B, 1) int32
    whh_f = whh_f_ref[...]
    whh_b = whh_b_ref[...]
    bhh_n_f = bhhn_ref[0:1, :]                              # (1, H)
    bhh_n_b = bhhn_ref[1:2, :]                              # (1, H)

    def cell(gx_t, h, whh, bhh_n):
        # gx_t already contains x@Wih + bih + bhh(r,z); only h@Whh (+ bhh_n) remains.
        gh = jnp.dot(h, whh, preferred_element_type=jnp.float32)     # (B, 3H)
        r = jax.nn.sigmoid(gx_t[:, 0:H] + gh[:, 0:H])
        z = jax.nn.sigmoid(gx_t[:, H:2 * H] + gh[:, H:2 * H])
        n = jnp.tanh(gx_t[:, 2 * H:] + r * (gh[:, 2 * H:] + bhh_n))
        return (1.0 - z) * n + z * h

    # ---- forward direction (fully unrolled, static indices) ------------------
    h = jnp.zeros((B, H), jnp.float32)
    for t in range(T):
        gx_t = gxf_ref[t * B:(t + 1) * B, :]                # (B, 3H)
        h_new = cell(gx_t, h, whh_f, bhh_n_f)
        valid = t < lens                                    # (B, 1)
        out_tm_ref[t] = jnp.where(valid, h_new, 0.0)
        h = jnp.where(valid, h_new, h)

    # ---- backward direction (t = T-1 .. 0; valid = t < len, h0 = 0) ----------
    h = jnp.zeros((B, H), jnp.float32)
    for t in range(T - 1, -1, -1):
        gx_t = gxb_ref[t * B:(t + 1) * B, :]                # (B, 3H)
        h_new = cell(gx_t, h, whh_b, bhh_n_b)
        valid = t < lens
        out_tm_ref[t] = out_tm_ref[t] + jnp.where(valid, h_new, 0.0)
        h = jnp.where(valid, h_new, h)

    out_ref[...] = jnp.transpose(out_tm_ref[...], (1, 0, 2)).astype(out_ref.dtype)


# -----------------------------------------------------------------------------
# Wrapper: parameter consolidation (one-time, XLA side) + pallas_call
# -----------------------------------------------------------------------------
def nl_encoder_forward(batch, params):
    text = batch.text_seqs_embedding
    schema = batch.schema_seqs_embedding
    lens = batch.text_seqs_len

    B, T, H = text.shape
    H3 = 3 * H

    # Concatenate fwd/bwd input weights so the hoisted projection is one matmul.
    wih_cat = jnp.concatenate([params["wih_f"], params["wih_b"]], axis=1)   # (H, 6H)
    zeros_h = jnp.zeros((1, H), jnp.float32)
    b_gx_f = params["bih_f"] + jnp.concatenate(
        [params["bhh_f"][:, :2 * H], zeros_h], axis=1)
    b_gx_b = params["bih_b"] + jnp.concatenate(
        [params["bhh_b"][:, :2 * H], zeros_h], axis=1)
    bgx = jnp.concatenate([b_gx_f, b_gx_b], axis=1)                         # (1, 6H)
    bhh_n = jnp.concatenate(
        [params["bhh_f"][:, 2 * H:], params["bhh_b"][:, 2 * H:]], axis=0)   # (2, H)

    lens2d = lens.reshape(B, 1).astype(jnp.int32)

    vmem = pl.BlockSpec(memory_space=pltpu.MemorySpace.VMEM)
    # Single grid point: everything fits comfortably in VMEM at these shapes.
    # For large B one would add a batch-tile grid axis marked "parallel"
    # (2 TensorCores on v7x); at B=2/T=8 a single invocation is faster.
    return pl.pallas_call(
        nl_encoder_kernel,
        out_shape=jax.ShapeDtypeStruct((B, T, H), jnp.float32),
        in_specs=[vmem] * 9,
        out_specs=vmem,
        scratch_shapes=[
            pltpu.VMEM((T * B, H3), jnp.float32),   # gx forward
            pltpu.VMEM((T * B, H3), jnp.float32),   # gx backward
            pltpu.VMEM((T, B, H), jnp.float32),     # time-major output accumulator
        ],
    )(lens2d, text, schema, params["w_att"], wih_cat, bgx,
      params["whh_f"], params["whh_b"], bhh_n)


# -----------------------------------------------------------------------------
# Pure-JAX reference (for verification)
# -----------------------------------------------------------------------------
def reference_forward(batch, params):
    text = batch.text_seqs_embedding
    schema = batch.schema_seqs_embedding
    lens = batch.text_seqs_len
    logits = jnp.einsum("bth,hk,bsk->bts", text, params["w_att"], schema)
    p = jax.nn.softmax(logits, axis=-1)
    x = text + jnp.einsum("bts,bsh->bth", p, schema)

    B, T, H = x.shape

    def cell(x_t, h, Wih, Whh, bih, bhh):
        gx = x_t @ Wih + bih[0]
        gh = h @ Whh + bhh[0]
        r = jax.nn.sigmoid(gx[:H] + gh[:H])
        z = jax.nn.sigmoid(gx[H:2 * H] + gh[H:2 * H])
        n = jnp.tanh(gx[2 * H:] + r * gh[2 * H:])
        return (1.0 - z) * n + z * h

    out = jnp.zeros((B, T, H), jnp.float32)
    for b in range(B):
        L = int(lens[b])
        h = jnp.zeros((H,), jnp.float32)
        for t in range(L):
            h = cell(x[b, t], h, params["wih_f"], params["whh_f"],
                     params["bih_f"], params["bhh_f"])
            out = out.at[b, t].add(h)
        h = jnp.zeros((H,), jnp.float32)
        for t in range(L - 1, -1, -1):
            h = cell(x[b, t], h, params["wih_b"], params["whh_b"],
                     params["bih_b"], params["bhh_b"])
            out = out.at[b, t].add(h)
    return out


# -----------------------------------------------------------------------------
if __name__ == "__main__":
    B, T, S, H = 2, 8, 6, 32
    key = jax.random.PRNGKey(0)
    ks = jax.random.split(key, 12)
    scale = 1.0 / math.sqrt(H)

    def u(k, shape):
        return jax.random.uniform(k, shape, jnp.float32, -scale, scale)

    params = {
        "w_att": u(ks[0], (H, H)),
        # forward-direction GRU (weights pre-transposed to [in, 3H])
        "wih_f": u(ks[1], (H, 3 * H)),
        "whh_f": u(ks[2], (H, 3 * H)),
        "bih_f": u(ks[3], (1, 3 * H)),
        "bhh_f": u(ks[4], (1, 3 * H)),
        # backward-direction GRU
        "wih_b": u(ks[5], (H, 3 * H)),
        "whh_b": u(ks[6], (H, 3 * H)),
        "bih_b": u(ks[7], (1, 3 * H)),
        "bhh_b": u(ks[8], (1, 3 * H)),
    }

    batch = SimpleNamespace(
        text_seqs_embedding=jax.random.normal(ks[9], (B, T, H), jnp.float32),
        schema_seqs_embedding=jax.random.normal(ks[10], (B, S, H), jnp.float32),
        text_seqs_len=jnp.array([T, 5], dtype=jnp.int32),  # max(lens) == T
    )

    out = nl_encoder_forward(batch, params)
    out = jax.block_until_ready(out)

    ref = reference_forward(batch, params)
    assert out.shape == (B, T, H)
    assert jnp.allclose(out, ref, rtol=1e-4, atol=1e-4), (
        float(jnp.max(jnp.abs(out - ref))))

    print("KERNEL_OK")
</pallas_src>

<mosaic_0001>
module attributes {stable_mosaic.version = 11 : i64} {
  func.func @nl_encoder_kernel(%arg0: memref<2x1xi32, #tpu.memory_space<vmem>>, %arg1: memref<2x8x32xf32, #tpu.memory_space<vmem>>, %arg2: memref<2x6x32xf32, #tpu.memory_space<vmem>>, %arg3: memref<32x32xf32, #tpu.memory_space<vmem>>, %arg4: memref<32x192xf32, #tpu.memory_space<vmem>>, %arg5: memref<1x192xf32, #tpu.memory_space<vmem>>, %arg6: memref<32x96xf32, #tpu.memory_space<vmem>>, %arg7: memref<32x96xf32, #tpu.memory_space<vmem>>, %arg8: memref<2x32xf32, #tpu.memory_space<vmem>>, %arg9: memref<2x8x32xf32, #tpu.memory_space<vmem>>, %arg10: memref<16x96xf32, #tpu.memory_space<vmem>>, %arg11: memref<16x96xf32, #tpu.memory_space<vmem>>, %arg12: memref<8x2x32xf32, #tpu.memory_space<vmem>>) attributes {dimension_semantics = [], scalar_prefetch = 0 : i64, scratch_operands = 3 : i64, tpu.core_type = #tpu.core_type<tc>} {
    %c0 = arith.constant 0 : index
    %c0_0 = arith.constant 0 : index
    %c0_1 = arith.constant 0 : index
    %0 = vector.load %arg1[%c0, %c0_0, %c0_1] : memref<2x8x32xf32, #tpu.memory_space<vmem>>, vector<2x8x32xf32>
    %c0_2 = arith.constant 0 : index
    %c0_3 = arith.constant 0 : index
    %c0_4 = arith.constant 0 : index
    %1 = vector.load %arg2[%c0_2, %c0_3, %c0_4] : memref<2x6x32xf32, #tpu.memory_space<vmem>>, vector<2x6x32xf32>
    %2 = vector.shape_cast %0 : vector<2x8x32xf32> to vector<16x32xf32>
    %c0_5 = arith.constant 0 : index
    %c0_6 = arith.constant 0 : index
    %3 = vector.load %arg3[%c0_5, %c0_6] : memref<32x32xf32, #tpu.memory_space<vmem>>, vector<32x32xf32>
    %cst = arith.constant dense<0.000000e+00> : vector<16x32xf32>
    %4 = tpu.matmul %2, %3, %cst {dimension_numbers = #tpu.dot_dimension_numbers<[1], [0], [0], [1], [0, 0, 1, 1], [], []>} : vector<16x32xf32>, vector<32x32xf32>, vector<16x32xf32> -> vector<16x32xf32>
    %5 = vector.shape_cast %4 : vector<16x32xf32> to vector<2x8x32xf32>
    "tpu.trace_start"() <{level = 10 : i32, message = "bth,bsh->bts"}> : () -> ()
    %cst_7 = arith.constant dense<0.000000e+00> : vector<2x8x6xf32>
    %6 = tpu.matmul %5, %1, %cst_7 {dimension_numbers = #tpu.dot_dimension_numbers<[2], [2], [1], [1], [0, 0, 0, 1, 1, 1], [0], [0]>} : vector<2x8x32xf32>, vector<2x6x32xf32>, vector<2x8x6xf32> -> vector<2x8x6xf32>
    "tpu.trace_stop"() : () -> ()
    %cst_8 = arith.constant dense<0xFF800000> : vector<2x8xf32>
    %7 = vector.multi_reduction <maximumf>, %6, %cst_8 [2] : vector<2x8x6xf32> to vector<2x8xf32>
    %8 = vector.shape_cast %7 : vector<2x8xf32> to vector<2x8x1xf32>
    %9 = vector.broadcast %8 : vector<2x8x1xf32> to vector<2x8x6xf32>
    %10 = arith.subf %6, %9 : vector<2x8x6xf32>
    %11 = math.exp %10 : vector<2x8x6xf32>
    %cst_9 = arith.constant dense<0.000000e+00> : vector<2x8xf32>
    %12 = vector.multi_reduction <add>, %11, %cst_9 [2] : vector<2x8x6xf32> to vector<2x8xf32>
    %13 = vector.shape_cast %12 : vector<2x8xf32> to vector<2x8x1xf32>
    %14 = vector.broadcast %13 : vector<2x8x1xf32> to vector<2x8x6xf32>
    %15 = arith.divf %11, %14 : vector<2x8x6xf32>
    "tpu.trace_start"() <{level = 10 : i32, message = "bts,bsh->bth"}> : () -> ()
    %cst_10 = arith.constant dense<0.000000e+00> : vector<2x8x32xf32>
    %16 = tpu.matmul %15, %1, %cst_10 {dimension_numbers = #tpu.dot_dimension_numbers<[2], [1], [1], [2], [0, 0, 0, 1, 1, 2], [0], [0]>} : vector<2x8x6xf32>, vector<2x6x32xf32>, vector<2x8x32xf32> -> vector<2x8x32xf32>
    "tpu.trace_stop"() : () -> ()
    %17 = arith.addf %0, %16 : vector<2x8x32xf32>
    %18 = tpu.transpose %17, [1, 0, 2] : vector<2x8x32xf32> -> vector<8x2x32xf32>
    %19 = vector.shape_cast %18 : vector<8x2x32xf32> to vector<16x32xf32>
    %c0_11 = arith.constant 0 : index
    %c0_12 = arith.constant 0 : index
    %20 = vector.load %arg4[%c0_11, %c0_12] : memref<32x192xf32, #tpu.memory_space<vmem>>, vector<32x192xf32>
    %cst_13 = arith.constant dense<0.000000e+00> : vector<16x192xf32>
    %21 = tpu.matmul %19, %20, %cst_13 {dimension_numbers = #tpu.dot_dimension_numbers<[1], [0], [0], [1], [0, 0, 1, 1], [], []>} : vector<16x32xf32>, vector<32x192xf32>, vector<16x192xf32> -> vector<16x192xf32>
    %c0_14 = arith.constant 0 : index
    %c0_15 = arith.constant 0 : index
    %22 = vector.load %arg5[%c0_14, %c0_15] : memref<1x192xf32, #tpu.memory_space<vmem>>, vector<1x192xf32>
    %23 = vector.broadcast %22 : vector<1x192xf32> to vector<16x192xf32>
    %24 = arith.addf %21, %23 : vector<16x192xf32>
    %25 = vector.extract_strided_slice %24 {offsets = [0, 0], sizes = [16, 96], strides = [1, 1]} : vector<16x192xf32> to vector<16x96xf32>
    %c0_16 = arith.constant 0 : index
    %c0_17 = arith.constant 0 : index
    %26 = vector.load %arg10[%c0_16, %c0_17] : memref<16x96xf32, #tpu.memory_space<vmem>>, vector<16x96xf32>
    tpu.vector_store %arg10[%c0_16, %c0_17], %25 {strides = array<i32>} : memref<16x96xf32, #tpu.memory_space<vmem>>, vector<16x96xf32>,
    %27 = vector.extract_strided_slice %24 {offsets = [0, 96], sizes = [16, 96], strides = [1, 1]} : vector<16x192xf32> to vector<16x96xf32>
    %c0_18 = arith.constant 0 : index
    %c0_19 = arith.constant 0 : index
    %28 = vector.load %arg11[%c0_18, %c0_19] : memref<16x96xf32, #tpu.memory_space<vmem>>, vector<16x96xf32>
    tpu.vector_store %arg11[%c0_18, %c0_19], %27 {strides = array<i32>} : memref<16x96xf32, #tpu.memory_space<vmem>>, vector<16x96xf32>,
    %c0_20 = arith.constant 0 : index
    %c0_21 = arith.constant 0 : index
    %29 = vector.load %arg0[%c0_20, %c0_21] : memref<2x1xi32, #tpu.memory_space<vmem>>, vector<2x1xi32>
    %c0_22 = arith.constant 0 : index
    %c0_23 = arith.constant 0 : index
    %30 = vector.load %arg6[%c0_22, %c0_23] : memref<32x96xf32, #tpu.memory_space<vmem>>, vector<32x96xf32>
    %c0_24 = arith.constant 0 : index
    %c0_25 = arith.constant 0 : index
    %31 = vector.load %arg7[%c0_24, %c0_25] : memref<32x96xf32, #tpu.memory_space<vmem>>, vector<32x96xf32>
    %c0_26 = arith.constant 0 : index
    %c0_27 = arith.constant 0 : index
    %32 = vector.load %arg8[%c0_26, %c0_27] : memref<2x32xf32, #tpu.memory_space<vmem>>, vector<1x32xf32>
    %c1 = arith.constant 1 : index
    %c0_28 = arith.constant 0 : index
    %33 = vector.load %arg8[%c1, %c0_28] : memref<2x32xf32, #tpu.memory_space<vmem>>, vector<1x32xf32>
    %cst_29 = arith.constant 0.000000e+00 : f32
    %34 = vector.broadcast %cst_29 : f32 to vector<2x32xf32>
    %c0_30 = arith.constant 0 : index
    %c0_31 = arith.constant 0 : index
    %35 = vector.load %arg10[%c0_30, %c0_31] : memref<16x96xf32, #tpu.memory_space<vmem>>, vector<2x96xf32>
    %cst_32 = arith.constant dense<0.000000e+00> : vector<2x96xf32>
    %36 = tpu.matmul %34, %30, %cst_32 {dimension_numbers = #tpu.dot_dimension_numbers<[1], [0], [0], [1], [0, 0, 1, 1], [], []>} : vector<2x32xf32>, vector<32x96xf32>, vector<2x96xf32> -> vector<2x96xf32>
    %37 = vector.extract_strided_slice %35 {offsets = [0, 0], sizes = [2, 32], strides = [1, 1]} : vector<2x96xf32> to vector<2x32xf32>
    %38 = vector.extract_strided_slice %36 {offsets = [0, 0], sizes = [2, 32], strides = [1, 1]} : vector<2x96xf32> to vector<2x32xf32>
    %39 = arith.addf %37, %38 : vector<2x32xf32>
    %40 = arith.negf %39 : vector<2x32xf32>
    %41 = math.exp %40 : vector<2x32xf32>
    %cst_33 = arith.constant 1.000000e+00 : f32
    %42 = vector.broadcast %cst_33 : f32 to vector<2x32xf32>
    %43 = arith.addf %42, %41 : vector<2x32xf32>
    %44 = arith.divf %42, %43 : vector<2x32xf32>
    %45 = vector.extract_strided_slice %35 {offsets = [0, 32], sizes = [2, 32], strides = [1, 1]} : vector<2x96xf32> to vector<2x32xf32>
    %46 = vector.extract_strided_slice %36 {offsets = [0, 32], sizes = [2, 32], strides = [1, 1]} : vector<2x96xf32> to vector<2x32xf32>
    %47 = arith.addf %45, %46 : vector<2x32xf32>
    %48 = arith.negf %47 : vector<2x32xf32>
    %49 = math.exp %48 : vector<2x32xf32>
    %cst_34 = arith.constant 1.000000e+00 : f32
    %50 = vector.broadcast %cst_34 : f32 to vector<2x32xf32>
    %51 = arith.addf %50, %49 : vector<2x32xf32>
    %52 = arith.divf %50, %51 : vector<2x32xf32>
    %53 = vector.extract_strided_slice %35 {offsets = [0, 64], sizes = [2, 32], strides = [1, 1]} : vector<2x96xf32> to vector<2x32xf32>
    %54 = vector.extract_strided_slice %36 {offsets = [0, 64], sizes = [2, 32], strides = [1, 1]} : vector<2x96xf32> to vector<2x32xf32>
    %55 = vector.broadcast %32 : vector<1x32xf32> to vector<2x32xf32>
    %56 = arith.addf %54, %55 : vector<2x32xf32>
    %57 = arith.mulf %44, %56 : vector<2x32xf32>
    %58 = arith.addf %53, %57 : vector<2x32xf32>
    %59 = math.tanh %58 : vector<2x32xf32>
    %cst_35 = arith.constant 1.000000e+00 : f32
    %60 = vector.broadcast %cst_35 : f32 to vector<2x32xf32>
    %61 = arith.subf %60, %52 : vector<2x32xf32>
    %62 = arith.mulf %61, %59 : vector<2x32xf32>
    %63 = arith.mulf %52, %34 : vector<2x32xf32>
    %64 = arith.addf %62, %63 : vector<2x32xf32>
    %c0_i32 = arith.constant 0 : i32
    %65 = vector.broadcast %c0_i32 : i32 to vector<2x1xi32>
    %66 = arith.cmpi sgt, %29, %65 : vector<2x1xi32>
    %cst_36 = arith.constant 0.000000e+00 : f32
    %67 = vector.shape_cast %66 : vector<2x1xi1> to vector<2x1xi1>
    %68 = vector.broadcast %67 : vector<2x1xi1> to vector<2x32xi1>
    %69 = vector.broadcast %cst_36 : f32 to vector<2x32xf32>
    %70 = arith.select %68, %64, %69 : vector<2x32xi1>, vector<2x32xf32>
    %c0_37 = arith.constant 0 : index
    %c0_38 = arith.constant 0 : index
    %c0_39 = arith.constant 0 : index
    %71 = vector.load %arg12[%c0_37, %c0_38, %c0_39] : memref<8x2x32xf32, #tpu.memory_space<vmem>>, vector<1x2x32xf32>
    %72 = vector.shape_cast %71 : vector<1x2x32xf32> to vector<2x32xf32>
    %73 = vector.shape_cast %70 : vector<2x32xf32> to vector<1x2x32xf32>
    tpu.vector_store %arg12[%c0_37, %c0_38, %c0_39], %73 {strides = array<i32>} : memref<8x2x32xf32, #tpu.memory_space<vmem>>, vector<1x2x32xf32>,
    %74 = vector.shape_cast %66 : vector<2x1xi1> to vector<2x1xi1>
    %75 = vector.broadcast %74 : vector<2x1xi1> to vector<2x32xi1>
    %76 = arith.select %75, %64, %34 : vector<2x32xi1>, vector<2x32xf32>
    %c2 = arith.constant 2 : index
    %c0_40 = arith.constant 0 : index
    %77 = vector.load %arg10[%c2, %c0_40] : memref<16x96xf32, #tpu.memory_space<vmem>>, vector<2x96xf32>
    %cst_41 = arith.constant dense<0.000000e+00> : vector<2x96xf32>
    %78 = tpu.matmul %76, %30, %cst_41 {dimension_numbers = #tpu.dot_dimension_numbers<[1], [0], [0], [1], [0, 0, 1, 1], [], []>} : vector<2x32xf32>, vector<32x96xf32>, vector<2x96xf32> -> vector<2x96xf32>
    %79 = vector.extract_strided_slice %77 {offsets = [0, 0], sizes = [2, 32], strides = [1, 1]} : vector<2x96xf32> to vector<2x32xf32>
    %80 = vector.extract_strided_slice %78 {offsets = [0, 0], sizes = [2, 32], strides = [1, 1]} : vector<2x96xf32> to vector<2x32xf32>
    %81 = arith.addf %79, %80 : vector<2x32xf32>
    %82 = arith.negf %81 : vector<2x32xf32>
    %83 = math.exp %82 : vector<2x32xf32>
    %cst_42 = arith.constant 1.000000e+00 : f32
    %84 = vector.broadcast %cst_42 : f32 to vector<2x32xf32>
    %85 = arith.addf %84, %83 : vector<2x32xf32>
    %86 = arith.divf %84, %85 : vector<2x32xf32>
    %87 = vector.extract_strided_slice %77 {offsets = [0, 32], sizes = [2, 32], strides = [1, 1]} : vector<2x96xf32> to vector<2x32xf32>
    %88 = vector.extract_strided_slice %78 {offsets = [0, 32], sizes = [2, 32], strides = [1, 1]} : vector<2x96xf32> to vector<2x32xf32>
    %89 = arith.addf %87, %88 : vector<2x32xf32>
    %90 = arith.negf %89 : vector<2x32xf32>
    %91 = math.exp %90 : vector<2x32xf32>
    %cst_43 = arith.constant 1.000000e+00 : f32
    %92 = vector.broadcast %cst_43 : f32 to vector<2x32xf32>
    %93 = arith.addf %92, %91 : vector<2x32xf32>
    %94 = arith.divf %92, %93 : vector<2x32xf32>
    %95 = vector.extract_strided_slice %77 {offsets = [0, 64], sizes = [2, 32], strides = [1, 1]} : vector<2x96xf32> to vector<2x32xf32>
    %96 = vector.extract_strided_slice %78 {offsets = [0, 64], sizes = [2, 32], strides = [1, 1]} : vector<2x96xf32> to vector<2x32xf32>
    %97 = vector.broadcast %32 : vector<1x32xf32> to vector<2x32xf32>
    %98 = arith.addf %96, %97 : vector<2x32xf32>
    %99 = arith.mulf %86, %98 : vector<2x32xf32>
    %100 = arith.addf %95, %99 : vector<2x32xf32>
    %101 = math.tanh %100 : vector<2x32xf32>
    %cst_44 = arith.constant 1.000000e+00 : f32
    %102 = vector.broadcast %cst_44 : f32 to vector<2x32xf32>
    %103 = arith.subf %102, %94 : vector<2x32xf32>
    %104 = arith.mulf %103, %101 : vector<2x32xf32>
    %105 = arith.mulf %94, %76 : vector<2x32xf32>
    %106 = arith.addf %104, %105 : vector<2x32xf32>
    %c1_i32 = arith.constant 1 : i32
    %107 = vector.broadcast %c1_i32 : i32 to vector<2x1xi32>
    %108 = arith.cmpi sgt, %29, %107 : vector<2x1xi32>
    %cst_45 = arith.constant 0.000000e+00 : f32
    %109 = vector.shape_cast %108 : vector<2x1xi1> to vector<2x1xi1>
    %110 = vector.broadcast %109 : vector<2x1xi1> to vector<2x32xi1>
    %111 = vector.broadcast %cst_45 : f32 to vector<2x32xf32>
    %112 = arith.select %110, %106, %111 : vector<2x32xi1>, vector<2x32xf32>
    %c1_46 = arith.constant 1 : index
    %c0_47 = arith.constant 0 : index
    %c0_48 = arith.constant 0 : index
    %113 = vector.load %arg12[%c1_46, %c0_47, %c0_48] : memref<8x2x32xf32, #tpu.memory_space<vmem>>, vector<1x2x32xf32>
    %114 = vector.shape_cast %113 : vector<1x2x32xf32> to vector<2x32xf32>
    %115 = vector.shape_cast %112 : vector<2x32xf32> to vector<1x2x32xf32>
    tpu.vector_store %arg12[%c1_46, %c0_47, %c0_48], %115 {strides = array<i32>} : memref<8x2x32xf32, #tpu.memory_space<vmem>>, vector<1x2x32xf32>,
    %116 = vector.shape_cast %108 : vector<2x1xi1> to vector<2x1xi1>
    %117 = vector.broadcast %116 : vector<2x1xi1> to vector<2x32xi1>
    %118 = arith.select %117, %106, %76 : vector<2x32xi1>, vector<2x32xf32>
    %c4 = arith.constant 4 : index
    %c0_49 = arith.constant 0 : index
    %119 = vector.load %arg10[%c4, %c0_49] : memref<16x96xf32, #tpu.memory_space<vmem>>, vector<2x96xf32>
    %cst_50 = arith.constant dense<0.000000e+00> : vector<2x96xf32>
    %120 = tpu.matmul %118, %30, %cst_50 {dimension_numbers = #tpu.dot_dimension_numbers<[1], [0], [0], [1], [0, 0, 1, 1], [], []>} : vector<2x32xf32>, vector<32x96xf32>, vector<2x96xf32> -> vector<2x96xf32>
    %121 = vector.extract_strided_slice %119 {offsets = [0, 0], sizes = [2, 32], strides = [1, 1]} : vector<2x96xf32> to vector<2x32xf32>
    %122 = vector.extract_strided_slice %120 {offsets = [0, 0], sizes = [2, 32], strides = [1, 1]} : vector<2x96xf32> to vector<2x32xf32>
    %123 = arith.addf %121, %122 : vector<2x32xf32>
    %124 = arith.negf %123 : vector<2x32xf32>
    %125 = math.exp %124 : vector<2x32xf32>
    %cst_51 = arith.constant 1.000000e+00 : f32
    %126 = vector.broadcast %cst_51 : f32 to vector<2x32xf32>
    %127 = arith.addf %126, %125 : vector<2x32xf32>
    %128 = arith.divf %126, %127 : vector<2x32xf32>
    %129 = vector.extract_strided_slice %119 {offsets = [0, 32], sizes = [2, 32], strides = [1, 1]} : vector<2x96xf32> to vector<2x32xf32>
    %130 = vector.extract_strided_slice %120 {offsets = [0, 32], sizes = [2, 32], strides = [1, 1]} : vector<2x96xf32> to vector<2x32xf32>
    %131 = arith.addf %129, %130 : vector<2x32xf32>
    %132 = arith.negf %131 : vector<2x32xf32>
    %133 = math.exp %132 : vector<2x32xf32>
    %cst_52 = arith.constant 1.000000e+00 : f32
    %134 = vector.broadcast %cst_52 : f32 to vector<2x32xf32>
    %135 = arith.addf %134, %133 : vector<2x32xf32>
    %136 = arith.divf %134, %135 : vector<2x32xf32>
    %137 = vector.extract_strided_slice %119 {offsets = [0, 64], sizes = [2, 32], strides = [1, 1]} : vector<2x96xf32> to vector<2x32xf32>
    %138 = vector.extract_strided_slice %120 {offsets = [0, 64], sizes = [2, 32], strides = [1, 1]} : vector<2x96xf32> to vector<2x32xf32>
    %139 = vector.broadcast %32 : vector<1x32xf32> to vector<2x32xf32>
    %140 = arith.addf %138, %139 : vector<2x32xf32>
    %141 = arith.mulf %128, %140 : vector<2x32xf32>
    %142 = arith.addf %137, %141 : vector<2x32xf32>
    %143 = math.tanh %142 : vector<2x32xf32>
    %cst_53 = arith.constant 1.000000e+00 : f32
    %144 = vector.broadcast %cst_53 : f32 to vector<2x32xf32>
    %145 = arith.subf %144, %136 : vector<2x32xf32>
    %146 = arith.mulf %145, %143 : vector<2x32xf32>
    %147 = arith.mulf %136, %118 : vector<2x32xf32>
    %148 = arith.addf %146, %147 : vector<2x32xf32>
    %c2_i32 = arith.constant 2 : i32
    %149 = vector.broadcast %c2_i32 : i32 to vector<2x1xi32>
    %150 = arith.cmpi sgt, %29, %149 : vector<2x1xi32>
    %cst_54 = arith.constant 0.000000e+00 : f32
    %151 = vector.shape_cast %150 : vector<2x1xi1> to vector<2x1xi1>
    %152 = vector.broadcast %151 : vector<2x1xi1> to vector<2x32xi1>
    %153 = vector.broadcast %cst_54 : f32 to vector<2x32xf32>
    %154 = arith.select %152, %148, %153 : vector<2x32xi1>, vector<2x32xf32>
    %c2_55 = arith.constant 2 : index
    %c0_56 = arith.constant 0 : index
    %c0_57 = arith.constant 0 : index
    %155 = vector.load %arg12[%c2_55, %c0_56, %c0_57] : memref<8x2x32xf32, #tpu.memory_space<vmem>>, vector<1x2x32xf32>
    %156 = vector.shape_cast %155 : vector<1x2x32xf32> to vector<2x32xf32>
    %157 = vector.shape_cast %154 : vector<2x32xf32> to vector<1x2x32xf32>
    tpu.vector_store %arg12[%c2_55, %c0_56, %c0_57], %157 {strides = array<i32>} : memref<8x2x32xf32, #tpu.memory_space<vmem>>, vector<1x2x32xf32>,
    %158 = vector.shape_cast %150 : vector<2x1xi1> to vector<2x1xi1>
    %159 = vector.broadcast %158 : vector<2x1xi1> to vector<2x32xi1>
    %160 = arith.select %159, %148, %118 : vector<2x32xi1>, vector<2x32xf32>
    %c6 = arith.constant 6 : index
    %c0_58 = arith.constant 0 : index
    %161 = vector.load %arg10[%c6, %c0_58] : memref<16x96xf32, #tpu.memory_space<vmem>>, vector<2x96xf32>
    %cst_59 = arith.constant dense<0.000000e+00> : vector<2x96xf32>
    %162 = tpu.matmul %160, %30, %cst_59 {dimension_numbers = #tpu.dot_dimension_numbers<[1], [0], [0], [1], [0, 0, 1, 1], [], []>} : vector<2x32xf32>, vector<32x96xf32>, vector<2x96xf32> -> vector<2x96xf32>
    %163 = vector.extract_strided_slice %161 {offsets = [0, 0], sizes = [2, 32], strides = [1, 1]} : vector<2x96xf32> to vector<2x32xf32>
    %164 = vector.extract_strided_slice %162 {offsets = [0, 0], sizes = [2, 32], strides = [1, 1]} : vector<2x96xf32> to vector<2x32xf32>
    %165 = arith.addf %163, %164 : vector<2x32xf32>
    %166 = arith.negf %165 : vector<2x32xf32>
    %167 = math.exp %166 : vector<2x32xf32>
    %cst_60 = arith.constant 1.000000e+00 : f32
    %168 = vector.broadcast %cst_60 : f32 to vector<2x32xf32>
    %169 = arith.addf %168, %167 : vector<2x32xf32>
    %170 = arith.divf %168, %169 : vector<2x32xf32>
    %171 = vector.extract_strided_slice %161 {offsets = [0, 32], sizes = [2, 32], strides = [1, 1]} : vector<2x96xf32> to vector<2x32xf32>
    %172 = vector.extract_strided_slice %162 {offsets = [0, 32], sizes = [2, 32], strides = [1, 1]} : vector<2x96xf32> to vector<2x32xf32>
    %173 = arith.addf %171, %172 : vector<2x32xf32>
    %174 = arith.negf %173 : vector<2x32xf32>
    %175 = math.exp %174 : vector<2x32xf32>
    %cst_61 = arith.constant 1.000000e+00 : f32
    %176 = vector.broadcast %cst_61 : f32 to vector<2x32xf32>
    %177 = arith.addf %176, %175 : vector<2x32xf32>
    %178 = arith.divf %176, %177 : vector<2x32xf32>
    %179 = vector.extract_strided_slice %161 {offsets = [0, 64], sizes = [2, 32], strides = [1, 1]} : vector<2x96xf32> to vector<2x32xf32>
    %180 = vector.extract_strided_slice %162 {offsets = [0, 64], sizes = [2, 32], strides = [1, 1]} : vector<2x96xf32> to vector<2x32xf32>
    %181 = vector.broadcast %32 : vector<1x32xf32> to vector<2x32xf32>
    %182 = arith.addf %180, %181 : vector<2x32xf32>
    %183 = arith.mulf %170, %182 : vector<2x32xf32>
    %184 = arith.addf %179, %183 : vector<2x32xf32>
    %185 = math.tanh %184 : vector<2x32xf32>
    %cst_62 = arith.constant 1.000000e+00 : f32
    %186 = vector.broadcast %cst_62 : f32 to vector<2x32xf32>
    %187 = arith.subf %186, %178 : vector<2x32xf32>
    %188 = arith.mulf %187, %185 : vector<2x32xf32>
    %189 = arith.mulf %178, %160 : vector<2x32xf32>
    %190 = arith.addf %188, %189 : vector<2x32xf32>
    %c3_i32 = arith.constant 3 : i32
    %191 = vector.broadcast %c3_i32 : i32 to vector<2x1xi32>
    %192 = arith.cmpi sgt, %29, %191 : vector<2x1xi32>
    %cst_63 = arith.constant 0.000000e+00 : f32
    %193 = vector.shape_cast %192 : vector<2x1xi1> to vector<2x1xi1>
    %194 = vector.broadcast %193 : vector<2x1xi1> to vector<2x32xi1>
    %195 = vector.broadcast %cst_63 : f32 to vector<2x32xf32>
    %196 = arith.select %194, %190, %195 : vector<2x32xi1>, vector<2x32xf32>
    %c3 = arith.constant 3 : index
    %c0_64 = arith.constant 0 : index
    %c0_65 = arith.constant 0 : index
    %197 = vector.load %arg12[%c3, %c0_64, %c0_65] : memref<8x2x32xf32, #tpu.memory_space<vmem>>, vector<1x2x32xf32>
    %198 = vector.shape_cast %197 : vector<1x2x32xf32> to vector<2x32xf32>
    %199 = vector.shape_cast %196 : vector<2x32xf32> to vector<1x2x32xf32>
    tpu.vector_store %arg12[%c3, %c0_64, %c0_65], %199 {strides = array<i32>} : memref<8x2x32xf32, #tpu.memory_space<vmem>>, vector<1x2x32xf32>,
    %200 = vector.shape_cast %192 : vector<2x1xi1> to vector<2x1xi1>
    %201 = vector.broadcast %200 : vector<2x1xi1> to vector<2x32xi1>
    %202 = arith.select %201, %190, %160 : vector<2x32xi1>, vector<2x32xf32>
    %c8 = arith.constant 8 : index
    %c0_66 = arith.constant 0 : index
    %203 = vector.load %arg10[%c8, %c0_66] : memref<16x96xf32, #tpu.memory_space<vmem>>, vector<2x96xf32>
    %cst_67 = arith.constant dense<0.000000e+00> : vector<2x96xf32>
    %204 = tpu.matmul %202, %30, %cst_67 {dimension_numbers = #tpu.dot_dimension_numbers<[1], [0], [0], [1], [0, 0, 1, 1], [], []>} : vector<2x32xf32>, vector<32x96xf32>, vector<2x96xf32> -> vector<2x96xf32>
    %205 = vector.extract_strided_slice %203 {offsets = [0, 0], sizes = [2, 32], strides = [1, 1]} : vector<2x96xf32> to vector<2x32xf32>
    %206 = vector.extract_strided_slice %204 {offsets = [0, 0], sizes = [2, 32], strides = [1, 1]} : vector<2x96xf32> to vector<2x32xf32>
    %207 = arith.addf %205, %206 : vector<2x32xf32>
    %208 = arith.negf %207 : vector<2x32xf32>
    %209 = math.exp %208 : vector<2x32xf32>
    %cst_68 = arith.constant 1.000000e+00 : f32
    %210 = vector.broadcast %cst_68 : f32 to vector<2x32xf32>
    %211 = arith.addf %210, %209 : vector<2x32xf32>
    %212 = arith.divf %210, %211 : vector<2x32xf32>
    %213 = vector.extract_strided_slice %203 {offsets = [0, 32], sizes = [2, 32], strides = [1, 1]} : vector<2x96xf32> to vector<2x32xf32>
    %214 = vector.extract_strided_slice %204 {offsets = [0, 32], sizes = [2, 32], strides = [1, 1]} : vector<2x96xf32> to vector<2x32xf32>
    %215 = arith.addf %213, %214 : vector<2x32xf32>
    %216 = arith.negf %215 : vector<2x32xf32>
    %217 = math.exp %216 : vector<2x32xf32>
    %cst_69 = arith.constant 1.000000e+00 : f32
    %218 = vector.broadcast %cst_69 : f32 to vector<2x32xf32>
    %219 = arith.addf %218, %217 : vector<2x32xf32>
    %220 = arith.divf %218, %219 : vector<2x32xf32>
    %221 = vector.extract_strided_slice %203 {offsets = [0, 64], sizes = [2, 32], strides = [1, 1]} : vector<2x96xf32> to vector<2x32xf32>
    %222 = vector.extract_strided_slice %204 {offsets = [0, 64], sizes = [2, 32], strides = [1, 1]} : vector<2x96xf32> to vector<2x32xf32>
    %223 = vector.broadcast %32 : vector<1x32xf32> to vector<2x32xf32>
    %224 = arith.addf %222, %223 : vector<2x32xf32>
    %225 = arith.mulf %212, %224 : vector<2x32xf32>
    %226 = arith.addf %221, %225 : vector<2x32xf32>
    %227 = math.tanh %226 : vector<2x32xf32>
    %cst_70 = arith.constant 1.000000e+00 : f32
    %228 = vector.broadcast %cst_70 : f32 to vector<2x32xf32>
    %229 = arith.subf %228, %220 : vector<2x32xf32>
    %230 = arith.mulf %229, %227 : vector<2x32xf32>
    %231 = arith.mulf %220, %202 : vector<2x32xf32>
    %232 = arith.addf %230, %231 : vector<2x32xf32>
    %c4_i32 = arith.constant 4 : i32
    %233 = vector.broadcast %c4_i32 : i32 to vector<2x1xi32>
    %234 = arith.cmpi sgt, %29, %233 : vector<2x1xi32>
    %cst_71 = arith.constant 0.000000e+00 : f32
    %235 = vector.shape_cast %234 : vector<2x1xi1> to vector<2x1xi1>
    %236 = vector.broadcast %235 : vector<2x1xi1> to vector<2x32xi1>
    %237 = vector.broadcast %cst_71 : f32 to vector<2x32xf32>
    %238 = arith.select %236, %232, %237 : vector<2x32xi1>, vector<2x32xf32>
    %c4_72 = arith.constant 4 : index
    %c0_73 = arith.constant 0 : index
    %c0_74 = arith.constant 0 : index
    %239 = vector.load %arg12[%c4_72, %c0_73, %c0_74] : memref<8x2x32xf32, #tpu.memory_space<vmem>>, vector<1x2x32xf32>
    %240 = vector.shape_cast %239 : vector<1x2x32xf32> to vector<2x32xf32>
    %241 = vector.shape_cast %238 : vector<2x32xf32> to vector<1x2x32xf32>
    tpu.vector_store %arg12[%c4_72, %c0_73, %c0_74], %241 {strides = array<i32>} : memref<8x2x32xf32, #tpu.memory_space<vmem>>, vector<1x2x32xf32>,
    %242 = vector.shape_cast %234 : vector<2x1xi1> to vector<2x1xi1>
    %243 = vector.broadcast %242 : vector<2x1xi1> to vector<2x32xi1>
    %244 = arith.select %243, %232, %202 : vector<2x32xi1>, vector<2x32xf32>
    %c10 = arith.constant 10 : index
    %c0_75 = arith.constant 0 : index
    %245 = vector.load %arg10[%c10, %c0_75] : memref<16x96xf32, #tpu.memory_space<vmem>>, vector<2x96xf32>
    %cst_76 = arith.constant dense<0.000000e+00> : vector<2x96xf32>
    %246 = tpu.matmul %244, %30, %cst_76 {dimension_numbers = #tpu.dot_dimension_numbers<[1], [0], [0], [1], [0, 0, 1, 1], [], []>} : vector<2x32xf32>, vector<32x96xf32>, vector<2x96xf32> -> vector<2x96xf32>
    %247 = vector.extract_strided_slice %245 {offsets = [0, 0], sizes = [2, 32], strides = [1, 1]} : vector<2x96xf32> to vector<2x32xf32>
    %248 = vector.extract_strided_slice %246 {offsets = [0, 0], sizes = [2, 32], strides = [1, 1]} : vector<2x96xf32> to vector<2x32xf32>
    %249 = arith.addf %247, %248 : vector<2x32xf32>
    %250 = arith.negf %249 : vector<2x32xf32>
    %251 = math.exp %250 : vector<2x32xf32>
    %cst_77 = arith.constant 1.000000e+00 : f32
    %252 = vector.broadcast %cst_77 : f32 to vector<2x32xf32>
    %253 = arith.addf %252, %251 : vector<2x32xf32>
    %254 = arith.divf %252, %253 : vector<2x32xf32>
    %255 = vector.extract_strided_slice %245 {offsets = [0, 32], sizes = [2, 32], strides = [1, 1]} : vector<2x96xf32> to vector<2x32xf32>
    %256 = vector.extract_strided_slice %246 {offsets = [0, 32], sizes = [2, 32], strides = [1, 1]} : vector<2x96xf32> to vector<2x32xf32>
    %257 = arith.addf %255, %256 : vector<2x32xf32>
    %258 = arith.negf %257 : vector<2x32xf32>
    %259 = math.exp %258 : vector<2x32xf32>
    %cst_78 = arith.constant 1.000000e+00 : f32
    %260 = vector.broadcast %cst_78 : f32 to vector<2x32xf32>
    %261 = arith.addf %260, %259 : vector<2x32xf32>
    %262 = arith.divf %260, %261 : vector<2x32xf32>
    %263 = vector.extract_strided_slice %245 {offsets = [0, 64], sizes = [2, 32], strides = [1, 1]} : vector<2x96xf32> to vector<2x32xf32>
    %264 = vector.extract_strided_slice %246 {offsets = [0, 64], sizes = [2, 32], strides = [1, 1]} : vector<2x96xf32> to vector<2x32xf32>
    %265 = vector.broadcast %32 : vector<1x32xf32> to vector<2x32xf32>
    %266 = arith.addf %264, %265 : vector<2x32xf32>
    %267 = arith.mulf %254, %266 : vector<2x32xf32>
    %268 = arith.addf %263, %267 : vector<2x32xf32>
    %269 = math.tanh %268 : vector<2x32xf32>
    %cst_79 = arith.constant 1.000000e+00 : f32
    %270 = vector.broadcast %cst_79 : f32 to vector<2x32xf32>
    %271 = arith.subf %270, %262 : vector<2x32xf32>
    %272 = arith.mulf %271, %269 : vector<2x32xf32>
    %273 = arith.mulf %262, %244 : vector<2x32xf32>
    %274 = arith.addf %272, %273 : vector<2x32xf32>
    %c5_i32 = arith.constant 5 : i32
    %275 = vector.broadcast %c5_i32 : i32 to vector<2x1xi32>
    %276 = arith.cmpi sgt, %29, %275 : vector<2x1xi32>
    %cst_80 = arith.constant 0.000000e+00 : f32
    %277 = vector.shape_cast %276 : vector<2x1xi1> to vector<2x1xi1>
    %278 = vector.broadcast %277 : vector<2x1xi1> to vector<2x32xi1>
    %279 = vector.broadcast %cst_80 : f32 to vector<2x32xf32>
    %280 = arith.select %278, %274, %279 : vector<2x32xi1>, vector<2x32xf32>
    %c5 = arith.constant 5 : index
    %c0_81 = arith.constant 0 : index
    %c0_82 = arith.constant 0 : index
    %281 = vector.load %arg12[%c5, %c0_81, %c0_82] : memref<8x2x32xf32, #tpu.memory_space<vmem>>, vector<1x2x32xf32>
    %282 = vector.shape_cast %281 : vector<1x2x32xf32> to vector<2x32xf32>
    %283 = vector.shape_cast %280 : vector<2x32xf32> to vector<1x2x32xf32>
    tpu.vector_store %arg12[%c5, %c0_81, %c0_82], %283 {strides = array<i32>} : memref<8x2x32xf32, #tpu.memory_space<vmem>>, vector<1x2x32xf32>,
    %284 = vector.shape_cast %276 : vector<2x1xi1> to vector<2x1xi1>
    %285 = vector.broadcast %284 : vector<2x1xi1> to vector<2x32xi1>
    %286 = arith.select %285, %274, %244 : vector<2x32xi1>, vector<2x32xf32>
    %c12 = arith.constant 12 : index
    %c0_83 = arith.constant 0 : index
    %287 = vector.load %arg10[%c12, %c0_83] : memref<16x96xf32, #tpu.memory_space<vmem>>, vector<2x96xf32>
    %cst_84 = arith.constant dense<0.000000e+00> : vector<2x96xf32>
    %288 = tpu.matmul %286, %30, %cst_84 {dimension_numbers = #tpu.dot_dimension_numbers<[1], [0], [0], [1], [0, 0, 1, 1], [], []>} : vector<2x32xf32>, vector<32x96xf32>, vector<2x96xf32> -> vector<2x96xf32>
    %289 = vector.extract_strided_slice %287 {offsets = [0, 0], sizes = [2, 32], strides = [1, 1]} : vector<2x96xf32> to vector<2x32xf32>
    %290 = vector.extract_strided_slice %288 {offsets = [0, 0], sizes = [2, 32], strides = [1, 1]} : vector<2x96xf32> to vector<2x32xf32>
    %291 = arith.addf %289, %290 : vector<2x32xf32>
    %292 = arith.negf %291 : vector<2x32xf32>
    %293 = math.exp %292 : vector<2x32xf32>
    %cst_85 = arith.constant 1.000000e+00 : f32
    %294 = vector.broadcast %cst_85 : f32 to vector<2x32xf32>
    %295 = arith.addf %294, %293 : vector<2x32xf32>
    %296 = arith.divf %294, %295 : vector<2x32xf32>
    %297 = vector.extract_strided_slice %287 {offsets = [0, 32], sizes = [2, 32], strides = [1, 1]} : vector<2x96xf32> to vector<2x32xf32>
    %298 = vector.extract_strided_slice %288 {offsets = [0, 32], sizes = [2, 32], strides = [1, 1]} : vector<2x96xf32> to vector<2x32xf32>
    %299 = arith.addf %297, %298 : vector<2x32xf32>
    %300 = arith.negf %299 : vector<2x32xf32>
    %301 = math.exp %300 : vector<2x32xf32>
    %cst_86 = arith.constant 1.000000e+00 : f32
    %302 = vector.broadcast %cst_86 : f32 to vector<2x32xf32>
    %303 = arith.addf %302, %301 : vector<2x32xf32>
    %304 = arith.divf %302, %303 : vector<2x32xf32>
    %305 = vector.extract_strided_slice %287 {offsets = [0, 64], sizes = [2, 32], strides = [1, 1]} : vector<2x96xf32> to vector<2x32xf32>
    %306 = vector.extract_strided_slice %288 {offsets = [0, 64], sizes = [2, 32], strides = [1, 1]} : vector<2x96xf32> to vector<2x32xf32>
    %307 = vector.broadcast %32 : vector<1x32xf32> to vector<2x32xf32>
    %308 = arith.addf %306, %307 : vector<2x32xf32>
    %309 = arith.mulf %296, %308 : vector<2x32xf32>
    %310 = arith.addf %305, %309 : vector<2x32xf32>
    %311 = math.tanh %310 : vector<2x32xf32>
    %cst_87 = arith.constant 1.000000e+00 : f32
    %312 = vector.broadcast %cst_87 : f32 to vector<2x32xf32>
    %313 = arith.subf %312, %304 : vector<2x32xf32>
    %314 = arith.mulf %313, %311 : vector<2x32xf32>
    %315 = arith.mulf %304, %286 : vector<2x32xf32>
    %316 = arith.addf %314, %315 : vector<2x32xf32>
    %c6_i32 = arith.constant 6 : i32
    %317 = vector.broadcast %c6_i32 : i32 to vector<2x1xi32>
    %318 = arith.cmpi sgt, %29, %317 : vector<2x1xi32>
    %cst_88 = arith.constant 0.000000e+00 : f32
    %319 = vector.shape_cast %318 : vector<2x1xi1> to vector<2x1xi1>
    %320 = vector.broadcast %319 : vector<2x1xi1> to vector<2x32xi1>
    %321 = vector.broadcast %cst_88 : f32 to vector<2x32xf32>
    %322 = arith.select %320, %316, %321 : vector<2x32xi1>, vector<2x32xf32>
    %c6_89 = arith.constant 6 : index
    %c0_90 = arith.constant 0 : index
    %c0_91 = arith.constant 0 : index
    %323 = vector.load %arg12[%c6_89, %c0_90, %c0_91] : memref<8x2x32xf32, #tpu.memory_space<vmem>>, vector<1x2x32xf32>
    %324 = vector.shape_cast %323 : vector<1x2x32xf32> to vector<2x32xf32>
    %325 = vector.shape_cast %322 : vector<2x32xf32> to vector<1x2x32xf32>
    tpu.vector_store %arg12[%c6_89, %c0_90, %c0_91], %325 {strides = array<i32>} : memref<8x2x32xf32, #tpu.memory_space<vmem>>, vector<1x2x32xf32>,
    %326 = vector.shape_cast %318 : vector<2x1xi1> to vector<2x1xi1>
    %327 = vector.broadcast %326 : vector<2x1xi1> to vector<2x32xi1>
    %328 = arith.select %327, %316, %286 : vector<2x32xi1>, vector<2x32xf32>
    %c14 = arith.constant 14 : index
    %c0_92 = arith.constant 0 : index
    %329 = vector.load %arg10[%c14, %c0_92] : memref<16x96xf32, #tpu.memory_space<vmem>>, vector<2x96xf32>
    %cst_93 = arith.constant dense<0.000000e+00> : vector<2x96xf32>
    %330 = tpu.matmul %328, %30, %cst_93 {dimension_numbers = #tpu.dot_dimension_numbers<[1], [0], [0], [1], [0, 0, 1, 1], [], []>} : vector<2x32xf32>, vector<32x96xf32>, vector<2x96xf32> -> vector<2x96xf32>
    %331 = vector.extract_strided_slice %329 {offsets = [0, 0], sizes = [2, 32], strides = [1, 1]} : vector<2x96xf32> to vector<2x32xf32>
    %332 = vector.extract_strided_slice %330 {offsets = [0, 0], sizes = [2, 32], strides = [1, 1]} : vector<2x96xf32> to vector<2x32xf32>
    %333 = arith.addf %331, %332 : vector<2x32xf32>
    %334 = arith.negf %333 : vector<2x32xf32>
    %335 = math.exp %334 : vector<2x32xf32>
    %cst_94 = arith.constant 1.000000e+00 : f32
    %336 = vector.broadcast %cst_94 : f32 to vector<2x32xf32>
    %337 = arith.addf %336, %335 : vector<2x32xf32>
    %338 = arith.divf %336, %337 : vector<2x32xf32>
    %339 = vector.extract_strided_slice %329 {offsets = [0, 32], sizes = [2, 32], strides = [1, 1]} : vector<2x96xf32> to vector<2x32xf32>
    %340 = vector.extract_strided_slice %330 {offsets = [0, 32], sizes = [2, 32], strides = [1, 1]} : vector<2x96xf32> to vector<2x32xf32>
    %341 = arith.addf %339, %340 : vector<2x32xf32>
    %342 = arith.negf %341 : vector<2x32xf32>
    %343 = math.exp %342 : vector<2x32xf32>
    %cst_95 = arith.constant 1.000000e+00 : f32
    %344 = vector.broadcast %cst_95 : f32 to vector<2x32xf32>
    %345 = arith.addf %344, %343 : vector<2x32xf32>
    %346 = arith.divf %344, %345 : vector<2x32xf32>
    %347 = vector.extract_strided_slice %329 {offsets = [0, 64], sizes = [2, 32], strides = [1, 1]} : vector<2x96xf32> to vector<2x32xf32>
    %348 = vector.extract_strided_slice %330 {offsets = [0, 64], sizes = [2, 32], strides = [1, 1]} : vector<2x96xf32> to vector<2x32xf32>
    %349 = vector.broadcast %32 : vector<1x32xf32> to vector<2x32xf32>
    %350 = arith.addf %348, %349 : vector<2x32xf32>
    %351 = arith.mulf %338, %350 : vector<2x32xf32>
    %352 = arith.addf %347, %351 : vector<2x32xf32>
    %353 = math.tanh %352 : vector<2x32xf32>
    %cst_96 = arith.constant 1.000000e+00 : f32
    %354 = vector.broadcast %cst_96 : f32 to vector<2x32xf32>
    %355 = arith.subf %354, %346 : vector<2x32xf32>
    %356 = arith.mulf %355, %353 : vector<2x32xf32>
    %357 = arith.mulf %346, %328 : vector<2x32xf32>
    %358 = arith.addf %356, %357 : vector<2x32xf32>
    %c7_i32 = arith.constant 7 : i32
    %359 = vector.broadcast %c7_i32 : i32 to vector<2x1xi32>
    %360 = arith.cmpi sgt, %29, %359 : vector<2x1xi32>
    %cst_97 = arith.constant 0.000000e+00 : f32
    %361 = vector.shape_cast %360 : vector<2x1xi1> to vector<2x1xi1>
    %362 = vector.broadcast %361 : vector<2x1xi1> to vector<2x32xi1>
    %363 = vector.broadcast %cst_97 : f32 to vector<2x32xf32>
    %364 = arith.select %362, %358, %363 : vector<2x32xi1>, vector<2x32xf32>
    %c7 = arith.constant 7 : index
    %c0_98 = arith.constant 0 : index
    %c0_99 = arith.constant 0 : index
    %365 = vector.load %arg12[%c7, %c0_98, %c0_99] : memref<8x2x32xf32, #tpu.memory_space<vmem>>, vector<1x2x32xf32>
    %366 = vector.shape_cast %365 : vector<1x2x32xf32> to vector<2x32xf32>
    %367 = vector.shape_cast %364 : vector<2x32xf32> to vector<1x2x32xf32>
    tpu.vector_store %arg12[%c7, %c0_98, %c0_99], %367 {strides = array<i32>} : memref<8x2x32xf32, #tpu.memory_space<vmem>>, vector<1x2x32xf32>,
    %cst_100 = arith.constant 0.000000e+00 : f32
    %368 = vector.broadcast %cst_100 : f32 to vector<2x32xf32>
    %c14_101 = arith.constant 14 : index
    %c0_102 = arith.constant 0 : index
    %369 = vector.load %arg11[%c14_101, %c0_102] : memref<16x96xf32, #tpu.memory_space<vmem>>, vector<2x96xf32>
    %cst_103 = arith.constant dense<0.000000e+00> : vector<2x96xf32>
    %370 = tpu.matmul %368, %31, %cst_103 {dimension_numbers = #tpu.dot_dimension_numbers<[1], [0], [0], [1], [0, 0, 1, 1], [], []>} : vector<2x32xf32>, vector<32x96xf32>, vector<2x96xf32> -> vector<2x96xf32>
    %371 = vector.extract_strided_slice %369 {offsets = [0, 0], sizes = [2, 32], strides = [1, 1]} : vector<2x96xf32> to vector<2x32xf32>
    %372 = vector.extract_strided_slice %370 {offsets = [0, 0], sizes = [2, 32], strides = [1, 1]} : vector<2x96xf32> to vector<2x32xf32>
    %373 = arith.addf %371, %372 : vector<2x32xf32>
    %374 = arith.negf %373 : vector<2x32xf32>
    %375 = math.exp %374 : vector<2x32xf32>
    %cst_104 = arith.constant 1.000000e+00 : f32
    %376 = vector.broadcast %cst_104 : f32 to vector<2x32xf32>
    %377 = arith.addf %376, %375 : vector<2x32xf32>
    %378 = arith.divf %376, %377 : vector<2x32xf32>
    %379 = vector.extract_strided_slice %369 {offsets = [0, 32], sizes = [2, 32], strides = [1, 1]} : vector<2x96xf32> to vector<2x32xf32>
    %380 = vector.extract_strided_slice %370 {offsets = [0, 32], sizes = [2, 32], strides = [1, 1]} : vector<2x96xf32> to vector<2x32xf32>
    %381 = arith.addf %379, %380 : vector<2x32xf32>
    %382 = arith.negf %381 : vector<2x32xf32>
    %383 = math.exp %382 : vector<2x32xf32>
    %cst_105 = arith.constant 1.000000e+00 : f32
    %384 = vector.broadcast %cst_105 : f32 to vector<2x32xf32>
    %385 = arith.addf %384, %383 : vector<2x32xf32>
    %386 = arith.divf %384, %385 : vector<2x32xf32>
    %387 = vector.extract_strided_slice %369 {offsets = [0, 64], sizes = [2, 32], strides = [1, 1]} : vector<2x96xf32> to vector<2x32xf32>
    %388 = vector.extract_strided_slice %370 {offsets = [0, 64], sizes = [2, 32], strides = [1, 1]} : vector<2x96xf32> to vector<2x32xf32>
    %389 = vector.broadcast %33 : vector<1x32xf32> to vector<2x32xf32>
    %390 = arith.addf %388, %389 : vector<2x32xf32>
    %391 = arith.mulf %378, %390 : vector<2x32xf32>
    %392 = arith.addf %387, %391 : vector<2x32xf32>
    %393 = math.tanh %392 : vector<2x32xf32>
    %cst_106 = arith.constant 1.000000e+00 : f32
    %394 = vector.broadcast %cst_106 : f32 to vector<2x32xf32>
    %395 = arith.subf %394, %386 : vector<2x32xf32>
    %396 = arith.mulf %395, %393 : vector<2x32xf32>
    %397 = arith.mulf %386, %368 : vector<2x32xf32>
    %398 = arith.addf %396, %397 : vector<2x32xf32>
    %c7_i32_107 = arith.constant 7 : i32
    %399 = vector.broadcast %c7_i32_107 : i32 to vector<2x1xi32>
    %400 = arith.cmpi sgt, %29, %399 : vector<2x1xi32>
    %c7_108 = arith.constant 7 : index
    %c0_109 = arith.constant 0 : index
    %c0_110 = arith.constant 0 : index
    %401 = vector.load %arg12[%c7_108, %c0_109, %c0_110] : memref<8x2x32xf32, #tpu.memory_space<vmem>>, vector<1x2x32xf32>
    %402 = vector.shape_cast %401 : vector<1x2x32xf32> to vector<2x32xf32>
    %cst_111 = arith.constant 0.000000e+00 : f32
    %403 = vector.shape_cast %400 : vector<2x1xi1> to vector<2x1xi1>
    %404 = vector.broadcast %403 : vector<2x1xi1> to vector<2x32xi1>
    %405 = vector.broadcast %cst_111 : f32 to vector<2x32xf32>
    %406 = arith.select %404, %398, %405 : vector<2x32xi1>, vector<2x32xf32>
    %407 = arith.addf %402, %406 : vector<2x32xf32>
    %c7_112 = arith.constant 7 : index
    %c0_113 = arith.constant 0 : index
    %c0_114 = arith.constant 0 : index
    %408 = vector.load %arg12[%c7_112, %c0_113, %c0_114] : memref<8x2x32xf32, #tpu.memory_space<vmem>>, vector<1x2x32xf32>
    %409 = vector.shape_cast %408 : vector<1x2x32xf32> to vector<2x32xf32>
    %410 = vector.shape_cast %407 : vector<2x32xf32> to vector<1x2x32xf32>
    tpu.vector_store %arg12[%c7_112, %c0_113, %c0_114], %410 {strides = array<i32>} : memref<8x2x32xf32, #tpu.memory_space<vmem>>, vector<1x2x32xf32>,
    %411 = vector.shape_cast %400 : vector<2x1xi1> to vector<2x1xi1>
    %412 = vector.broadcast %411 : vector<2x1xi1> to vector<2x32xi1>
    %413 = arith.select %412, %398, %368 : vector<2x32xi1>, vector<2x32xf32>
    %c12_115 = arith.constant 12 : index
    %c0_116 = arith.constant 0 : index
    %414 = vector.load %arg11[%c12_115, %c0_116] : memref<16x96xf32, #tpu.memory_space<vmem>>, vector<2x96xf32>
    %cst_117 = arith.constant dense<0.000000e+00> : vector<2x96xf32>
    %415 = tpu.matmul %413, %31, %cst_117 {dimension_numbers = #tpu.dot_dimension_numbers<[1], [0], [0], [1], [0, 0, 1, 1], [], []>} : vector<2x32xf32>, vector<32x96xf32>, vector<2x96xf32> -> vector<2x96xf32>
    %416 = vector.extract_strided_slice %414 {offsets = [0, 0], sizes = [2, 32], strides = [1, 1]} : vector<2x96xf32> to vector<2x32xf32>
    %417 = vector.extract_strided_slice %415 {offsets = [0, 0], sizes = [2, 32], strides = [1, 1]} : vector<2x96xf32> to vector<2x32xf32>
    %418 = arith.addf %416, %417 : vector<2x32xf32>
    %419 = arith.negf %418 : vector<2x32xf32>
    %420 = math.exp %419 : vector<2x32xf32>
    %cst_118 = arith.constant 1.000000e+00 : f32
    %421 = vector.broadcast %cst_118 : f32 to vector<2x32xf32>
    %422 = arith.addf %421, %420 : vector<2x32xf32>
    %423 = arith.divf %421, %422 : vector<2x32xf32>
    %424 = vector.extract_strided_slice %414 {offsets = [0, 32], sizes = [2, 32], strides = [1, 1]} : vector<2x96xf32> to vector<2x32xf32>
    %425 = vector.extract_strided_slice %415 {offsets = [0, 32], sizes = [2, 32], strides = [1, 1]} : vector<2x96xf32> to vector<2x32xf32>
    %426 = arith.addf %424, %425 : vector<2x32xf32>
    %427 = arith.negf %426 : vector<2x32xf32>
    %428 = math.exp %427 : vector<2x32xf32>
    %cst_119 = arith.constant 1.000000e+00 : f32
    %429 = vector.broadcast %cst_119 : f32 to vector<2x32xf32>
    %430 = arith.addf %429, %428 : vector<2x32xf32>
    %431 = arith.divf %429, %430 : vector<2x32xf32>
    %432 = vector.extract_strided_slice %414 {offsets = [0, 64], sizes = [2, 32], strides = [1, 1]} : vector<2x96xf32> to vector<2x32xf32>
    %433 = vector.extract_strided_slice %415 {offsets = [0, 64], sizes = [2, 32], strides = [1, 1]} : vector<2x96xf32> to vector<2x32xf32>
    %434 = vector.broadcast %33 : vector<1x32xf32> to vector<2x32xf32>
    %435 = arith.addf %433, %434 : vector<2x32xf32>
    %436 = arith.mulf %423, %435 : vector<2x32xf32>
    %437 = arith.addf %432, %436 : vector<2x32xf32>
    %438 = math.tanh %437 : vector<2x32xf32>
    %cst_120 = arith.constant 1.000000e+00 : f32
    %439 = vector.broadcast %cst_120 : f32 to vector<2x32xf32>
    %440 = arith.subf %439, %431 : vector<2x32xf32>
    %441 = arith.mulf %440, %438 : vector<2x32xf32>
    %442 = arith.mulf %431, %413 : vector<2x32xf32>
    %443 = arith.addf %441, %442 : vector<2x32xf32>
    %c6_i32_121 = arith.constant 6 : i32
    %444 = vector.broadcast %c6_i32_121 : i32 to vector<2x1xi32>
    %445 = arith.cmpi sgt, %29, %444 : vector<2x1xi32>
    %c6_122 = arith.constant 6 : index
    %c0_123 = arith.constant 0 : index
    %c0_124 = arith.constant 0 : index
    %446 = vector.load %arg12[%c6_122, %c0_123, %c0_124] : memref<8x2x32xf32, #tpu.memory_space<vmem>>, vector<1x2x32xf32>
    %447 = vector.shape_cast %446 : vector<1x2x32xf32> to vector<2x32xf32>
    %cst_125 = arith.constant 0.000000e+00 : f32
    %448 = vector.shape_cast %445 : vector<2x1xi1> to vector<2x1xi1>
    %449 = vector.broadcast %448 : vector<2x1xi1> to vector<2x32xi1>
    %450 = vector.broadcast %cst_125 : f32 to vector<2x32xf32>
    %451 = arith.select %449, %443, %450 : vector<2x32xi1>, vector<2x32xf32>
    %452 = arith.addf %447, %451 : vector<2x32xf32>
    %c6_126 = arith.constant 6 : index
    %c0_127 = arith.constant 0 : index
    %c0_128 = arith.constant 0 : index
    %453 = vector.load %arg12[%c6_126, %c0_127, %c0_128] : memref<8x2x32xf32, #tpu.memory_space<vmem>>, vector<1x2x32xf32>
    %454 = vector.shape_cast %453 : vector<1x2x32xf32> to vector<2x32xf32>
    %455 = vector.shape_cast %452 : vector<2x32xf32> to vector<1x2x32xf32>
    tpu.vector_store %arg12[%c6_126, %c0_127, %c0_128], %455 {strides = array<i32>} : memref<8x2x32xf32, #tpu.memory_space<vmem>>, vector<1x2x32xf32>,
    %456 = vector.shape_cast %445 : vector<2x1xi1> to vector<2x1xi1>
    %457 = vector.broadcast %456 : vector<2x1xi1> to vector<2x32xi1>
    %458 = arith.select %457, %443, %413 : vector<2x32xi1>, vector<2x32xf32>
    %c10_129 = arith.constant 10 : index
    %c0_130 = arith.constant 0 : index
    %459 = vector.load %arg11[%c10_129, %c0_130] : memref<16x96xf32, #tpu.memory_space<vmem>>, vector<2x96xf32>
    %cst_131 = arith.constant dense<0.000000e+00> : vector<2x96xf32>
    %460 = tpu.matmul %458, %31, %cst_131 {dimension_numbers = #tpu.dot_dimension_numbers<[1], [0], [0], [1], [0, 0, 1, 1], [], []>} : vector<2x32xf32>, vector<32x96xf32>, vector<2x96xf32> -> vector<2x96xf32>
    %461 = vector.extract_strided_slice %459 {offsets = [0, 0], sizes = [2, 32], strides = [1, 1]} : vector<2x96xf32> to vector<2x32xf32>
    %462 = vector.extract_strided_slice %460 {offsets = [0, 0], sizes = [2, 32], strides = [1, 1]} : vector<2x96xf32> to vector<2x32xf32>
    %463 = arith.addf %461, %462 : vector<2x32xf32>
    %464 = arith.negf %463 : vector<2x32xf32>
    %465 = math.exp %464 : vector<2x32xf32>
    %cst_132 = arith.constant 1.000000e+00 : f32
    %466 = vector.broadcast %cst_132 : f32 to vector<2x32xf32>
    %467 = arith.addf %466, %465 : vector<2x32xf32>
    %468 = arith.divf %466, %467 : vector<2x32xf32>
    %469 = vector.extract_strided_slice %459 {offsets = [0, 32], sizes = [2, 32], strides = [1, 1]} : vector<2x96xf32> to vector<2x32xf32>
    %470 = vector.extract_strided_slice %460 {offsets = [0, 32], sizes = [2, 32], strides = [1, 1]} : vector<2x96xf32> to vector<2x32xf32>
    %471 = arith.addf %469, %470 : vector<2x32xf32>
    %472 = arith.negf %471 : vector<2x32xf32>
    %473 = math.exp %472 : vector<2x32xf32>
    %cst_133 = arith.constant 1.000000e+00 : f32
    %474 = vector.broadcast %cst_133 : f32 to vector<2x32xf32>
    %475 = arith.addf %474, %473 : vector<2x32xf32>
    %476 = arith.divf %474, %475 : vector<2x32xf32>
    %477 = vector.extract_strided_slice %459 {offsets = [0, 64], sizes = [2, 32], strides = [1, 1]} : vector<2x96xf32> to vector<2x32xf32>
    %478 = vector.extract_strided_slice %460 {offsets = [0, 64], sizes = [2, 32], strides = [1, 1]} : vector<2x96xf32> to vector<2x32xf32>
    %479 = vector.broadcast %33 : vector<1x32xf32> to vector<2x32xf32>
    %480 = arith.addf %478, %479 : vector<2x32xf32>
    %481 = arith.mulf %468, %480 : vector<2x32xf32>
    %482 = arith.addf %477, %481 : vector<2x32xf32>
    %483 = math.tanh %482 : vector<2x32xf32>
    %cst_134 = arith.constant 1.000000e+00 : f32
    %484 = vector.broadcast %cst_134 : f32 to vector<2x32xf32>
    %485 = arith.subf %484, %476 : vector<2x32xf32>
    %486 = arith.mulf %485, %483 : vector<2x32xf32>
    %487 = arith.mulf %476, %458 : vector<2x32xf32>
    %488 = arith.addf %486, %487 : vector<2x32xf32>
    %c5_i32_135 = arith.constant 5 : i32
    %489 = vector.broadcast %c5_i32_135 : i32 to vector<2x1xi32>
    %490 = arith.cmpi sgt, %29, %489 : vector<2x1xi32>
    %c5_136 = arith.constant 5 : index
    %c0_137 = arith.constant 0 : index
    %c0_138 = arith.constant 0 : index
    %491 = vector.load %arg12[%c5_136, %c0_137, %c0_138] : memref<8x2x32xf32, #tpu.memory_space<vmem>>, vector<1x2x32xf32>
    %492 = vector.shape_cast %491 : vector<1x2x32xf32> to vector<2x32xf32>
    %cst_139 = arith.constant 0.000000e+00 : f32
    %493 = vector.shape_cast %490 : vector<2x1xi1> to vector<2x1xi1>
    %494 = vector.broadcast %493 : vector<2x1xi1> to vector<2x32xi1>
    %495 = vector.broadcast %cst_139 : f32 to vector<2x32xf32>
    %496 = arith.select %494, %488, %495 : vector<2x32xi1>, vector<2x32xf32>
    %497 = arith.addf %492, %496 : vector<2x32xf32>
    %c5_140 = arith.constant 5 : index
    %c0_141 = arith.constant 0 : index
    %c0_142 = arith.constant 0 : index
    %498 = vector.load %arg12[%c5_140, %c0_141, %c0_142] : memref<8x2x32xf32, #tpu.memory_space<vmem>>, vector<1x2x32xf32>
    %499 = vector.shape_cast %498 : vector<1x2x32xf32> to vector<2x32xf32>
    %500 = vector.shape_cast %497 : vector<2x32xf32> to vector<1x2x32xf32>
    tpu.vector_store %arg12[%c5_140, %c0_141, %c0_142], %500 {strides = array<i32>} : memref<8x2x32xf32, #tpu.memory_space<vmem>>, vector<1x2x32xf32>,
    %501 = vector.shape_cast %490 : vector<2x1xi1> to vector<2x1xi1>
    %502 = vector.broadcast %501 : vector<2x1xi1> to vector<2x32xi1>
    %503 = arith.select %502, %488, %458 : vector<2x32xi1>, vector<2x32xf32>
    %c8_143 = arith.constant 8 : index
    %c0_144 = arith.constant 0 : index
    %504 = vector.load %arg11[%c8_143, %c0_144] : memref<16x96xf32, #tpu.memory_space<vmem>>, vector<2x96xf32>
    %cst_145 = arith.constant dense<0.000000e+00> : vector<2x96xf32>
    %505 = tpu.matmul %503, %31, %cst_145 {dimension_numbers = #tpu.dot_dimension_numbers<[1], [0], [0], [1], [0, 0, 1, 1], [], []>} : vector<2x32xf32>, vector<32x96xf32>, vector<2x96xf32> -> vector<2x96xf32>
    %506 = vector.extract_strided_slice %504 {offsets = [0, 0], sizes = [2, 32], strides = [1, 1]} : vector<2x96xf32> to vector<2x32xf32>
    %507 = vector.extract_strided_slice %505 {offsets = [0, 0], sizes = [2, 32], strides = [1, 1]} : vector<2x96xf32> to vector<2x32xf32>
    %508 = arith.addf %506, %507 : vector<2x32xf32>
    %509 = arith.negf %508 : vector<2x32xf32>
    %510 = math.exp %509 : vector<2x32xf32>
    %cst_146 = arith.constant 1.000000e+00 : f32
    %511 = vector.broadcast %cst_146 : f32 to vector<2x32xf32>
    %512 = arith.addf %511, %510 : vector<2x32xf32>
    %513 = arith.divf %511, %512 : vector<2x32xf32>
    %514 = vector.extract_strided_slice %504 {offsets = [0, 32], sizes = [2, 32], strides = [1, 1]} : vector<2x96xf32> to vector<2x32xf32>
    %515 = vector.extract_strided_slice %505 {offsets = [0, 32], sizes = [2, 32], strides = [1, 1]} : vector<2x96xf32> to vector<2x32xf32>
    %516 = arith.addf %514, %515 : vector<2x32xf32>
    %517 = arith.negf %516 : vector<2x32xf32>
    %518 = math.exp %517 : vector<2x32xf32>
    %cst_147 = arith.constant 1.000000e+00 : f32
    %519 = vector.broadcast %cst_147 : f32 to vector<2x32xf32>
    %520 = arith.addf %519, %518 : vector<2x32xf32>
    %521 = arith.divf %519, %520 : vector<2x32xf32>
    %522 = vector.extract_strided_slice %504 {offsets = [0, 64], sizes = [2, 32], strides = [1, 1]} : vector<2x96xf32> to vector<2x32xf32>
    %523 = vector.extract_strided_slice %505 {offsets = [0, 64], sizes = [2, 32], strides = [1, 1]} : vector<2x96xf32> to vector<2x32xf32>
    %524 = vector.broadcast %33 : vector<1x32xf32> to vector<2x32xf32>
    %525 = arith.addf %523, %524 : vector<2x32xf32>
    %526 = arith.mulf %513, %525 : vector<2x32xf32>
    %527 = arith.addf %522, %526 : vector<2x32xf32>
    %528 = math.tanh %527 : vector<2x32xf32>
    %cst_148 = arith.constant 1.000000e+00 : f32
    %529 = vector.broadcast %cst_148 : f32 to vector<2x32xf32>
    %530 = arith.subf %529, %521 : vector<2x32xf32>
    %531 = arith.mulf %530, %528 : vector<2x32xf32>
    %532 = arith.mulf %521, %503 : vector<2x32xf32>
    %533 = arith.addf %531, %532 : vector<2x32xf32>
    %c4_i32_149 = arith.constant 4 : i32
    %534 = vector.broadcast %c4_i32_149 : i32 to vector<2x1xi32>
    %535 = arith.cmpi sgt, %29, %534 : vector<2x1xi32>
    %c4_150 = arith.constant 4 : index
    %c0_151 = arith.constant 0 : index
    %c0_152 = arith.constant 0 : index
    %536 = vector.load %arg12[%c4_150, %c0_151, %c0_152] : memref<8x2x32xf32, #tpu.memory_space<vmem>>, vector<1x2x32xf32>
    %537 = vector.shape_cast %536 : vector<1x2x32xf32> to vector<2x32xf32>
    %cst_153 = arith.constant 0.000000e+00 : f32
    %538 = vector.shape_cast %535 : vector<2x1xi1> to vector<2x1xi1>
    %539 = vector.broadcast %538 : vector<2x1xi1> to vector<2x32xi1>
    %540 = vector.broadcast %cst_153 : f32 to vector<2x32xf32>
    %541 = arith.select %539, %533, %540 : vector<2x32xi1>, vector<2x32xf32>
    %542 = arith.addf %537, %541 : vector<2x32xf32>
    %c4_154 = arith.constant 4 : index
    %c0_155 = arith.constant 0 : index
    %c0_156 = arith.constant 0 : index
    %543 = vector.load %arg12[%c4_154, %c0_155, %c0_156] : memref<8x2x32xf32, #tpu.memory_space<vmem>>, vector<1x2x32xf32>
    %544 = vector.shape_cast %543 : vector<1x2x32xf32> to vector<2x32xf32>
    %545 = vector.shape_cast %542 : vector<2x32xf32> to vector<1x2x32xf32>
    tpu.vector_store %arg12[%c4_154, %c0_155, %c0_156], %545 {strides = array<i32>} : memref<8x2x32xf32, #tpu.memory_space<vmem>>, vector<1x2x32xf32>,
    %546 = vector.shape_cast %535 : vector<2x1xi1> to vector<2x1xi1>
    %547 = vector.broadcast %546 : vector<2x1xi1> to vector<2x32xi1>
    %548 = arith.select %547, %533, %503 : vector<2x32xi1>, vector<2x32xf32>
    %c6_157 = arith.constant 6 : index
    %c0_158 = arith.constant 0 : index
    %549 = vector.load %arg11[%c6_157, %c0_158] : memref<16x96xf32, #tpu.memory_space<vmem>>, vector<2x96xf32>
    %cst_159 = arith.constant dense<0.000000e+00> : vector<2x96xf32>
    %550 = tpu.matmul %548, %31, %cst_159 {dimension_numbers = #tpu.dot_dimension_numbers<[1], [0], [0], [1], [0, 0, 1, 1], [], []>} : vector<2x32xf32>, vector<32x96xf32>, vector<2x96xf32> -> vector<2x96xf32>
    %551 = vector.extract_strided_slice %549 {offsets = [0, 0], sizes = [2, 32], strides = [1, 1]} : vector<2x96xf32> to vector<2x32xf32>
    %552 = vector.extract_strided_slice %550 {offsets = [0, 0], sizes = [2, 32], strides = [1, 1]} : vector<2x96xf32> to vector<2x32xf32>
    %553 = arith.addf %551, %552 : vector<2x32xf32>
    %554 = arith.negf %553 : vector<2x32xf32>
    %555 = math.exp %554 : vector<2x32xf32>
    %cst_160 = arith.constant 1.000000e+00 : f32
    %556 = vector.broadcast %cst_160 : f32 to vector<2x32xf32>
    %557 = arith.addf %556, %555 : vector<2x32xf32>
    %558 = arith.divf %556, %557 : vector<2x32xf32>
    %559 = vector.extract_strided_slice %549 {offsets = [0, 32], sizes = [2, 32], strides = [1, 1]} : vector<2x96xf32> to vector<2x32xf32>
    %560 = vector.extract_strided_slice %550 {offsets = [0, 32], sizes = [2, 32], strides = [1, 1]} : vector<2x96xf32> to vector<2x32xf32>
    %561 = arith.addf %559, %560 : vector<2x32xf32>
    %562 = arith.negf %561 : vector<2x32xf32>
    %563 = math.exp %562 : vector<2x32xf32>
    %cst_161 = arith.constant 1.000000e+00 : f32
    %564 = vector.broadcast %cst_161 : f32 to vector<2x32xf32>
    %565 = arith.addf %564, %563 : vector<2x32xf32>
    %566 = arith.divf %564, %565 : vector<2x32xf32>
    %567 = vector.extract_strided_slice %549 {offsets = [0, 64], sizes = [2, 32], strides = [1, 1]} : vector<2x96xf32> to vector<2x32xf32>
    %568 = vector.extract_strided_slice %550 {offsets = [0, 64], sizes = [2, 32], strides = [1, 1]} : vector<2x96xf32> to vector<2x32xf32>
    %569 = vector.broadcast %33 : vector<1x32xf32> to vector<2x32xf32>
    %570 = arith.addf %568, %569 : vector<2x32xf32>
    %571 = arith.mulf %558, %570 : vector<2x32xf32>
    %572 = arith.addf %567, %571 : vector<2x32xf32>
    %573 = math.tanh %572 : vector<2x32xf32>
    %cst_162 = arith.constant 1.000000e+00 : f32
    %574 = vector.broadcast %cst_162 : f32 to vector<2x32xf32>
    %575 = arith.subf %574, %566 : vector<2x32xf32>
    %576 = arith.mulf %575, %573 : vector<2x32xf32>
    %577 = arith.mulf %566, %548 : vector<2x32xf32>
    %578 = arith.addf %576, %577 : vector<2x32xf32>
    %c3_i32_163 = arith.constant 3 : i32
    %579 = vector.broadcast %c3_i32_163 : i32 to vector<2x1xi32>
    %580 = arith.cmpi sgt, %29, %579 : vector<2x1xi32>
    %c3_164 = arith.constant 3 : index
    %c0_165 = arith.constant 0 : index
    %c0_166 = arith.constant 0 : index
    %581 = vector.load %arg12[%c3_164, %c0_165, %c0_166] : memref<8x2x32xf32, #tpu.memory_space<vmem>>, vector<1x2x32xf32>
    %582 = vector.shape_cast %581 : vector<1x2x32xf32> to vector<2x32xf32>
    %cst_167 = arith.constant 0.000000e+00 : f32
    %583 = vector.shape_cast %580 : vector<2x1xi1> to vector<2x1xi1>
    %584 = vector.broadcast %583 : vector<2x1xi1> to vector<2x32xi1>
    %585 = vector.broadcast %cst_167 : f32 to vector<2x32xf32>
    %586 = arith.select %584, %578, %585 : vector<2x32xi1>, vector<2x32xf32>
    %587 = arith.addf %582, %586 : vector<2x32xf32>
    %c3_168 = arith.constant 3 : index
    %c0_169 = arith.constant 0 : index
    %c0_170 = arith.constant 0 : index
    %588 = vector.load %arg12[%c3_168, %c0_169, %c0_170] : memref<8x2x32xf32, #tpu.memory_space<vmem>>, vector<1x2x32xf32>
    %589 = vector.shape_cast %588 : vector<1x2x32xf32> to vector<2x32xf32>
    %590 = vector.shape_cast %587 : vector<2x32xf32> to vector<1x2x32xf32>
    tpu.vector_store %arg12[%c3_168, %c0_169, %c0_170], %590 {strides = array<i32>} : memref<8x2x32xf32, #tpu.memory_space<vmem>>, vector<1x2x32xf32>,
    %591 = vector.shape_cast %580 : vector<2x1xi1> to vector<2x1xi1>
    %592 = vector.broadcast %591 : vector<2x1xi1> to vector<2x32xi1>
    %593 = arith.select %592, %578, %548 : vector<2x32xi1>, vector<2x32xf32>
    %c4_171 = arith.constant 4 : index
    %c0_172 = arith.constant 0 : index
    %594 = vector.load %arg11[%c4_171, %c0_172] : memref<16x96xf32, #tpu.memory_space<vmem>>, vector<2x96xf32>
    %cst_173 = arith.constant dense<0.000000e+00> : vector<2x96xf32>
    %595 = tpu.matmul %593, %31, %cst_173 {dimension_numbers = #tpu.dot_dimension_numbers<[1], [0], [0], [1], [0, 0, 1, 1], [], []>} : vector<2x32xf32>, vector<32x96xf32>, vector<2x96xf32> -> vector<2x96xf32>
    %596 = vector.extract_strided_slice %594 {offsets = [0, 0], sizes = [2, 32], strides = [1, 1]} : vector<2x96xf32> to vector<2x32xf32>
    %597 = vector.extract_strided_slice %595 {offsets = [0, 0], sizes = [2, 32], strides = [1, 1]} : vector<2x96xf32> to vector<2x32xf32>
    %598 = arith.addf %596, %597 : vector<2x32xf32>
    %599 = arith.negf %598 : vector<2x32xf32>
    %600 = math.exp %599 : vector<2x32xf32>
    %cst_174 = arith.constant 1.000000e+00 : f32
    %601 = vector.broadcast %cst_174 : f32 to vector<2x32xf32>
    %602 = arith.addf %601, %600 : vector<2x32xf32>
    %603 = arith.divf %601, %602 : vector<2x32xf32>
    %604 = vector.extract_strided_slice %594 {offsets = [0, 32], sizes = [2, 32], strides = [1, 1]} : vector<2x96xf32> to vector<2x32xf32>
    %605 = vector.extract_strided_slice %595 {offsets = [0, 32], sizes = [2, 32], strides = [1, 1]} : vector<2x96xf32> to vector<2x32xf32>
    %606 = arith.addf %604, %605 : vector<2x32xf32>
    %607 = arith.negf %606 : vector<2x32xf32>
    %608 = math.exp %607 : vector<2x32xf32>
    %cst_175 = arith.constant 1.000000e+00 : f32
    %609 = vector.broadcast %cst_175 : f32 to vector<2x32xf32>
    %610 = arith.addf %609, %608 : vector<2x32xf32>
    %611 = arith.divf %609, %610 : vector<2x32xf32>
    %612 = vector.extract_strided_slice %594 {offsets = [0, 64], sizes = [2, 32], strides = [1, 1]} : vector<2x96xf32> to vector<2x32xf32>
    %613 = vector.extract_strided_slice %595 {offsets = [0, 64], sizes = [2, 32], strides = [1, 1]} : vector<2x96xf32> to vector<2x32xf32>
    %614 = vector.broadcast %33 : vector<1x32xf32> to vector<2x32xf32>
    %615 = arith.addf %613, %614 : vector<2x32xf32>
    %616 = arith.mulf %603, %615 : vector<2x32xf32>
    %617 = arith.addf %612, %616 : vector<2x32xf32>
    %618 = math.tanh %617 : vector<2x32xf32>
    %cst_176 = arith.constant 1.000000e+00 : f32
    %619 = vector.broadcast %cst_176 : f32 to vector<2x32xf32>
    %620 = arith.subf %619, %611 : vector<2x32xf32>
    %621 = arith.mulf %620, %618 : vector<2x32xf32>
    %622 = arith.mulf %611, %593 : vector<2x32xf32>
    %623 = arith.addf %621, %622 : vector<2x32xf32>
    %c2_i32_177 = arith.constant 2 : i32
    %624 = vector.broadcast %c2_i32_177 : i32 to vector<2x1xi32>
    %625 = arith.cmpi sgt, %29, %624 : vector<2x1xi32>
    %c2_178 = arith.constant 2 : index
    %c0_179 = arith.constant 0 : index
    %c0_180 = arith.constant 0 : index
    %626 = vector.load %arg12[%c2_178, %c0_179, %c0_180] : memref<8x2x32xf32, #tpu.memory_space<vmem>>, vector<1x2x32xf32>
    %627 = vector.shape_cast %626 : vector<1x2x32xf32> to vector<2x32xf32>
    %cst_181 = arith.constant 0.000000e+00 : f32
    %628 = vector.shape_cast %625 : vector<2x1xi1> to vector<2x1xi1>
    %629 = vector.broadcast %628 : vector<2x1xi1> to vector<2x32xi1>
    %630 = vector.broadcast %cst_181 : f32 to vector<2x32xf32>
    %631 = arith.select %629, %623, %630 : vector<2x32xi1>, vector<2x32xf32>
    %632 = arith.addf %627, %631 : vector<2x32xf32>
    %c2_182 = arith.constant 2 : index
    %c0_183 = arith.constant 0 : index
    %c0_184 = arith.constant 0 : index
    %633 = vector.load %arg12[%c2_182, %c0_183, %c0_184] : memref<8x2x32xf32, #tpu.memory_space<vmem>>, vector<1x2x32xf32>
    %634 = vector.shape_cast %633 : vector<1x2x32xf32> to vector<2x32xf32>
    %635 = vector.shape_cast %632 : vector<2x32xf32> to vector<1x2x32xf32>
    tpu.vector_store %arg12[%c2_182, %c0_183, %c0_184], %635 {strides = array<i32>} : memref<8x2x32xf32, #tpu.memory_space<vmem>>, vector<1x2x32xf32>,
    %636 = vector.shape_cast %625 : vector<2x1xi1> to vector<2x1xi1>
    %637 = vector.broadcast %636 : vector<2x1xi1> to vector<2x32xi1>
    %638 = arith.select %637, %623, %593 : vector<2x32xi1>, vector<2x32xf32>
    %c2_185 = arith.constant 2 : index
    %c0_186 = arith.constant 0 : index
    %639 = vector.load %arg11[%c2_185, %c0_186] : memref<16x96xf32, #tpu.memory_space<vmem>>, vector<2x96xf32>
    %cst_187 = arith.constant dense<0.000000e+00> : vector<2x96xf32>
    %640 = tpu.matmul %638, %31, %cst_187 {dimension_numbers = #tpu.dot_dimension_numbers<[1], [0], [0], [1], [0, 0, 1, 1], [], []>} : vector<2x32xf32>, vector<32x96xf32>, vector<2x96xf32> -> vector<2x96xf32>
    %641 = vector.extract_strided_slice %639 {offsets = [0, 0], sizes = [2, 32], strides = [1, 1]} : vector<2x96xf32> to vector<2x32xf32>
    %642 = vector.extract_strided_slice %640 {offsets = [0, 0], sizes = [2, 32], strides = [1, 1]} : vector<2x96xf32> to vector<2x32xf32>
    %643 = arith.addf %641, %642 : vector<2x32xf32>
    %644 = arith.negf %643 : vector<2x32xf32>
    %645 = math.exp %644 : vector<2x32xf32>
    %cst_188 = arith.constant 1.000000e+00 : f32
    %646 = vector.broadcast %cst_188 : f32 to vector<2x32xf32>
    %647 = arith.addf %646, %645 : vector<2x32xf32>
    %648 = arith.divf %646, %647 : vector<2x32xf32>
    %649 = vector.extract_strided_slice %639 {offsets = [0, 32], sizes = [2, 32], strides = [1, 1]} : vector<2x96xf32> to vector<2x32xf32>
    %650 = vector.extract_strided_slice %640 {offsets = [0, 32], sizes = [2, 32], strides = [1, 1]} : vector<2x96xf32> to vector<2x32xf32>
    %651 = arith.addf %649, %650 : vector<2x32xf32>
    %652 = arith.negf %651 : vector<2x32xf32>
    %653 = math.exp %652 : vector<2x32xf32>
    %cst_189 = arith.constant 1.000000e+00 : f32
    %654 = vector.broadcast %cst_189 : f32 to vector<2x32xf32>
    %655 = arith.addf %654, %653 : vector<2x32xf32>
    %656 = arith.divf %654, %655 : vector<2x32xf32>
    %657 = vector.extract_strided_slice %639 {offsets = [0, 64], sizes = [2, 32], strides = [1, 1]} : vector<2x96xf32> to vector<2x32xf32>
    %658 = vector.extract_strided_slice %640 {offsets = [0, 64], sizes = [2, 32], strides = [1, 1]} : vector<2x96xf32> to vector<2x32xf32>
    %659 = vector.broadcast %33 : vector<1x32xf32> to vector<2x32xf32>
    %660 = arith.addf %658, %659 : vector<2x32xf32>
    %661 = arith.mulf %648, %660 : vector<2x32xf32>
    %662 = arith.addf %657, %661 : vector<2x32xf32>
    %663 = math.tanh %662 : vector<2x32xf32>
    %cst_190 = arith.constant 1.000000e+00 : f32
    %664 = vector.broadcast %cst_190 : f32 to vector<2x32xf32>
    %665 = arith.subf %664, %656 : vector<2x32xf32>
    %666 = arith.mulf %665, %663 : vector<2x32xf32>
    %667 = arith.mulf %656, %638 : vector<2x32xf32>
    %668 = arith.addf %666, %667 : vector<2x32xf32>
    %c1_i32_191 = arith.constant 1 : i32
    %669 = vector.broadcast %c1_i32_191 : i32 to vector<2x1xi32>
    %670 = arith.cmpi sgt, %29, %669 : vector<2x1xi32>
    %c1_192 = arith.constant 1 : index
    %c0_193 = arith.constant 0 : index
    %c0_194 = arith.constant 0 : index
    %671 = vector.load %arg12[%c1_192, %c0_193, %c0_194] : memref<8x2x32xf32, #tpu.memory_space<vmem>>, vector<1x2x32xf32>
    %672 = vector.shape_cast %671 : vector<1x2x32xf32> to vector<2x32xf32>
    %cst_195 = arith.constant 0.000000e+00 : f32
    %673 = vector.shape_cast %670 : vector<2x1xi1> to vector<2x1xi1>
    %674 = vector.broadcast %673 : vector<2x1xi1> to vector<2x32xi1>
    %675 = vector.broadcast %cst_195 : f32 to vector<2x32xf32>
    %676 = arith.select %674, %668, %675 : vector<2x32xi1>, vector<2x32xf32>
    %677 = arith.addf %672, %676 : vector<2x32xf32>
    %c1_196 = arith.constant 1 : index
    %c0_197 = arith.constant 0 : index
    %c0_198 = arith.constant 0 : index
    %678 = vector.load %arg12[%c1_196, %c0_197, %c0_198] : memref<8x2x32xf32, #tpu.memory_space<vmem>>, vector<1x2x32xf32>
    %679 = vector.shape_cast %678 : vector<1x2x32xf32> to vector<2x32xf32>
    %680 = vector.shape_cast %677 : vector<2x32xf32> to vector<1x2x32xf32>
    tpu.vector_store %arg12[%c1_196, %c0_197, %c0_198], %680 {strides = array<i32>} : memref<8x2x32xf32, #tpu.memory_space<vmem>>, vector<1x2x32xf32>,
    %681 = vector.shape_cast %670 : vector<2x1xi1> to vector<2x1xi1>
    %682 = vector.broadcast %681 : vector<2x1xi1> to vector<2x32xi1>
    %683 = arith.select %682, %668, %638 : vector<2x32xi1>, vector<2x32xf32>
    %c0_199 = arith.constant 0 : index
    %c0_200 = arith.constant 0 : index
    %684 = vector.load %arg11[%c0_199, %c0_200] : memref<16x96xf32, #tpu.memory_space<vmem>>, vector<2x96xf32>
    %cst_201 = arith.constant dense<0.000000e+00> : vector<2x96xf32>
    %685 = tpu.matmul %683, %31, %cst_201 {dimension_numbers = #tpu.dot_dimension_numbers<[1], [0], [0], [1], [0, 0, 1, 1], [], []>} : vector<2x32xf32>, vector<32x96xf32>, vector<2x96xf32> -> vector<2x96xf32>
    %686 = vector.extract_strided_slice %684 {offsets = [0, 0], sizes = [2, 32], strides = [1, 1]} : vector<2x96xf32> to vector<2x32xf32>
    %687 = vector.extract_strided_slice %685 {offsets = [0, 0], sizes = [2, 32], strides = [1, 1]} : vector<2x96xf32> to vector<2x32xf32>
    %688 = arith.addf %686, %687 : vector<2x32xf32>
    %689 = arith.negf %688 : vector<2x32xf32>
    %690 = math.exp %689 : vector<2x32xf32>
    %cst_202 = arith.constant 1.000000e+00 : f32
    %691 = vector.broadcast %cst_202 : f32 to vector<2x32xf32>
    %692 = arith.addf %691, %690 : vector<2x32xf32>
    %693 = arith.divf %691, %692 : vector<2x32xf32>
    %694 = vector.extract_strided_slice %684 {offsets = [0, 32], sizes = [2, 32], strides = [1, 1]} : vector<2x96xf32> to vector<2x32xf32>
    %695 = vector.extract_strided_slice %685 {offsets = [0, 32], sizes = [2, 32], strides = [1, 1]} : vector<2x96xf32> to vector<2x32xf32>
    %696 = arith.addf %694, %695 : vector<2x32xf32>
    %697 = arith.negf %696 : vector<2x32xf32>
    %698 = math.exp %697 : vector<2x32xf32>
    %cst_203 = arith.constant 1.000000e+00 : f32
    %699 = vector.broadcast %cst_203 : f32 to vector<2x32xf32>
    %700 = arith.addf %699, %698 : vector<2x32xf32>
    %701 = arith.divf %699, %700 : vector<2x32xf32>
    %702 = vector.extract_strided_slice %684 {offsets = [0, 64], sizes = [2, 32], strides = [1, 1]} : vector<2x96xf32> to vector<2x32xf32>
    %703 = vector.extract_strided_slice %685 {offsets = [0, 64], sizes = [2, 32], strides = [1, 1]} : vector<2x96xf32> to vector<2x32xf32>
    %704 = vector.broadcast %33 : vector<1x32xf32> to vector<2x32xf32>
    %705 = arith.addf %703, %704 : vector<2x32xf32>
    %706 = arith.mulf %693, %705 : vector<2x32xf32>
    %707 = arith.addf %702, %706 : vector<2x32xf32>
    %708 = math.tanh %707 : vector<2x32xf32>
    %cst_204 = arith.constant 1.000000e+00 : f32
    %709 = vector.broadcast %cst_204 : f32 to vector<2x32xf32>
    %710 = arith.subf %709, %701 : vector<2x32xf32>
    %711 = arith.mulf %710, %708 : vector<2x32xf32>
    %712 = arith.mulf %701, %683 : vector<2x32xf32>
    %713 = arith.addf %711, %712 : vector<2x32xf32>
    %c0_i32_205 = arith.constant 0 : i32
    %714 = vector.broadcast %c0_i32_205 : i32 to vector<2x1xi32>
    %715 = arith.cmpi sgt, %29, %714 : vector<2x1xi32>
    %c0_206 = arith.constant 0 : index
    %c0_207 = arith.constant 0 : index
    %c0_208 = arith.constant 0 : index
    %716 = vector.load %arg12[%c0_206, %c0_207, %c0_208] : memref<8x2x32xf32, #tpu.memory_space<vmem>>, vector<1x2x32xf32>
    %717 = vector.shape_cast %716 : vector<1x2x32xf32> to vector<2x32xf32>
    %cst_209 = arith.constant 0.000000e+00 : f32
    %718 = vector.shape_cast %715 : vector<2x1xi1> to vector<2x1xi1>
    %719 = vector.broadcast %718 : vector<2x1xi1> to vector<2x32xi1>
    %720 = vector.broadcast %cst_209 : f32 to vector<2x32xf32>
    %721 = arith.select %719, %713, %720 : vector<2x32xi1>, vector<2x32xf32>
    %722 = arith.addf %717, %721 : vector<2x32xf32>
    %c0_210 = arith.constant 0 : index
    %c0_211 = arith.constant 0 : index
    %c0_212 = arith.constant 0 : index
    %723 = vector.load %arg12[%c0_210, %c0_211, %c0_212] : memref<8x2x32xf32, #tpu.memory_space<vmem>>, vector<1x2x32xf32>
    %724 = vector.shape_cast %723 : vector<1x2x32xf32> to vector<2x32xf32>
    %725 = vector.shape_cast %722 : vector<2x32xf32> to vector<1x2x32xf32>
    tpu.vector_store %arg12[%c0_210, %c0_211, %c0_212], %725 {strides = array<i32>} : memref<8x2x32xf32, #tpu.memory_space<vmem>>, vector<1x2x32xf32>,
    %c0_213 = arith.constant 0 : index
    %c0_214 = arith.constant 0 : index
    %c0_215 = arith.constant 0 : index
    %726 = vector.load %arg12[%c0_213, %c0_214, %c0_215] : memref<8x2x32xf32, #tpu.memory_space<vmem>>, vector<8x2x32xf32>
    %727 = tpu.transpose %726, [1, 0, 2] : vector<8x2x32xf32> -> vector<2x8x32xf32>
    %c0_216 = arith.constant 0 : index
    %c0_217 = arith.constant 0 : index
    %c0_218 = arith.constant 0 : index
    %728 = vector.load %arg9[%c0_216, %c0_217, %c0_218] : memref<2x8x32xf32, #tpu.memory_space<vmem>>, vector<2x8x32xf32>
    tpu.vector_store %arg9[%c0_216, %c0_217, %c0_218], %727 {strides = array<i32>} : memref<2x8x32xf32, #tpu.memory_space<vmem>>, vector<2x8x32xf32>,
    return
  }
}

</mosaic_0001>

<llo_original>
// kernel: tpu_custom_call.1
$region0: #{tpu_custom_call.1}
  #allocation0 [shape = 'u32[]', space=smem, size = 0x4, offset = 0x4, fixed_abs, tag = 'smem constant byte address 0x4 - core index']
  #allocation1 [shape = 'u32[144,128]{1,0:T(1,128)}', space=vmem, size = 0x12000, scoped, tag = 'internal scratch']
  #allocation2 [shape = 'f32[16,96]{1,0:T(8,128)}', space=vmem, size = 0x2000, scoped, tag = 'scratch operand']
  #allocation3 [shape = 'f32[16,96]{1,0:T(8,128)}', space=vmem, size = 0x2000, scoped, tag = 'scratch operand']
  #allocation4 [shape = 'f32[8,2,32]{2,1,0:T(2,128)}', space=vmem, size = 0x2000, scoped, tag = 'scratch operand']
  %s0 = inlined_call_operand.vmem [shape: s32[2,1], index: 0, kind: input, shape index: {}]
  %s1 = inlined_call_operand.hbm [shape: f32[2,8,32], index: 1, kind: input, shape index: {}]
  %s2 = inlined_call_operand.vmem [shape: f32[2,6,32], index: 2, kind: input, shape index: {}]
  %s3 = inlined_call_operand.vmem [shape: f32[32,32], index: 3, kind: input, shape index: {}]
  %s4 = inlined_call_operand.hbm [shape: f32[32,192], index: 4, kind: input, shape index: {}]
  %s5 = inlined_call_operand.vmem [shape: f32[1,192], index: 5, kind: input, shape index: {}]
  %s6 = inlined_call_operand.hbm [shape: f32[32,96], index: 6, kind: input, shape index: {}]
  %s7 = inlined_call_operand.hbm [shape: f32[32,96], index: 7, kind: input, shape index: {}]
  %s8 = inlined_call_operand.vmem [shape: f32[2,32], index: 8, kind: input, shape index: {}]
  %s9 = inlined_call_operand.hbm [shape: f32[2,8,32], index: 9, kind: output, shape index: {}]
  %s10 = sld [smem:[#allocation0]]
  $region62: #{tpu_custom_call.1} parent=0
    _
  %s12 = ssub.s32 1, %s10
  %s13 = scalar_select 0, %s12, %s10
  $region1: #{tpu_custom_call.1} parent=0
    #allocation5 [shape = 'u8[8192]{0}', space=vmem, size = 0x2000, scoped, tag = 'input window, operand 1, single buffered']
    #allocation6 [shape = 's32[1]{0}', space=sflag, size = 0x4, scoped, tag = 'scoped memory for tpu_custom_call.1']
    #allocation7 [shape = 's32[1]{0}', space=sflag, size = 0x4, scoped, tag = 'scoped memory for tpu_custom_call.1']
    #allocation8 [shape = 'u8[32768]{0}', space=vmem, size = 0x8000, scoped, tag = 'input window, operand 4, single buffered']
    #allocation9 [shape = 's32[1]{0}', space=sflag, size = 0x4, scoped, tag = 'scoped memory for tpu_custom_call.1']
    #allocation10 [shape = 'u8[16384]{0}', space=vmem, size = 0x4000, scoped, tag = 'input window, operand 6, single buffered']
    #allocation11 [shape = 'u8[16384]{0}', space=vmem, size = 0x4000, scoped, tag = 'input window, operand 7, single buffered']
    #allocation12 [shape = 's32[1]{0}', space=sflag, size = 0x4, scoped, tag = 'scoped memory for tpu_custom_call.1']
    #allocation13 [shape = 'u8[8192]{0}', space=vmem, size = 0x2000, scoped, tag = 'output window, operand 0, single buffered']
    %14 = vsyncpa [#allocation6], 0
    %15 = vsyncpa [#allocation9], 0
    %16 = vsyncpa [#allocation12], 0
    %17 = vsyncpa [#allocation7], 0
    // Predicated region
    $region2: #{tpu_custom_call.1} parent=1 // pred_check
      _
    $region3: #{tpu_custom_call.1} parent=1 // pred_check_branch
      %19 = sbr.rel (0) target = $region5
    $region4: #{tpu_custom_call.1} parent=1 // pred_region
      _
    $region5: #{tpu_custom_call.1} parent=1 // pred_fallthru
      _
    // Predicated region
    $region6: #{tpu_custom_call.1} parent=1 // pred_check
      _
    $region7: #{tpu_custom_call.1} parent=1 // pred_check_branch
      %21 = sbr.rel (0) target = $region9
    $region8: #{tpu_custom_call.1} parent=1 // pred_region
      %s23 = ssub.s32 256, 256
      %24 = vsyncadd [#allocation6], %s23
      %s25 = sshll.u32 [#allocation5], 4
      %s26 = int_to_ptr.vmem [resolvable:$true] %s25
      %31 = dma.hbm_to_vmem [thread:$0]  %s1, 256, %s26, [#allocation6], 128, 128, 8
    $region9: #{tpu_custom_call.1} parent=1 // pred_fallthru
      _
    // Predicated region
    $region10: #{tpu_custom_call.1} parent=1 // pred_check
      _
    $region11: #{tpu_custom_call.1} parent=1 // pred_check_branch
      %33 = sbr.rel (0) target = $region13
    $region12: #{tpu_custom_call.1} parent=1 // pred_region
      _
    $region13: #{tpu_custom_call.1} parent=1 // pred_fallthru
      _
    // Predicated region
    $region14: #{tpu_custom_call.1} parent=1 // pred_check
      _
    $region15: #{tpu_custom_call.1} parent=1 // pred_check_branch
      %35 = sbr.rel (0) target = $region17
    $region16: #{tpu_custom_call.1} parent=1 // pred_region
      _
    $region17: #{tpu_custom_call.1} parent=1 // pred_fallthru
      _
    // Predicated region
    $region18: #{tpu_custom_call.1} parent=1 // pred_check
      _
    $region19: #{tpu_custom_call.1} parent=1 // pred_check_branch
      %37 = sbr.rel (0) target = $region21
    $region20: #{tpu_custom_call.1} parent=1 // pred_region
      %s39 = ssub.s32 1024, 1024
      %40 = vsyncadd [#allocation9], %s39
      %s41 = sshll.u32 [#allocation8], 4
      %s42 = int_to_ptr.vmem [resolvable:$true] %s41
      %47 = dma.hbm_to_vmem [thread:$0]  %s4, 1024, %s42, [#allocation9], 256, 256, 16
    $region21: #{tpu_custom_call.1} parent=1 // pred_fallthru
      _
    // Predicated region
    $region22: #{tpu_custom_call.1} parent=1 // pred_check
      _
    $region23: #{tpu_custom_call.1} parent=1 // pred_check_branch
      %49 = sbr.rel (0) target = $region25
    $region24: #{tpu_custom_call.1} parent=1 // pred_region
      _
    $region25: #{tpu_custom_call.1} parent=1 // pred_fallthru
      _
    // Predicated region
    $region26: #{tpu_custom_call.1} parent=1 // pred_check
      _
    $region27: #{tpu_custom_call.1} parent=1 // pred_check_branch
      %51 = sbr.rel (0) target = $region29
    $region28: #{tpu_custom_call.1} parent=1 // pred_region
      %s53 = ssub.s32 512, 512
      %54 = vsyncadd [#allocation9], %s53
      %s55 = sshll.u32 [#allocation10], 4
      %s56 = int_to_ptr.vmem [resolvable:$true] %s55
      %61 = dma.hbm_to_vmem [thread:$0]  %s6, 512, %s56, [#allocation9], 128, 128, 8
    $region29: #{tpu_custom_call.1} parent=1 // pred_fallthru
      _
    // Predicated region
    $region30: #{tpu_custom_call.1} parent=1 // pred_check
      _
    $region31: #{tpu_custom_call.1} parent=1 // pred_check_branch
      %63 = sbr.rel (0) target = $region33
    $region32: #{tpu_custom_call.1} parent=1 // pred_region
      %s65 = ssub.s32 512, 512
      %66 = vsyncadd [#allocation12], %s65
      %s67 = sshll.u32 [#allocation11], 4
      %s68 = int_to_ptr.vmem [resolvable:$true] %s67
      %73 = dma.hbm_to_vmem [thread:$0]  %s7, 512, %s68, [#allocation12], 128, 128, 8
    $region33: #{tpu_custom_call.1} parent=1 // pred_fallthru
      _
    // Predicated region
    $region34: #{tpu_custom_call.1} parent=1 // pred_check
      _
    $region35: #{tpu_custom_call.1} parent=1 // pred_check_branch
      %75 = sbr.rel (0) target = $region37
    $region36: #{tpu_custom_call.1} parent=1 // pred_region
      _
    $region37: #{tpu_custom_call.1} parent=1 // pred_fallthru
      _
    // Predicated region
    $region38: #{tpu_custom_call.1} parent=1 // pred_check
      _
    $region39: #{tpu_custom_call.1} parent=1 // pred_check_branch
      %77 = sbr.rel (0) target = $region41
    $region40: #{tpu_custom_call.1} parent=1 // pred_region
      %78 = dma.done [#allocation6], 256
    $region41: #{tpu_custom_call.1} parent=1 // pred_fallthru
      _
    // Predicated region
    $region42: #{tpu_custom_call.1} parent=1 // pred_check
      _
    $region43: #{tpu_custom_call.1} parent=1 // pred_check_branch
      %80 = sbr.rel (0) target = $region45
    $region44: #{tpu_custom_call.1} parent=1 // pred_region
      %81 = dma.done [#allocation9], 1024
    $region45: #{tpu_custom_call.1} parent=1 // pred_fallthru
      _
    // Predicated region
    $region46: #{tpu_custom_call.1} parent=1 // pred_check
      _
    $region47: #{tpu_custom_call.1} parent=1 // pred_check_branch
      %83 = sbr.rel (0) target = $region49
    $region48: #{tpu_custom_call.1} parent=1 // pred_region
      %84 = dma.done [#allocation9], 512
    $region49: #{tpu_custom_call.1} parent=1 // pred_fallthru
      _
    // Predicated region
    $region50: #{tpu_custom_call.1} parent=1 // pred_check
      _
    $region51: #{tpu_custom_call.1} parent=1 // pred_check_branch
      %86 = sbr.rel (0) target = $region53
    $region52: #{tpu_custom_call.1} parent=1 // pred_region
      %87 = dma.done [#allocation12], 512
    $region53: #{tpu_custom_call.1} parent=1 // pred_fallthru
      _
    %v88 = vld [vmem:[#allocation5] sm:$0xff]
    %v89 = vld [vmem:[#allocation5 + $0x8] sm:$0xff]
    %v90 = vld [vmem:[%s2] sm:$0x3f]
    %v91 = vld [vmem:[%s2 + $0x8] sm:$0x3f]
    %v92 = vld [vmem:[%s3] sm:$0xff]
    %v93 = vld [vmem:[%s3 + $0x8] sm:$0xff]
    %v94 = vld [vmem:[%s3 + $0x10] sm:$0xff]
    %v95 = vld [vmem:[%s3 + $0x18] sm:$0xff]
    %vm96 = vcmask 261120
    %v98 = vsel %vm96, %v88, 0
    %v101 = vsel %vm96, %v89, 0
    %103 = vmatprep.subr.mxu0 0.0
    %104 = vmatpush1.msra.mxu0 0.0
    %105 = vmatprep.subr.mxu0 0.0
    %106 = vmatpush1.msra.mxu0 0.0
    %107 = vmatprep.subr.mxu0 0.0
    %108 = vmatpush1.msra.mxu0 0.0
    %109 = vmatprep.subr.mxu0 0.0
    %110 = vmatpush1.msra.mxu0 0.0
    %111 = vmatprep.subr.mxu0 0.0
    %112 = vmatpush1.msra.mxu0 0.0
    %113 = vmatprep.subr.mxu0 0.0
    %114 = vmatpush1.msra.mxu0 0.0
    %115 = vmatprep.subr.mxu0 0.0
    %116 = vmatpush1.msra.mxu0 0.0
    %117 = vmatprep.subr.mxu0 0.0
    %118 = vmatpush1.msra.mxu0 0.0
    %119 = vmatprep.subr.mxu0 0.0
    %120 = vmatpush1.msra.mxu0 0.0
    %121 = vmatprep.subr.mxu0 0.0
    %122 = vmatpush1.msra.mxu0 0.0
    %123 = vmatprep.subr.mxu0 0.0
    %124 = vmatpush1.msra.mxu0 0.0
    %125 = vmatprep.subr.mxu0 0.0
    %126 = vmatpush1.msra.mxu0 0.0
    %127 = vmatprep.subr.mxu0 0.0
    %128 = vmatpush1.msra.mxu0 %v95
    %129 = vmatprep.subr.mxu0 0.0
    %130 = vmatpush1.msra.mxu0 %v94
    %131 = vmatprep.subr.mxu0 0.0
    %132 = vmatpush1.msra.mxu0 %v93
    %133 = vmatprep.subr.mxu0 0.0
    %134 = vmatpush1.msra.mxu0 %v92
    %135 = vmatprep.subr.mxu0 0.0
    %136 = vmatpush2.msra.mxu0 0.0
    %137 = vmatprep.subr.mxu0 0.0
    %138 = vmatpush2.msra.mxu0 0.0
    %139 = vmatprep.subr.mxu0 0.0
    %140 = vmatpush2.msra.mxu0 0.0
    %141 = vmatprep.subr.mxu0 0.0
    %142 = vmatpush2.msra.mxu0 0.0
    %143 = vmatprep.subr.mxu0 0.0
    %144 = vmatpush2.msra.mxu0 0.0
    %145 = vmatprep.subr.mxu0 0.0
    %146 = vmatpush2.msra.mxu0 0.0
    %147 = vmatprep.subr.mxu0 0.0
    %148 = vmatpush2.msra.mxu0 0.0
    %149 = vmatprep.subr.mxu0 0.0
    %150 = vmatpush2.msra.mxu0 0.0
    %151 = vmatprep.subr.mxu0 0.0
    %152 = vmatpush2.msra.mxu0 0.0
    %153 = vmatprep.subr.mxu0 0.0
    %154 = vmatpush2.msra.mxu0 0.0
    %155 = vmatprep.subr.mxu0 0.0
    %156 = vmatpush2.msra.mxu0 0.0
    %157 = vmatprep.subr.mxu0 0.0
    %158 = vmatpush2.msra.mxu0 0.0
    %159 = vmatprep.subr.mxu0 0.0
    %160 = vmatpush2.msra.mxu0 0.0
    %161 = vmatprep.subr.mxu0 0.0
    %162 = vmatpush2.msra.mxu0 0.0
    %163 = vmatprep.subr.mxu0 0.0
    %164 = vmatpush2.msra.mxu0 0.0
    %165 = vmatprep.subr.mxu0 0.0
    %166 = vmatpush2.msra.mxu0 0.0
    %167 = vmatprep.mubr.f32.mxu0 0.0
    %168 = vmatmul.mubr.f32.gmra.mxu0 %v98
    %v169 = vpop.f32.mrf.mxu0
    %v170 = vadd.f32 0.0, %v169
    %v171 = vpop.f32.mrf.mxu0
    %172 = vmatprep.mubr.f32.mxu0 0.0
    %173 = vmatmul.mubr.f32.gmra.mxu0 %v101
    %v174 = vpop.f32.mrf.mxu0
    %v175 = vadd.f32 0.0, %v174
    %v176 = vpop.f32.mrf.mxu0
    %177 = vdwg.mxu0
    %v179 = vsel %vm96, %v170, 0
    %v182 = vsel %vm96, %v90, 0
    %184 = vmatprep.subr.mxu0 0.0
    %185 = vmatpush1.xpose.msra.mxu0 0.0
    %186 = vmatprep.subr.mxu0 0.0
    %187 = vmatpush1.xpose.msra.mxu0 0.0
    %188 = vmatprep.subr.mxu0 0.0
    %189 = vmatpush1.xpose.msra.mxu0 0.0
    %190 = vmatprep.subr.mxu0 0.0
    %191 = vmatpush1.xpose.msra.mxu0 0.0
    %192 = vmatprep.subr.mxu0 0.0
    %193 = vmatpush1.xpose.msra.mxu0 0.0
    %194 = vmatprep.subr.mxu0 0.0
    %195 = vmatpush1.xpose.msra.mxu0 0.0
    %196 = vmatprep.subr.mxu0 0.0
    %197 = vmatpush1.xpose.msra.mxu0 0.0
    %198 = vmatprep.subr.mxu0 0.0
    %199 = vmatpush1.xpose.msra.mxu0 0.0
    %200 = vmatprep.subr.mxu0 0.0
    %201 = vmatpush1.xpose.msra.mxu0 0.0
    %202 = vmatprep.subr.mxu0 0.0
    %203 = vmatpush1.xpose.msra.mxu0 0.0
    %204 = vmatprep.subr.mxu0 0.0
    %205 = vmatpush1.xpose.msra.mxu0 0.0
    %206 = vmatprep.subr.mxu0 0.0
    %207 = vmatpush1.xpose.msra.mxu0 0.0
    %208 = vmatprep.subr.mxu0 0.0
    %209 = vmatpush1.xpose.msra.mxu0 0.0
    %210 = vmatprep.subr.mxu0 0.0
    %211 = vmatpush1.xpose.msra.mxu0 0.0
    %212 = vmatprep.subr.mxu0 0.0
    %213 = vmatpush1.xpose.msra.mxu0 0.0
    %214 = vmatprep.subr.mxu0 0.0
    %215 = vmatpush1.xpose.msra.mxu0 %v182
    %216 = vmatprep.subr.mxu0 0.0
    %217 = vmatpush2.xpose.msra.mxu0 0.0
    %218 = vmatprep.subr.mxu0 0.0
    %219 = vmatpush2.xpose.msra.mxu0 0.0
    %220 = vmatprep.subr.mxu0 0.0
    %221 = vmatpush2.xpose.msra.mxu0 0.0
    %222 = vmatprep.subr.mxu0 0.0
    %223 = vmatpush2.xpose.msra.mxu0 0.0
    %224 = vmatprep.subr.mxu0 0.0
    %225 = vmatpush2.xpose.msra.mxu0 0.0
    %226 = vmatprep.subr.mxu0 0.0
    %227 = vmatpush2.xpose.msra.mxu0 0.0
    %228 = vmatprep.subr.mxu0 0.0
    %229 = vmatpush2.xpose.msra.mxu0 0.0
    %230 = vmatprep.subr.mxu0 0.0
    %231 = vmatpush2.xpose.msra.mxu0 0.0
    %232 = vmatprep.subr.mxu0 0.0
    %233 = vmatpush2.xpose.msra.mxu0 0.0
    %234 = vmatprep.subr.mxu0 0.0
    %235 = vmatpush2.xpose.msra.mxu0 0.0
    %236 = vmatprep.subr.mxu0 0.0
    %237 = vmatpush2.xpose.msra.mxu0 0.0
    %238 = vmatprep.subr.mxu0 0.0
    %239 = vmatpush2.xpose.msra.mxu0 0.0
    %240 = vmatprep.subr.mxu0 0.0
    %241 = vmatpush2.xpose.msra.mxu0 0.0
    %242 = vmatprep.subr.mxu0 0.0
    %243 = vmatpush2.xpose.msra.mxu0 0.0
    %244 = vmatprep.subr.mxu0 0.0
    %245 = vmatpush2.xpose.msra.mxu0 0.0
    %246 = vmatprep.subr.mxu0 0.0
    %247 = vmatpush2.xpose.msra.mxu0 0.0
    %248 = vmatprep.mubr.f32.mxu0 0.0
    %249 = vmatmul.mubr.f32.gmra.mxu0 %v179
    %v250 = vpop.f32.mrf.mxu0
    %v251 = vadd.f32 0.0, %v250
    %v252 = vpop.f32.mrf.mxu0
    %253 = vdwg.mxu0
    %v255 = vsel %vm96, %v175, 0
    %v258 = vsel %vm96, %v91, 0
    %260 = vmatprep.subr.mxu0 0.0
    %261 = vmatpush1.xpose.msra.mxu0 0.0
    %262 = vmatprep.subr.mxu0 0.0
    %263 = vmatpush1.xpose.msra.mxu0 0.0
    %264 = vmatprep.subr.mxu0 0.0
    %265 = vmatpush1.xpose.msra.mxu0 0.0
    %266 = vmatprep.subr.mxu0 0.0
    %267 = vmatpush1.xpose.msra.mxu0 0.0
    %268 = vmatprep.subr.mxu0 0.0
    %269 = vmatpush1.xpose.msra.mxu0 0.0
    %270 = vmatprep.subr.mxu0 0.0
    %271 = vmatpush1.xpose.msra.mxu0 0.0
    %272 = vmatprep.subr.mxu0 0.0
    %273 = vmatpush1.xpose.msra.mxu0 0.0
    %274 = vmatprep.subr.mxu0 0.0
    %275 = vmatpush1.xpose.msra.mxu0 0.0
    %276 = vmatprep.subr.mxu0 0.0
    %277 = vmatpush1.xpose.msra.mxu0 0.0
    %278 = vmatprep.subr.mxu0 0.0
    %279 = vmatpush1.xpose.msra.mxu0 0.0
    %280 = vmatprep.subr.mxu0 0.0
    %281 = vmatpush1.xpose.msra.mxu0 0.0
    %282 = vmatprep.subr.mxu0 0.0
    %283 = vmatpush1.xpose.msra.mxu0 0.0
    %284 = vmatprep.subr.mxu0 0.0
    %285 = vmatpush1.xpose.msra.mxu0 0.0
    %286 = vmatprep.subr.mxu0 0.0
    %287 = vmatpush1.xpose.msra.mxu0 0.0
    %288 = vmatprep.subr.mxu0 0.0
    %289 = vmatpush1.xpose.msra.mxu0 0.0
    %290 = vmatprep.subr.mxu0 0.0
    %291 = vmatpush1.xpose.msra.mxu0 %v258
    %292 = vmatprep.subr.mxu0 0.0
    %293 = vmatpush2.xpose.msra.mxu0 0.0
    %294 = vmatprep.subr.mxu0 0.0
    %295 = vmatpush2.xpose.msra.mxu0 0.0
    %296 = vmatprep.subr.mxu0 0.0
    %297 = vmatpush2.xpose.msra.mxu0 0.0
    %298 = vmatprep.subr.mxu0 0.0
    %299 = vmatpush2.xpose.msra.mxu0 0.0
    %300 = vmatprep.subr.mxu0 0.0
    %301 = vmatpush2.xpose.msra.mxu0 0.0
    %302 = vmatprep.subr.mxu0 0.0
    %303 = vmatpush2.xpose.msra.mxu0 0.0
    %304 = vmatprep.subr.mxu0 0.0
    %305 = vmatpush2.xpose.msra.mxu0 0.0
    %306 = vmatprep.subr.mxu0 0.0
    %307 = vmatpush2.xpose.msra.mxu0 0.0
    %308 = vmatprep.subr.mxu0 0.0
    %309 = vmatpush2.xpose.msra.mxu0 0.0
    %310 = vmatprep.subr.mxu0 0.0
    %311 = vmatpush2.xpose.msra.mxu0 0.0
    %312 = vmatprep.subr.mxu0 0.0
    %313 = vmatpush2.xpose.msra.mxu0 0.0
    %314 = vmatprep.subr.mxu0 0.0
    %315 = vmatpush2.xpose.msra.mxu0 0.0
    %316 = vmatprep.subr.mxu0 0.0
    %317 = vmatpush2.xpose.msra.mxu0 0.0
    %318 = vmatprep.subr.mxu0 0.0
    %319 = vmatpush2.xpose.msra.mxu0 0.0
    %320 = vmatprep.subr.mxu0 0.0
    %321 = vmatpush2.xpose.msra.mxu0 0.0
    %322 = vmatprep.subr.mxu0 0.0
    %323 = vmatpush2.xpose.msra.mxu0 0.0
    %324 = vmatprep.mubr.f32.mxu0 0.0
    %325 = vmatmul.mubr.f32.gmra.mxu0 %v255
    %v326 = vpop.f32.mrf.mxu0
    %v327 = vadd.f32 0.0, %v326
    %v328 = vpop.f32.mrf.mxu0
    %329 = vdwg.mxu0
    %vm330 = vcmask 48128
    %v331 = vsel %vm330, %v251, -inf
    %332 = vmax.xlane.f32.xlu0 %v331
    %v333 = vpop.xlane.xlu0 %332
    %v334 = vsel %vm330, %v327, -inf
    %335 = vmax.xlane.f32.xlu0 %v334
    %v336 = vpop.xlane.xlu0 %335
    %v337 = vsub.f32 %v251, %v333
    %v338 = vsub.f32 %v327, %v336
    %v339 = vmul.f32 %v337, 1.442695
    %v340 = vpow.pop %v339
    %v341 = vmul.f32 %v338, 1.442695
    %v342 = vpow.pop %v341
    %v343 = vsel %vm330, %v340, 0.0
    %344 = vadd.xlane.f32.xlu0 %v343
    %v345 = vpop.xlane.xlu0 %344
    %v346 = vsel %vm330, %v342, 0.0
    %347 = vadd.xlane.f32.xlu0 %v346
    %v348 = vpop.xlane.xlu0 %347
    %v349 = vrcp.pop %v345
    %v350 = vmul.f32 %v340, %v349
    %v351 = vrcp.pop %v348
    %v352 = vmul.f32 %v342, %v351
    %v354 = vsel %vm330, %v350, 0
    %vm356 = vcmask 1045504
    %v357 = vsel %vm356, %v90, 0
    %359 = vmatprep.subr.mxu0 0.0
    %360 = vmatpush1.msra.mxu0 0.0
    %361 = vmatprep.subr.mxu0 0.0
    %362 = vmatpush1.msra.mxu0 0.0
    %363 = vmatprep.subr.mxu0 0.0
    %364 = vmatpush1.msra.mxu0 0.0
    %365 = vmatprep.subr.mxu0 0.0
    %366 = vmatpush1.msra.mxu0 0.0
    %367 = vmatprep.subr.mxu0 0.0
    %368 = vmatpush1.msra.mxu0 0.0
    %369 = vmatprep.subr.mxu0 0.0
    %370 = vmatpush1.msra.mxu0 0.0
    %371 = vmatprep.subr.mxu0 0.0
    %372 = vmatpush1.msra.mxu0 0.0
    %373 = vmatprep.subr.mxu0 0.0
    %374 = vmatpush1.msra.mxu0 0.0
    %375 = vmatprep.subr.mxu0 0.0
    %376 = vmatpush1.msra.mxu0 0.0
    %377 = vmatprep.subr.mxu0 0.0
    %378 = vmatpush1.msra.mxu0 0.0
    %379 = vmatprep.subr.mxu0 0.0
    %380 = vmatpush1.msra.mxu0 0.0
    %381 = vmatprep.subr.mxu0 0.0
    %382 = vmatpush1.msra.mxu0 0.0
    %383 = vmatprep.subr.mxu0 0.0
    %384 = vmatpush1.msra.mxu0 0.0
    %385 = vmatprep.subr.mxu0 0.0
    %386 = vmatpush1.msra.mxu0 0.0
    %387 = vmatprep.subr.mxu0 0.0
    %388 = vmatpush1.msra.mxu0 0.0
    %389 = vmatprep.subr.mxu0 0.0
    %390 = vmatpush1.msra.mxu0 %v357
    %391 = vmatprep.subr.mxu0 0.0
    %392 = vmatpush2.msra.mxu0 0.0
    %393 = vmatprep.subr.mxu0 0.0
    %394 = vmatpush2.msra.mxu0 0.0
    %395 = vmatprep.subr.mxu0 0.0
    %396 = vmatpush2.msra.mxu0 0.0
    %397 = vmatprep.subr.mxu0 0.0
    %398 = vmatpush2.msra.mxu0 0.0
    %399 = vmatprep.subr.mxu0 0.0
    %400 = vmatpush2.msra.mxu0 0.0
    %401 = vmatprep.subr.mxu0 0.0
    %402 = vmatpush2.msra.mxu0 0.0
    %403 = vmatprep.subr.mxu0 0.0
    %404 = vmatpush2.msra.mxu0 0.0
    %405 = vmatprep.subr.mxu0 0.0
    %406 = vmatpush2.msra.mxu0 0.0
    %407 = vmatprep.subr.mxu0 0.0
    %408 = vmatpush2.msra.mxu0 0.0
    %409 = vmatprep.subr.mxu0 0.0
    %410 = vmatpush2.msra.mxu0 0.0
    %411 = vmatprep.subr.mxu0 0.0
    %412 = vmatpush2.msra.mxu0 0.0
    %413 = vmatprep.subr.mxu0 0.0
    %414 = vmatpush2.msra.mxu0 0.0
    %415 = vmatprep.subr.mxu0 0.0
    %416 = vmatpush2.msra.mxu0 0.0
    %417 = vmatprep.subr.mxu0 0.0
    %418 = vmatpush2.msra.mxu0 0.0
    %419 = vmatprep.subr.mxu0 0.0
    %420 = vmatpush2.msra.mxu0 0.0
    %421 = vmatprep.subr.mxu0 0.0
    %422 = vmatpush2.msra.mxu0 0.0
    %423 = vmatprep.mubr.f32.mxu0 0.0
    %424 = vmatmul.mubr.f32.gmra.mxu0 %v354
    %v425 = vpop.f32.mrf.mxu0
    %v426 = vadd.f32 0.0, %v425
    %v427 = vpop.f32.mrf.mxu0
    %428 = vdwg.mxu0
    %v430 = vsel %vm330, %v352, 0
    %v432 = vsel %vm356, %v91, 0
    %434 = vmatprep.subr.mxu0 0.0
    %435 = vmatpush1.msra.mxu0 0.0
    %436 = vmatprep.subr.mxu0 0.0
    %437 = vmatpush1.msra.mxu0 0.0
    %438 = vmatprep.subr.mxu0 0.0
    %439 = vmatpush1.msra.mxu0 0.0
    %440 = vmatprep.subr.mxu0 0.0
    %441 = vmatpush1.msra.mxu0 0.0
    %442 = vmatprep.subr.mxu0 0.0
    %443 = vmatpush1.msra.mxu0 0.0
    %444 = vmatprep.subr.mxu0 0.0
    %445 = vmatpush1.msra.mxu0 0.0
    %446 = vmatprep.subr.mxu0 0.0
    %447 = vmatpush1.msra.mxu0 0.0
    %448 = vmatprep.subr.mxu0 0.0
    %449 = vmatpush1.msra.mxu0 0.0
    %450 = vmatprep.subr.mxu0 0.0
    %451 = vmatpush1.msra.mxu0 0.0
    %452 = vmatprep.subr.mxu0 0.0
    %453 = vmatpush1.msra.mxu0 0.0
    %454 = vmatprep.subr.mxu0 0.0
    %455 = vmatpush1.msra.mxu0 0.0
    %456 = vmatprep.subr.mxu0 0.0
    %457 = vmatpush1.msra.mxu0 0.0
    %458 = vmatprep.subr.mxu0 0.0
    %459 = vmatpush1.msra.mxu0 0.0
    %460 = vmatprep.subr.mxu0 0.0
    %461 = vmatpush1.msra.mxu0 0.0
    %462 = vmatprep.subr.mxu0 0.0
    %463 = vmatpush1.msra.mxu0 0.0
    %464 = vmatprep.subr.mxu0 0.0
    %465 = vmatpush1.msra.mxu0 %v432
    %466 = vmatprep.subr.mxu0 0.0
    %467 = vmatpush2.msra.mxu0 0.0
    %468 = vmatprep.subr.mxu0 0.0
    %469 = vmatpush2.msra.mxu0 0.0
    %470 = vmatprep.subr.mxu0 0.0
    %471 = vmatpush2.msra.mxu0 0.0
    %472 = vmatprep.subr.mxu0 0.0
    %473 = vmatpush2.msra.mxu0 0.0
    %474 = vmatprep.subr.mxu0 0.0
    %475 = vmatpush2.msra.mxu0 0.0
    %476 = vmatprep.subr.mxu0 0.0
    %477 = vmatpush2.msra.mxu0 0.0
    %478 = vmatprep.subr.mxu0 0.0
    %479 = vmatpush2.msra.mxu0 0.0
    %480 = vmatprep.subr.mxu0 0.0
    %481 = vmatpush2.msra.mxu0 0.0
    %482 = vmatprep.subr.mxu0 0.0
    %483 = vmatpush2.msra.mxu0 0.0
    %484 = vmatprep.subr.mxu0 0.0
    %485 = vmatpush2.msra.mxu0 0.0
    %486 = vmatprep.subr.mxu0 0.0
    %487 = vmatpush2.msra.mxu0 0.0
    %488 = vmatprep.subr.mxu0 0.0
    %489 = vmatpush2.msra.mxu0 0.0
    %490 = vmatprep.subr.mxu0 0.0
    %491 = vmatpush2.msra.mxu0 0.0
    %492 = vmatprep.subr.mxu0 0.0
    %493 = vmatpush2.msra.mxu0 0.0
    %494 = vmatprep.subr.mxu0 0.0
    %495 = vmatpush2.msra.mxu0 0.0
    %496 = vmatprep.subr.mxu0 0.0
    %497 = vmatpush2.msra.mxu0 0.0
    %498 = vmatprep.mubr.f32.mxu0 0.0
    %499 = vmatmul.mubr.f32.gmra.mxu0 %v430
    %v500 = vpop.f32.mrf.mxu0
    %v501 = vadd.f32 0.0, %v500
    %v502 = vpop.f32.mrf.mxu0
    %503 = vdwg.mxu0
    %v504 = vadd.f32 %v88, %v426
    %v505 = vadd.f32 %v89, %v501
    %v506 = vcombine.high %v504, 0.0
    %v508 = vunpack.c.l.s4 1983009808
    %v509 = vunpack.c.0.s8 %v508
    %v510 = vlaneseq
    %v511 = vshrl.u32 %v510, 7
    %v512 = vsub.s32 %v509, %v511
    %v513 = vrot.slane %v504, %v512
    %v515 = vunpack.c.l.s4 1983009808
    %v516 = vunpack.c.0.s8 %v515
    %v517 = vlaneseq
    %v518 = vshrl.u32 %v517, 7
    %v519 = vsub.s32 %v516, %v518
    %v520 = vrot.slane %v506, %v519
    %v521 = vcombine.high %v505, 0.0
    %v523 = vunpack.c.l.s4 1983009808
    %v524 = vunpack.c.0.s8 %v523
    %v525 = vlaneseq
    %v526 = vshrl.u32 %v525, 7
    %v527 = vsub.s32 %v524, %v526
    %v528 = vrot.slane %v505, %v527
    %v530 = vunpack.c.l.s4 1983009808
    %v531 = vunpack.c.0.s8 %v530
    %v532 = vlaneseq
    %v533 = vshrl.u32 %v532, 7
    %v534 = vsub.s32 %v531, %v533
    %v535 = vrot.slane %v521, %v534
    %v536 = vcombine.low %v513, %v528
    %v537 = vcombine.high %v513, %v528
    %v539 = vunpack.c.l.s4 1934713408
    %v540 = vunpack.c.0.s8 %v539
    %v541 = vlaneseq
    %v542 = vshrl.u32 %v541, 7
    %v543 = vsub.s32 %v540, %v542
    %v544 = vrot.slane %v536, %v543
    %v546 = vunpack.c.l.s4 1934713408
    %v547 = vunpack.c.0.s8 %v546
    %v548 = vlaneseq
    %v549 = vshrl.u32 %v548, 7
    %v550 = vsub.s32 %v547, %v549
    %v551 = vrot.slane %v537, %v550
    %v552 = vcombine.low %v520, %v535
    %v553 = vcombine.high %v520, %v535
    %v555 = vunpack.c.l.s4 1934713408
    %v556 = vunpack.c.0.s8 %v555
    %v557 = vlaneseq
    %v558 = vshrl.u32 %v557, 7
    %v559 = vsub.s32 %v556, %v558
    %v560 = vrot.slane %v552, %v559
    %v562 = vunpack.c.l.s4 1934713408
    %v563 = vunpack.c.0.s8 %v562
    %v564 = vlaneseq
    %v565 = vshrl.u32 %v564, 7
    %v566 = vsub.s32 %v563, %v565
    %v567 = vrot.slane %v553, %v566
    %v568 = vcombine.high %v544, 0.0
    %v569 = vcombine.high %v551, 0.0
    %v570 = vcombine.high %v560, 0.0
    %v571 = vcombine.high %v567, 0.0
    %v572 = vld [vmem:[#allocation8] sm:$0xff]
    %v573 = vld [vmem:[#allocation8 + $0x8] sm:$0xff]
    %v574 = vld [vmem:[#allocation8 + $0x10] sm:$0xff]
    %v575 = vld [vmem:[#allocation8 + $0x18] sm:$0xff]
    %v576 = vld [vmem:[#allocation8 + $0x20] sm:$0xff]
    %v577 = vld [vmem:[#allocation8 + $0x28] sm:$0xff]
    %v578 = vld [vmem:[#allocation8 + $0x30] sm:$0xff]
    %v579 = vld [vmem:[#allocation8 + $0x38] sm:$0xff]
    %v580 = vld [vmem:[%s5] sm:$0x3]
    %v582 = vlaneseq
    %v583 = vshrl.u32 %v582, 7
    %v584 = vsub.s32 0, %v583
    %v585 = vrot.slane %v580, %v584
    %v586 = vlaneseq
    %v587 = vshrl.u32 %v586, 7
    %v588 = vsub.s32 1, %v587
    %v589 = vrot.slane %v580, %v588
    %v600 = vcombine.low %v544, %v568
    %v601 = vcombine.low %v551, %v569
    %v603 = vunpack.c.l.s4 1983009808
    %v604 = vunpack.c.0.s8 %v603
    %v605 = vlaneseq
    %v606 = vshrl.u32 %v605, 7
    %v607 = vsub.s32 %v604, %v606
    %v608 = vrot.slane %v600, %v607
    %v610 = vunpack.c.l.s4 1983009808
    %v611 = vunpack.c.0.s8 %v610
    %v612 = vlaneseq
    %v613 = vshrl.u32 %v612, 7
    %v614 = vsub.s32 %v611, %v613
    %v615 = vrot.slane %v601, %v614
    %v616 = vcombine.low %v608, %v615
    %v617 = vcombine.low %v560, %v570
    %v618 = vcombine.low %v567, %v571
    %v620 = vunpack.c.l.s4 1983009808
    %v621 = vunpack.c.0.s8 %v620
    %v622 = vlaneseq
    %v623 = vshrl.u32 %v622, 7
    %v624 = vsub.s32 %v621, %v623
    %v625 = vrot.slane %v617, %v624
    %v627 = vunpack.c.l.s4 1983009808
    %v628 = vunpack.c.0.s8 %v627
    %v629 = vlaneseq
    %v630 = vshrl.u32 %v629, 7
    %v631 = vsub.s32 %v628, %v630
    %v632 = vrot.slane %v618, %v631
    %v633 = vcombine.low %v625, %v632
    %v634 = vsel %vm96, %v616, 0
    %v636 = vsel %vm96, %v633, 0
    %638 = vmatprep.subr.mxu0 0.0
    %639 = vmatpush1.msra.mxu0 0.0
    %640 = vmatprep.subr.mxu0 0.0
    %641 = vmatpush1.msra.mxu0 0.0
    %642 = vmatprep.subr.mxu0 0.0
    %643 = vmatpush1.msra.mxu0 0.0
    %644 = vmatprep.subr.mxu0 0.0
    %645 = vmatpush1.msra.mxu0 0.0
    %646 = vmatprep.subr.mxu0 0.0
    %647 = vmatpush1.msra.mxu0 0.0
    %648 = vmatprep.subr.mxu0 0.0
    %649 = vmatpush1.msra.mxu0 0.0
    %650 = vmatprep.subr.mxu0 0.0
    %651 = vmatpush1.msra.mxu0 0.0
    %652 = vmatprep.subr.mxu0 0.0
    %653 = vmatpush1.msra.mxu0 0.0
    %654 = vmatprep.subr.mxu0 0.0
    %655 = vmatpush1.msra.mxu0 0.0
    %656 = vmatprep.subr.mxu0 0.0
    %657 = vmatpush1.msra.mxu0 0.0
    %658 = vmatprep.subr.mxu0 0.0
    %659 = vmatpush1.msra.mxu0 0.0
    %660 = vmatprep.subr.mxu0 0.0
    %661 = vmatpush1.msra.mxu0 0.0
    %662 = vmatprep.subr.mxu0 %v579
    %663 = vmatpush1.msra.mxu0 %v578
    %664 = vmatprep.subr.mxu0 %v577
    %665 = vmatpush1.msra.mxu0 %v576
    %666 = vmatprep.subr.mxu0 %v575
    %667 = vmatpush1.msra.mxu0 %v574
    %668 = vmatprep.subr.mxu0 %v573
    %669 = vmatpush1.msra.mxu0 %v572
    %670 = vmatprep.subr.mxu0 0.0
    %671 = vmatpush2.msra.mxu0 0.0
    %672 = vmatprep.subr.mxu0 0.0
    %673 = vmatpush2.msra.mxu0 0.0
    %674 = vmatprep.subr.mxu0 0.0
    %675 = vmatpush2.msra.mxu0 0.0
    %676 = vmatprep.subr.mxu0 0.0
    %677 = vmatpush2.msra.mxu0 0.0
    %678 = vmatprep.subr.mxu0 0.0
    %679 = vmatpush2.msra.mxu0 0.0
    %680 = vmatprep.subr.mxu0 0.0
    %681 = vmatpush2.msra.mxu0 0.0
    %682 = vmatprep.subr.mxu0 0.0
    %683 = vmatpush2.msra.mxu0 0.0
    %684 = vmatprep.subr.mxu0 0.0
    %685 = vmatpush2.msra.mxu0 0.0
    %686 = vmatprep.subr.mxu0 0.0
    %687 = vmatpush2.msra.mxu0 0.0
    %688 = vmatprep.subr.mxu0 0.0
    %689 = vmatpush2.msra.mxu0 0.0
    %690 = vmatprep.subr.mxu0 0.0
    %691 = vmatpush2.msra.mxu0 0.0
    %692 = vmatprep.subr.mxu0 0.0
    %693 = vmatpush2.msra.mxu0 0.0
    %694 = vmatprep.subr.mxu0 0.0
    %695 = vmatpush2.msra.mxu0 0.0
    %696 = vmatprep.subr.mxu0 0.0
    %697 = vmatpush2.msra.mxu0 0.0
    %698 = vmatprep.subr.mxu0 0.0
    %699 = vmatpush2.msra.mxu0 0.0
    %700 = vmatprep.subr.mxu0 0.0
    %701 = vmatpush2.msra.mxu0 0.0
    %702 = vmatprep.mubr.f32.mxu0 0.0
    %703 = vmatmul.mubr.f32.gmra.mxu0 %v634
    %v704 = vpop.f32.mrf.mxu0
    %v705 = vadd.f32 %v585, %v704
    %v706 = vpop.f32.mrf.mxu0
    %v707 = vadd.f32 %v589, %v706
    %708 = vmatprep.mubr.f32.mxu0 0.0
    %709 = vmatmul.mubr.f32.gmra.mxu0 %v636
    %v710 = vpop.f32.mrf.mxu0
    %v711 = vadd.f32 %v585, %v710
    %v712 = vpop.f32.mrf.mxu0
    %v713 = vadd.f32 %v589, %v712
    %714 = vdwg.mxu0
    %vm715 = vcmask 785408
    %716 = vst.msk [vmem:[#allocation2] sm:$0xff] %vm715, %v705
    %717 = vst.msk [vmem:[#allocation2 + $0x8] sm:$0xff] %vm715, %v711
    %722 = vrot.lane.b32.xlu0 %v705, 32
    %v723 = vpop.permute.xlu0 %722
    %724 = vrot.lane.b32.xlu0 %v707, 32
    %v725 = vpop.permute.xlu0 %724
    %726 = vrot.lane.b32.xlu0 %v711, 32
    %v727 = vpop.permute.xlu0 %726
    %728 = vrot.lane.b32.xlu0 %v713, 32
    %v729 = vpop.permute.xlu0 %728
    %v730 = vsel %vm96, %v723, %v725
    %v731 = vsel %vm96, %v727, %v729
    %734 = vst.msk [vmem:[#allocation3] sm:$0xff] %vm715, %v730
    %735 = vst.msk [vmem:[#allocation3 + $0x8] sm:$0xff] %vm715, %v731
    %v736 = vld [vmem:[%s0] sm:$0x3]
    %v737 = vld [vmem:[#allocation10] sm:$0xff]
    %v738 = vld [vmem:[#allocation10 + $0x8] sm:$0xff]
    %v739 = vld [vmem:[#allocation10 + $0x10] sm:$0xff]
    %v740 = vld [vmem:[#allocation10 + $0x18] sm:$0xff]
    %v741 = vld [vmem:[#allocation11] sm:$0xff]
    %v742 = vld [vmem:[#allocation11 + $0x8] sm:$0xff]
    %v743 = vld [vmem:[#allocation11 + $0x10] sm:$0xff]
    %v744 = vld [vmem:[#allocation11 + $0x18] sm:$0xff]
    %v745 = vld [vmem:[%s8] sm:$0x1]
    %v746 = vld [vmem:[%s8 + $0x1] sm:$0x1]
    %v747 = vld [vmem:[#allocation2] sm:$0x3]
    %v749 = vsel %vm96, 0.0, 0
    %751 = vmatprep.subr.mxu0 0.0
    %752 = vmatpush1.msra.mxu0 0.0
    %753 = vmatprep.subr.mxu0 0.0
    %754 = vmatpush1.msra.mxu0 0.0
    %755 = vmatprep.subr.mxu0 0.0
    %756 = vmatpush1.msra.mxu0 0.0
    %757 = vmatprep.subr.mxu0 0.0
    %758 = vmatpush1.msra.mxu0 0.0
    %759 = vmatprep.subr.mxu0 0.0
    %760 = vmatpush1.msra.mxu0 0.0
    %761 = vmatprep.subr.mxu0 0.0
    %762 = vmatpush1.msra.mxu0 0.0
    %763 = vmatprep.subr.mxu0 0.0
    %764 = vmatpush1.msra.mxu0 0.0
    %765 = vmatprep.subr.mxu0 0.0
    %766 = vmatpush1.msra.mxu0 0.0
    %767 = vmatprep.subr.mxu0 0.0
    %768 = vmatpush1.msra.mxu0 0.0
    %769 = vmatprep.subr.mxu0 0.0
    %770 = vmatpush1.msra.mxu0 0.0
    %771 = vmatprep.subr.mxu0 0.0
    %772 = vmatpush1.msra.mxu0 0.0
    %773 = vmatprep.subr.mxu0 0.0
    %774 = vmatpush1.msra.mxu0 0.0
    %775 = vmatprep.subr.mxu0 0.0
    %776 = vmatpush1.msra.mxu0 %v740
    %777 = vmatprep.subr.mxu0 0.0
    %778 = vmatpush1.msra.mxu0 %v739
    %779 = vmatprep.subr.mxu0 0.0
    %780 = vmatpush1.msra.mxu0 %v738
    %781 = vmatprep.subr.mxu0 0.0
    %782 = vmatpush1.msra.mxu0 %v737
    %783 = vmatprep.subr.mxu0 0.0
    %784 = vmatpush2.msra.mxu0 0.0
    %785 = vmatprep.subr.mxu0 0.0
    %786 = vmatpush2.msra.mxu0 0.0
    %787 = vmatprep.subr.mxu0 0.0
    %788 = vmatpush2.msra.mxu0 0.0
    %789 = vmatprep.subr.mxu0 0.0
    %790 = vmatpush2.msra.mxu0 0.0
    %791 = vmatprep.subr.mxu0 0.0
    %792 = vmatpush2.msra.mxu0 0.0
    %793 = vmatprep.subr.mxu0 0.0
    %794 = vmatpush2.msra.mxu0 0.0
    %795 = vmatprep.subr.mxu0 0.0
    %796 = vmatpush2.msra.mxu0 0.0
    %797 = vmatprep.subr.mxu0 0.0
    %798 = vmatpush2.msra.mxu0 0.0
    %799 = vmatprep.subr.mxu0 0.0
    %800 = vmatpush2.msra.mxu0 0.0
    %801 = vmatprep.subr.mxu0 0.0
    %802 = vmatpush2.msra.mxu0 0.0
    %803 = vmatprep.subr.mxu0 0.0
    %804 = vmatpush2.msra.mxu0 0.0
    %805 = vmatprep.subr.mxu0 0.0
    %806 = vmatpush2.msra.mxu0 0.0
    %807 = vmatprep.subr.mxu0 0.0
    %808 = vmatpush2.msra.mxu0 0.0
    %809 = vmatprep.subr.mxu0 0.0
    %810 = vmatpush2.msra.mxu0 0.0
    %811 = vmatprep.subr.mxu0 0.0
    %812 = vmatpush2.msra.mxu0 0.0
    %813 = vmatprep.subr.mxu0 0.0
    %814 = vmatpush2.msra.mxu0 0.0
    %815 = vmatprep.mubr.f32.mxu0 0.0
    %816 = vmatmul.mubr.f32.gmra.mxu0 %v749
    %v817 = vpop.f32.mrf.mxu0
    %v818 = vadd.f32 0.0, %v817
    %v819 = vpop.f32.mrf.mxu0
    %820 = vdwg.mxu0
    %v821 = vadd.f32 %v747, %v818
    %v822 = vxor.u32 %v821, 2147483648
    %v823 = vmul.f32 %v822, 1.442695
    %v824 = vpow.pop %v823
    %v825 = vadd.f32 %v824, 1.0
    %v826 = vrcp.pop %v825
    %v827 = vmul.f32 1.0, %v826
    %v828 = vlaneseq
    %v829 = vshrl.u32 %v828, 7
    %v830 = vsub.s32 0, %v829
    %v831 = vrot.slane %v745, %v830
    %833 = vrot.lane.b32.xlu0 %v831, 64
    %v834 = vpop.permute.xlu0 %833
    %v836 = vadd.f32 %v818, %v834
    %838 = vrot.lane.b32.xlu0 %v836, 64
    %v839 = vpop.permute.xlu0 %838
    %v841 = vmul.f32 %v827, %v839
    %843 = vrot.lane.b32.xlu0 %v841, 64
    %v844 = vpop.permute.xlu0 %843
    %v846 = vadd.f32 %v747, %v844
    %v847 = vtanh.pop %v846
    %v848 = vsub.f32 1.0, %v827
    %850 = vrot.lane.b32.xlu0 %v847, 96
    %v851 = vpop.permute.xlu0 %850
    %v853 = vmul.f32 %v848, %v851
    %v854 = vmul.f32 %v827, 0.0
    %v855 = vadd.f32 %v853, %v854
    %vm856 = vcmp.gt.s32.totalorder %v736, 0
    %v857 = vsel %vm856, 1, 0
    %858 = vset.pattern.permute.xlu0 0
    %859 = vperm.xlu0 %858, %v857
    %v860 = vpop.permute.xlu0 %859
    %vm861 = vcmp.eq.s32.totalorder %v860, 1
    %v862 = vsel %vm861, %v855, 0.0
    %864 = vrot.lane.b32.xlu0 %v862, 96
    %v865 = vpop.permute.xlu0 %864
    %vm867 = vcmask 254976
    %868 = vst.msk [vmem:[#allocation4] sm:$0x3] %vm867, %v865
    %v869 = vld [vmem:[#allocation2 + $0x2] sm:$0x3]
    %v870 = vsel %vm96, %v865, 0
    %872 = vmatprep.subr.mxu0 0.0
    %873 = vmatpush1.msra.mxu0 0.0
    %874 = vmatprep.subr.mxu0 0.0
    %875 = vmatpush1.msra.mxu0 0.0
    %876 = vmatprep.subr.mxu0 0.0
    %877 = vmatpush1.msra.mxu0 0.0
    %878 = vmatprep.subr.mxu0 0.0
    %879 = vmatpush1.msra.mxu0 0.0
    %880 = vmatprep.subr.mxu0 0.0
    %881 = vmatpush1.msra.mxu0 0.0
    %882 = vmatprep.subr.mxu0 0.0
    %883 = vmatpush1.msra.mxu0 0.0
    %884 = vmatprep.subr.mxu0 0.0
    %885 = vmatpush1.msra.mxu0 0.0
    %886 = vmatprep.subr.mxu0 0.0
    %887 = vmatpush1.msra.mxu0 0.0
    %888 = vmatprep.subr.mxu0 0.0
    %889 = vmatpush1.msra.mxu0 0.0
    %890 = vmatprep.subr.mxu0 0.0
    %891 = vmatpush1.msra.mxu0 0.0
    %892 = vmatprep.subr.mxu0 0.0
    %893 = vmatpush1.msra.mxu0 0.0
    %894 = vmatprep.subr.mxu0 0.0
    %895 = vmatpush1.msra.mxu0 0.0
    %896 = vmatprep.subr.mxu0 0.0
    %897 = vmatpush1.msra.mxu0 %v740
    %898 = vmatprep.subr.mxu0 0.0
    %899 = vmatpush1.msra.mxu0 %v739
    %900 = vmatprep.subr.mxu0 0.0
    %901 = vmatpush1.msra.mxu0 %v738
    %902 = vmatprep.subr.mxu0 0.0
    %903 = vmatpush1.msra.mxu0 %v737
    %904 = vmatprep.subr.mxu0 0.0
    %905 = vmatpush2.msra.mxu0 0.0
    %906 = vmatprep.subr.mxu0 0.0
    %907 = vmatpush2.msra.mxu0 0.0
    %908 = vmatprep.subr.mxu0 0.0
    %909 = vmatpush2.msra.mxu0 0.0
    %910 = vmatprep.subr.mxu0 0.0
    %911 = vmatpush2.msra.mxu0 0.0
    %912 = vmatprep.subr.mxu0 0.0
    %913 = vmatpush2.msra.mxu0 0.0
    %914 = vmatprep.subr.mxu0 0.0
    %915 = vmatpush2.msra.mxu0 0.0
    %916 = vmatprep.subr.mxu0 0.0
    %917 = vmatpush2.msra.mxu0 0.0
    %918 = vmatprep.subr.mxu0 0.0
    %919 = vmatpush2.msra.mxu0 0.0
    %920 = vmatprep.subr.mxu0 0.0
    %921 = vmatpush2.msra.mxu0 0.0
    %922 = vmatprep.subr.mxu0 0.0
    %923 = vmatpush2.msra.mxu0 0.0
    %924 = vmatprep.subr.mxu0 0.0
    %925 = vmatpush2.msra.mxu0 0.0
    %926 = vmatprep.subr.mxu0 0.0
    %927 = vmatpush2.msra.mxu0 0.0
    %928 = vmatprep.subr.mxu0 0.0
    %929 = vmatpush2.msra.mxu0 0.0
    %930 = vmatprep.subr.mxu0 0.0
    %931 = vmatpush2.msra.mxu0 0.0
    %932 = vmatprep.subr.mxu0 0.0
    %933 = vmatpush2.msra.mxu0 0.0
    %934 = vmatprep.subr.mxu0 0.0
    %935 = vmatpush2.msra.mxu0 0.0
    %936 = vmatprep.mubr.f32.mxu0 0.0
    %937 = vmatmul.mubr.f32.gmra.mxu0 %v870
    %v938 = vpop.f32.mrf.mxu0
    %v939 = vadd.f32 0.0, %v938
    %v940 = vpop.f32.mrf.mxu0
    %941 = vdwg.mxu0
    %v942 = vadd.f32 %v869, %v939
    %v943 = vxor.u32 %v942, 2147483648
    %v944 = vmul.f32 %v943, 1.442695
    %v945 = vpow.pop %v944
    %v946 = vadd.f32 %v945, 1.0
    %v947 = vrcp.pop %v946
    %v948 = vmul.f32 1.0, %v947
    %v949 = vadd.f32 %v939, %v834
    %951 = vrot.lane.b32.xlu0 %v949, 64
    %v952 = vpop.permute.xlu0 %951
    %v954 = vmul.f32 %v948, %v952
    %956 = vrot.lane.b32.xlu0 %v954, 64
    %v957 = vpop.permute.xlu0 %956
    %v959 = vadd.f32 %v869, %v957
    %v960 = vtanh.pop %v959
    %v961 = vsub.f32 1.0, %v948
    %963 = vrot.lane.b32.xlu0 %v960, 96
    %v964 = vpop.permute.xlu0 %963
    %v966 = vmul.f32 %v961, %v964
    %v967 = vmul.f32 %v948, %v862
    %v968 = vadd.f32 %v966, %v967
    %vm969 = vcmp.gt.s32.totalorder %v736, 1
    %v970 = vsel %vm969, 1, 0
    %971 = vset.pattern.permute.xlu0 0
    %972 = vperm.xlu0 %971, %v970
    %v973 = vpop.permute.xlu0 %972
    %vm974 = vcmp.eq.s32.totalorder %v973, 1
    %v975 = vsel %vm974, %v968, 0.0
    %977 = vrot.lane.b32.xlu0 %v975, 96
    %v978 = vpop.permute.xlu0 %977
    %s980 = scalar_lea.vmem [#allocation4], 2
    %981 = vst.msk [vmem:[%s980] sm:$0x3] %vm867, %v978
    %v982 = vsel %vm974, %v968, %v862
    %v983 = vld [vmem:[#allocation2 + $0x4] sm:$0x3]
    %985 = vrot.lane.b32.xlu0 %v982, 96
    %v986 = vpop.permute.xlu0 %985
    %v987 = vsel %vm96, %v986, 0
    %989 = vmatprep.subr.mxu0 0.0
    %990 = vmatpush1.msra.mxu0 0.0
    %991 = vmatprep.subr.mxu0 0.0
    %992 = vmatpush1.msra.mxu0 0.0
    %993 = vmatprep.subr.mxu0 0.0
    %994 = vmatpush1.msra.mxu0 0.0
    %995 = vmatprep.subr.mxu0 0.0
    %996 = vmatpush1.msra.mxu0 0.0
    %997 = vmatprep.subr.mxu0 0.0
    %998 = vmatpush1.msra.mxu0 0.0
    %999 = vmatprep.subr.mxu0 0.0
    %1000 = vmatpush1.msra.mxu0 0.0
    %1001 = vmatprep.subr.mxu0 0.0
    %1002 = vmatpush1.msra.mxu0 0.0
    %1003 = vmatprep.subr.mxu0 0.0
    %1004 = vmatpush1.msra.mxu0 0.0
    %1005 = vmatprep.subr.mxu0 0.0
    %1006 = vmatpush1.msra.mxu0 0.0
    %1007 = vmatprep.subr.mxu0 0.0
    %1008 = vmatpush1.msra.mxu0 0.0
    %1009 = vmatprep.subr.mxu0 0.0
    %1010 = vmatpush1.msra.mxu0 0.0
    %1011 = vmatprep.subr.mxu0 0.0
    %1012 = vmatpush1.msra.mxu0 0.0
    %1013 = vmatprep.subr.mxu0 0.0
    %1014 = vmatpush1.msra.mxu0 %v740
    %1015 = vmatprep.subr.mxu0 0.0
    %1016 = vmatpush1.msra.mxu0 %v739
    %1017 = vmatprep.subr.mxu0 0.0
    %1018 = vmatpush1.msra.mxu0 %v738
    %1019 = vmatprep.subr.mxu0 0.0
    %1020 = vmatpush1.msra.mxu0 %v737
    %1021 = vmatprep.subr.mxu0 0.0
    %1022 = vmatpush2.msra.mxu0 0.0
    %1023 = vmatprep.subr.mxu0 0.0
    %1024 = vmatpush2.msra.mxu0 0.0
    %1025 = vmatprep.subr.mxu0 0.0
    %1026 = vmatpush2.msra.mxu0 0.0
    %1027 = vmatprep.subr.mxu0 0.0
    %1028 = vmatpush2.msra.mxu0 0.0
    %1029 = vmatprep.subr.mxu0 0.0
    %1030 = vmatpush2.msra.mxu0 0.0
    %1031 = vmatprep.subr.mxu0 0.0
    %1032 = vmatpush2.msra.mxu0 0.0
    %1033 = vmatprep.subr.mxu0 0.0
    %1034 = vmatpush2.msra.mxu0 0.0
    %1035 = vmatprep.subr.mxu0 0.0
    %1036 = vmatpush2.msra.mxu0 0.0
    %1037 = vmatprep.subr.mxu0 0.0
    %1038 = vmatpush2.msra.mxu0 0.0
    %1039 = vmatprep.subr.mxu0 0.0
    %1040 = vmatpush2.msra.mxu0 0.0
    %1041 = vmatprep.subr.mxu0 0.0
    %1042 = vmatpush2.msra.mxu0 0.0
    %1043 = vmatprep.subr.mxu0 0.0
    %1044 = vmatpush2.msra.mxu0 0.0
    %1045 = vmatprep.subr.mxu0 0.0
    %1046 = vmatpush2.msra.mxu0 0.0
    %1047 = vmatprep.subr.mxu0 0.0
    %1048 = vmatpush2.msra.mxu0 0.0
    %1049 = vmatprep.subr.mxu0 0.0
    %1050 = vmatpush2.msra.mxu0 0.0
    %1051 = vmatprep.subr.mxu0 0.0
    %1052 = vmatpush2.msra.mxu0 0.0
    %1053 = vmatprep.mubr.f32.mxu0 0.0
    %1054 = vmatmul.mubr.f32.gmra.mxu0 %v987
    %v1055 = vpop.f32.mrf.mxu0
    %v1056 = vadd.f32 0.0, %v1055
    %v1057 = vpop.f32.mrf.mxu0
    %1058 = vdwg.mxu0
    %v1059 = vadd.f32 %v983, %v1056
    %v1060 = vxor.u32 %v1059, 2147483648
    %v1061 = vmul.f32 %v1060, 1.442695
    %v1062 = vpow.pop %v1061
    %v1063 = vadd.f32 %v1062, 1.0
    %v1064 = vrcp.pop %v1063
    %v1065 = vmul.f32 1.0, %v1064
    %v1066 = vadd.f32 %v1056, %v834
    %1068 = vrot.lane.b32.xlu0 %v1066, 64
    %v1069 = vpop.permute.xlu0 %1068
    %v1071 = vmul.f32 %v1065, %v1069
    %1073 = vrot.lane.b32.xlu0 %v1071, 64
    %v1074 = vpop.permute.xlu0 %1073
    %v1076 = vadd.f32 %v983, %v1074
    %v1077 = vtanh.pop %v1076
    %v1078 = vsub.f32 1.0, %v1065
    %1080 = vrot.lane.b32.xlu0 %v1077, 96
    %v1081 = vpop.permute.xlu0 %1080
    %v1083 = vmul.f32 %v1078, %v1081
    %v1084 = vmul.f32 %v1065, %v982
    %v1085 = vadd.f32 %v1083, %v1084
    %vm1086 = vcmp.gt.s32.totalorder %v736, 2
    %v1087 = vsel %vm1086, 1, 0
    %1088 = vset.pattern.permute.xlu0 0
    %1089 = vperm.xlu0 %1088, %v1087
    %v1090 = vpop.permute.xlu0 %1089
    %vm1091 = vcmp.eq.s32.totalorder %v1090, 1
    %v1092 = vsel %vm1091, %v1085, 0.0
    %1094 = vrot.lane.b32.xlu0 %v1092, 96
    %v1095 = vpop.permute.xlu0 %1094
    %s1097 = scalar_lea.vmem [#allocation4], 4
    %1098 = vst.msk [vmem:[%s1097] sm:$0x3] %vm867, %v1095
    %v1099 = vsel %vm1091, %v1085, %v982
    %v1100 = vld [vmem:[#allocation2 + $0x6] sm:$0x3]
    %1102 = vrot.lane.b32.xlu0 %v1099, 96
    %v1103 = vpop.permute.xlu0 %1102
    %v1104 = vsel %vm96, %v1103, 0
    %1106 = vmatprep.subr.mxu0 0.0
    %1107 = vmatpush1.msra.mxu0 0.0
    %1108 = vmatprep.subr.mxu0 0.0
    %1109 = vmatpush1.msra.mxu0 0.0
    %1110 = vmatprep.subr.mxu0 0.0
    %1111 = vmatpush1.msra.mxu0 0.0
    %1112 = vmatprep.subr.mxu0 0.0
    %1113 = vmatpush1.msra.mxu0 0.0
    %1114 = vmatprep.subr.mxu0 0.0
    %1115 = vmatpush1.msra.mxu0 0.0
    %1116 = vmatprep.subr.mxu0 0.0
    %1117 = vmatpush1.msra.mxu0 0.0
    %1118 = vmatprep.subr.mxu0 0.0
    %1119 = vmatpush1.msra.mxu0 0.0
    %1120 = vmatprep.subr.mxu0 0.0
    %1121 = vmatpush1.msra.mxu0 0.0
    %1122 = vmatprep.subr.mxu0 0.0
    %1123 = vmatpush1.msra.mxu0 0.0
    %1124 = vmatprep.subr.mxu0 0.0
    %1125 = vmatpush1.msra.mxu0 0.0
    %1126 = vmatprep.subr.mxu0 0.0
    %1127 = vmatpush1.msra.mxu0 0.0
    %1128 = vmatprep.subr.mxu0 0.0
    %1129 = vmatpush1.msra.mxu0 0.0
    %1130 = vmatprep.subr.mxu0 0.0
    %1131 = vmatpush1.msra.mxu0 %v740
    %1132 = vmatprep.subr.mxu0 0.0
    %1133 = vmatpush1.msra.mxu0 %v739
    %1134 = vmatprep.subr.mxu0 0.0
    %1135 = vmatpush1.msra.mxu0 %v738
    %1136 = vmatprep.subr.mxu0 0.0
    %1137 = vmatpush1.msra.mxu0 %v737
    %1138 = vmatprep.subr.mxu0 0.0
    %1139 = vmatpush2.msra.mxu0 0.0
    %1140 = vmatprep.subr.mxu0 0.0
    %1141 = vmatpush2.msra.mxu0 0.0
    %1142 = vmatprep.subr.mxu0 0.0
    %1143 = vmatpush2.msra.mxu0 0.0
    %1144 = vmatprep.subr.mxu0 0.0
    %1145 = vmatpush2.msra.mxu0 0.0
    %1146 = vmatprep.subr.mxu0 0.0
    %1147 = vmatpush2.msra.mxu0 0.0
    %1148 = vmatprep.subr.mxu0 0.0
    %1149 = vmatpush2.msra.mxu0 0.0
    %1150 = vmatprep.subr.mxu0 0.0
    %1151 = vmatpush2.msra.mxu0 0.0
    %1152 = vmatprep.subr.mxu0 0.0
    %1153 = vmatpush2.msra.mxu0 0.0
    %1154 = vmatprep.subr.mxu0 0.0
    %1155 = vmatpush2.msra.mxu0 0.0
    %1156 = vmatprep.subr.mxu0 0.0
    %1157 = vmatpush2.msra.mxu0 0.0
    %1158 = vmatprep.subr.mxu0 0.0
    %1159 = vmatpush2.msra.mxu0 0.0
    %1160 = vmatprep.subr.mxu0 0.0
    %1161 = vmatpush2.msra.mxu0 0.0
    %1162 = vmatprep.subr.mxu0 0.0
    %1163 = vmatpush2.msra.mxu0 0.0
    %1164 = vmatprep.subr.mxu0 0.0
    %1165 = vmatpush2.msra.mxu0 0.0
    %1166 = vmatprep.subr.mxu0 0.0
    %1167 = vmatpush2.msra.mxu0 0.0
    %1168 = vmatprep.subr.mxu0 0.0
    %1169 = vmatpush2.msra.mxu0 0.0
    %1170 = vmatprep.mubr.f32.mxu0 0.0
    %1171 = vmatmul.mubr.f32.gmra.mxu0 %v1104
    %v1172 = vpop.f32.mrf.mxu0
    %v1173 = vadd.f32 0.0, %v1172
    %v1174 = vpop.f32.mrf.mxu0
    %1175 = vdwg.mxu0
    %v1176 = vadd.f32 %v1100, %v1173
    %v1177 = vxor.u32 %v1176, 2147483648
    %v1178 = vmul.f32 %v1177, 1.442695
    %v1179 = vpow.pop %v1178
    %v1180 = vadd.f32 %v1179, 1.0
    %v1181 = vrcp.pop %v1180
    %v1182 = vmul.f32 1.0, %v1181
    %v1183 = vadd.f32 %v1173, %v834
    %1185 = vrot.lane.b32.xlu0 %v1183, 64
    %v1186 = vpop.permute.xlu0 %1185
    %v1188 = vmul.f32 %v1182, %v1186
    %1190 = vrot.lane.b32.xlu0 %v1188, 64
    %v1191 = vpop.permute.xlu0 %1190
    %v1193 = vadd.f32 %v1100, %v1191
    %v1194 = vtanh.pop %v1193
    %v1195 = vsub.f32 1.0, %v1182
    %1197 = vrot.lane.b32.xlu0 %v1194, 96
    %v1198 = vpop.permute.xlu0 %1197
    %v1200 = vmul.f32 %v1195, %v1198
    %v1201 = vmul.f32 %v1182, %v1099
    %v1202 = vadd.f32 %v1200, %v1201
    %vm1203 = vcmp.gt.s32.totalorder %v736, 3
    %v1204 = vsel %vm1203, 1, 0
    %1205 = vset.pattern.permute.xlu0 0
    %1206 = vperm.xlu0 %1205, %v1204
    %v1207 = vpop.permute.xlu0 %1206
    %vm1208 = vcmp.eq.s32.totalorder %v1207, 1
    %v1209 = vsel %vm1208, %v1202, 0.0
    %1211 = vrot.lane.b32.xlu0 %v1209, 96
    %v1212 = vpop.permute.xlu0 %1211
    %s1214 = scalar_lea.vmem [#allocation4], 6
    %1215 = vst.msk [vmem:[%s1214] sm:$0x3] %vm867, %v1212
    %v1216 = vsel %vm1208, %v1202, %v1099
    %v1217 = vld [vmem:[#allocation2 + $0x8] sm:$0x3]
    %1219 = vrot.lane.b32.xlu0 %v1216, 96
    %v1220 = vpop.permute.xlu0 %1219
    %v1221 = vsel %vm96, %v1220, 0
    %1223 = vmatprep.subr.mxu0 0.0
    %1224 = vmatpush1.msra.mxu0 0.0
    %1225 = vmatprep.subr.mxu0 0.0
    %1226 = vmatpush1.msra.mxu0 0.0
    %1227 = vmatprep.subr.mxu0 0.0
    %1228 = vmatpush1.msra.mxu0 0.0
    %1229 = vmatprep.subr.mxu0 0.0
    %1230 = vmatpush1.msra.mxu0 0.0
    %1231 = vmatprep.subr.mxu0 0.0
    %1232 = vmatpush1.msra.mxu0 0.0
    %1233 = vmatprep.subr.mxu0 0.0
    %1234 = vmatpush1.msra.mxu0 0.0
    %1235 = vmatprep.subr.mxu0 0.0
    %1236 = vmatpush1.msra.mxu0 0.0
    %1237 = vmatprep.subr.mxu0 0.0
    %1238 = vmatpush1.msra.mxu0 0.0
    %1239 = vmatprep.subr.mxu0 0.0
    %1240 = vmatpush1.msra.mxu0 0.0
    %1241 = vmatprep.subr.mxu0 0.0
    %1242 = vmatpush1.msra.mxu0 0.0
    %1243 = vmatprep.subr.mxu0 0.0
    %1244 = vmatpush1.msra.mxu0 0.0
    %1245 = vmatprep.subr.mxu0 0.0
    %1246 = vmatpush1.msra.mxu0 0.0
    %1247 = vmatprep.subr.mxu0 0.0
    %1248 = vmatpush1.msra.mxu0 %v740
    %1249 = vmatprep.subr.mxu0 0.0
    %1250 = vmatpush1.msra.mxu0 %v739
    %1251 = vmatprep.subr.mxu0 0.0
    %1252 = vmatpush1.msra.mxu0 %v738
    %1253 = vmatprep.subr.mxu0 0.0
    %1254 = vmatpush1.msra.mxu0 %v737
    %1255 = vmatprep.subr.mxu0 0.0
    %1256 = vmatpush2.msra.mxu0 0.0
    %1257 = vmatprep.subr.mxu0 0.0
    %1258 = vmatpush2.msra.mxu0 0.0
    %1259 = vmatprep.subr.mxu0 0.0
    %1260 = vmatpush2.msra.mxu0 0.0
    %1261 = vmatprep.subr.mxu0 0.0
    %1262 = vmatpush2.msra.mxu0 0.0
    %1263 = vmatprep.subr.mxu0 0.0
    %1264 = vmatpush2.msra.mxu0 0.0
    %1265 = vmatprep.subr.mxu0 0.0
    %1266 = vmatpush2.msra.mxu0 0.0
    %1267 = vmatprep.subr.mxu0 0.0
    %1268 = vmatpush2.msra.mxu0 0.0
    %1269 = vmatprep.subr.mxu0 0.0
    %1270 = vmatpush2.msra.mxu0 0.0
    %1271 = vmatprep.subr.mxu0 0.0
    %1272 = vmatpush2.msra.mxu0 0.0
    %1273 = vmatprep.subr.mxu0 0.0
    %1274 = vmatpush2.msra.mxu0 0.0
    %1275 = vmatprep.subr.mxu0 0.0
    %1276 = vmatpush2.msra.mxu0 0.0
    %1277 = vmatprep.subr.mxu0 0.0
    %1278 = vmatpush2.msra.mxu0 0.0
    %1279 = vmatprep.subr.mxu0 0.0
    %1280 = vmatpush2.msra.mxu0 0.0
    %1281 = vmatprep.subr.mxu0 0.0
    %1282 = vmatpush2.msra.mxu0 0.0
    %1283 = vmatprep.subr.mxu0 0.0
    %1284 = vmatpush2.msra.mxu0 0.0
    %1285 = vmatprep.subr.mxu0 0.0
    %1286 = vmatpush2.msra.mxu0 0.0
    %1287 = vmatprep.mubr.f32.mxu0 0.0
    %1288 = vmatmul.mubr.f32.gmra.mxu0 %v1221
    %v1289 = vpop.f32.mrf.mxu0
    %v1290 = vadd.f32 0.0, %v1289
    %v1291 = vpop.f32.mrf.mxu0
    %1292 = vdwg.mxu0
    %v1293 = vadd.f32 %v1217, %v1290
    %v1294 = vxor.u32 %v1293, 2147483648
    %v1295 = vmul.f32 %v1294, 1.442695
    %v1296 = vpow.pop %v1295
    %v1297 = vadd.f32 %v1296, 1.0
    %v1298 = vrcp.pop %v1297
    %v1299 = vmul.f32 1.0, %v1298
    %v1300 = vadd.f32 %v1290, %v834
    %1302 = vrot.lane.b32.xlu0 %v1300, 64
    %v1303 = vpop.permute.xlu0 %1302
    %v1305 = vmul.f32 %v1299, %v1303
    %1307 = vrot.lane.b32.xlu0 %v1305, 64
    %v1308 = vpop.permute.xlu0 %1307
    %v1310 = vadd.f32 %v1217, %v1308
    %v1311 = vtanh.pop %v1310
    %v1312 = vsub.f32 1.0, %v1299
    %1314 = vrot.lane.b32.xlu0 %v1311, 96
    %v1315 = vpop.permute.xlu0 %1314
    %v1317 = vmul.f32 %v1312, %v1315
    %v1318 = vmul.f32 %v1299, %v1216
    %v1319 = vadd.f32 %v1317, %v1318
    %vm1320 = vcmp.gt.s32.totalorder %v736, 4
    %v1321 = vsel %vm1320, 1, 0
    %1322 = vset.pattern.permute.xlu0 0
    %1323 = vperm.xlu0 %1322, %v1321
    %v1324 = vpop.permute.xlu0 %1323
    %vm1325 = vcmp.eq.s32.totalorder %v1324, 1
    %v1326 = vsel %vm1325, %v1319, 0.0
    %1328 = vrot.lane.b32.xlu0 %v1326, 96
    %v1329 = vpop.permute.xlu0 %1328
    %s1331 = scalar_lea.vmem [#allocation4], 8
    %1332 = vst.msk [vmem:[%s1331] sm:$0x3] %vm867, %v1329
    %v1333 = vsel %vm1325, %v1319, %v1216
    %v1334 = vld [vmem:[#allocation2 + $0xa] sm:$0x3]
    %1336 = vrot.lane.b32.xlu0 %v1333, 96
    %v1337 = vpop.permute.xlu0 %1336
    %v1338 = vsel %vm96, %v1337, 0
    %1340 = vmatprep.subr.mxu0 0.0
    %1341 = vmatpush1.msra.mxu0 0.0
    %1342 = vmatprep.subr.mxu0 0.0
    %1343 = vmatpush1.msra.mxu0 0.0
    %1344 = vmatprep.subr.mxu0 0.0
    %1345 = vmatpush1.msra.mxu0 0.0
    %1346 = vmatprep.subr.mxu0 0.0
    %1347 = vmatpush1.msra.mxu0 0.0
    %1348 = vmatprep.subr.mxu0 0.0
    %1349 = vmatpush1.msra.mxu0 0.0
    %1350 = vmatprep.subr.mxu0 0.0
    %1351 = vmatpush1.msra.mxu0 0.0
    %1352 = vmatprep.subr.mxu0 0.0
    %1353 = vmatpush1.msra.mxu0 0.0
    %1354 = vmatprep.subr.mxu0 0.0
    %1355 = vmatpush1.msra.mxu0 0.0
    %1356 = vmatprep.subr.mxu0 0.0
    %1357 = vmatpush1.msra.mxu0 0.0
    %1358 = vmatprep.subr.mxu0 0.0
    %1359 = vmatpush1.msra.mxu0 0.0
    %1360 = vmatprep.subr.mxu0 0.0
    %1361 = vmatpush1.msra.mxu0 0.0
    %1362 = vmatprep.subr.mxu0 0.0
    %1363 = vmatpush1.msra.mxu0 0.0
    %1364 = vmatprep.subr.mxu0 0.0
    %1365 = vmatpush1.msra.mxu0 %v740
    %1366 = vmatprep.subr.mxu0 0.0
    %1367 = vmatpush1.msra.mxu0 %v739
    %1368 = vmatprep.subr.mxu0 0.0
    %1369 = vmatpush1.msra.mxu0 %v738
    %1370 = vmatprep.subr.mxu0 0.0
    %1371 = vmatpush1.msra.mxu0 %v737
    %1372 = vmatprep.subr.mxu0 0.0
    %1373 = vmatpush2.msra.mxu0 0.0
    %1374 = vmatprep.subr.mxu0 0.0
    %1375 = vmatpush2.msra.mxu0 0.0
    %1376 = vmatprep.subr.mxu0 0.0
    %1377 = vmatpush2.msra.mxu0 0.0
    %1378 = vmatprep.subr.mxu0 0.0
    %1379 = vmatpush2.msra.mxu0 0.0
    %1380 = vmatprep.subr.mxu0 0.0
    %1381 = vmatpush2.msra.mxu0 0.0
    %1382 = vmatprep.subr.mxu0 0.0
    %1383 = vmatpush2.msra.mxu0 0.0
    %1384 = vmatprep.subr.mxu0 0.0
    %1385 = vmatpush2.msra.mxu0 0.0
    %1386 = vmatprep.subr.mxu0 0.0
    %1387 = vmatpush2.msra.mxu0 0.0
    %1388 = vmatprep.subr.mxu0 0.0
    %1389 = vmatpush2.msra.mxu0 0.0
    %1390 = vmatprep.subr.mxu0 0.0
    %1391 = vmatpush2.msra.mxu0 0.0
    %1392 = vmatprep.subr.mxu0 0.0
    %1393 = vmatpush2.msra.mxu0 0.0
    %1394 = vmatprep.subr.mxu0 0.0
    %1395 = vmatpush2.msra.mxu0 0.0
    %1396 = vmatprep.subr.mxu0 0.0
    %1397 = vmatpush2.msra.mxu0 0.0
    %1398 = vmatprep.subr.mxu0 0.0
    %1399 = vmatpush2.msra.mxu0 0.0
    %1400 = vmatprep.subr.mxu0 0.0
    %1401 = vmatpush2.msra.mxu0 0.0
    %1402 = vmatprep.subr.mxu0 0.0
    %1403 = vmatpush2.msra.mxu0 0.0
    %1404 = vmatprep.mubr.f32.mxu0 0.0
    %1405 = vmatmul.mubr.f32.gmra.mxu0 %v1338
    %v1406 = vpop.f32.mrf.mxu0
    %v1407 = vadd.f32 0.0, %v1406
    %v1408 = vpop.f32.mrf.mxu0
    %1409 = vdwg.mxu0
    %v1410 = vadd.f32 %v1334, %v1407
    %v1411 = vxor.u32 %v1410, 2147483648
    %v1412 = vmul.f32 %v1411, 1.442695
    %v1413 = vpow.pop %v1412
    %v1414 = vadd.f32 %v1413, 1.0
    %v1415 = vrcp.pop %v1414
    %v1416 = vmul.f32 1.0, %v1415
    %v1417 = vadd.f32 %v1407, %v834
    %1419 = vrot.lane.b32.xlu0 %v1417, 64
    %v1420 = vpop.permute.xlu0 %1419
    %v1422 = vmul.f32 %v1416, %v1420
    %1424 = vrot.lane.b32.xlu0 %v1422, 64
    %v1425 = vpop.permute.xlu0 %1424
    %v1427 = vadd.f32 %v1334, %v1425
    %v1428 = vtanh.pop %v1427
    %v1429 = vsub.f32 1.0, %v1416
    %1431 = vrot.lane.b32.xlu0 %v1428, 96
    %v1432 = vpop.permute.xlu0 %1431
    %v1434 = vmul.f32 %v1429, %v1432
    %v1435 = vmul.f32 %v1416, %v1333
    %v1436 = vadd.f32 %v1434, %v1435
    %vm1437 = vcmp.gt.s32.totalorder %v736, 5
    %v1438 = vsel %vm1437, 1, 0
    %1439 = vset.pattern.permute.xlu0 0
    %1440 = vperm.xlu0 %1439, %v1438
    %v1441 = vpop.permute.xlu0 %1440
    %vm1442 = vcmp.eq.s32.totalorder %v1441, 1
    %v1443 = vsel %vm1442, %v1436, 0.0
    %1445 = vrot.lane.b32.xlu0 %v1443, 96
    %v1446 = vpop.permute.xlu0 %1445
    %s1448 = scalar_lea.vmem [#allocation4], 10
    %1449 = vst.msk [vmem:[%s1448] sm:$0x3] %vm867, %v1446
    %v1450 = vsel %vm1442, %v1436, %v1333
    %v1451 = vld [vmem:[#allocation2 + $0xc] sm:$0x3]
    %1453 = vrot.lane.b32.xlu0 %v1450, 96
    %v1454 = vpop.permute.xlu0 %1453
    %v1455 = vsel %vm96, %v1454, 0
    %1457 = vmatprep.subr.mxu0 0.0
    %1458 = vmatpush1.msra.mxu0 0.0
    %1459 = vmatprep.subr.mxu0 0.0
    %1460 = vmatpush1.msra.mxu0 0.0
    %1461 = vmatprep.subr.mxu0 0.0
    %1462 = vmatpush1.msra.mxu0 0.0
    %1463 = vmatprep.subr.mxu0 0.0
    %1464 = vmatpush1.msra.mxu0 0.0
    %1465 = vmatprep.subr.mxu0 0.0
    %1466 = vmatpush1.msra.mxu0 0.0
    %1467 = vmatprep.subr.mxu0 0.0
    %1468 = vmatpush1.msra.mxu0 0.0
    %1469 = vmatprep.subr.mxu0 0.0
    %1470 = vmatpush1.msra.mxu0 0.0
    %1471 = vmatprep.subr.mxu0 0.0
    %1472 = vmatpush1.msra.mxu0 0.0
    %1473 = vmatprep.subr.mxu0 0.0
    %1474 = vmatpush1.msra.mxu0 0.0
    %1475 = vmatprep.subr.mxu0 0.0
    %1476 = vmatpush1.msra.mxu0 0.0
    %1477 = vmatprep.subr.mxu0 0.0
    %1478 = vmatpush1.msra.mxu0 0.0
    %1479 = vmatprep.subr.mxu0 0.0
    %1480 = vmatpush1.msra.mxu0 0.0
    %1481 = vmatprep.subr.mxu0 0.0
    %1482 = vmatpush1.msra.mxu0 %v740
    %1483 = vmatprep.subr.mxu0 0.0
    %1484 = vmatpush1.msra.mxu0 %v739
    %1485 = vmatprep.subr.mxu0 0.0
    %1486 = vmatpush1.msra.mxu0 %v738
    %1487 = vmatprep.subr.mxu0 0.0
    %1488 = vmatpush1.msra.mxu0 %v737
    %1489 = vmatprep.subr.mxu0 0.0
    %1490 = vmatpush2.msra.mxu0 0.0
    %1491 = vmatprep.subr.mxu0 0.0
    %1492 = vmatpush2.msra.mxu0 0.0
    %1493 = vmatprep.subr.mxu0 0.0
    %1494 = vmatpush2.msra.mxu0 0.0
    %1495 = vmatprep.subr.mxu0 0.0
    %1496 = vmatpush2.msra.mxu0 0.0
    %1497 = vmatprep.subr.mxu0 0.0
    %1498 = vmatpush2.msra.mxu0 0.0
    %1499 = vmatprep.subr.mxu0 0.0
    %1500 = vmatpush2.msra.mxu0 0.0
    %1501 = vmatprep.subr.mxu0 0.0
    %1502 = vmatpush2.msra.mxu0 0.0
    %1503 = vmatprep.subr.mxu0 0.0
    %1504 = vmatpush2.msra.mxu0 0.0
    %1505 = vmatprep.subr.mxu0 0.0
    %1506 = vmatpush2.msra.mxu0 0.0
    %1507 = vmatprep.subr.mxu0 0.0
    %1508 = vmatpush2.msra.mxu0 0.0
    %1509 = vmatprep.subr.mxu0 0.0
    %1510 = vmatpush2.msra.mxu0 0.0
    %1511 = vmatprep.subr.mxu0 0.0
    %1512 = vmatpush2.msra.mxu0 0.0
    %1513 = vmatprep.subr.mxu0 0.0
    %1514 = vmatpush2.msra.mxu0 0.0
    %1515 = vmatprep.subr.mxu0 0.0
    %1516 = vmatpush2.msra.mxu0 0.0
    %1517 = vmatprep.subr.mxu0 0.0
    %1518 = vmatpush2.msra.mxu0 0.0
    %1519 = vmatprep.subr.mxu0 0.0
    %1520 = vmatpush2.msra.mxu0 0.0
    %1521 = vmatprep.mubr.f32.mxu0 0.0
    %1522 = vmatmul.mubr.f32.gmra.mxu0 %v1455
    %v1523 = vpop.f32.mrf.mxu0
    %v1524 = vadd.f32 0.0, %v1523
    %v1525 = vpop.f32.mrf.mxu0
    %1526 = vdwg.mxu0
    %v1527 = vadd.f32 %v1451, %v1524
    %v1528 = vxor.u32 %v1527, 2147483648
    %v1529 = vmul.f32 %v1528, 1.442695
    %v1530 = vpow.pop %v1529
    %v1531 = vadd.f32 %v1530, 1.0
    %v1532 = vrcp.pop %v1531
    %v1533 = vmul.f32 1.0, %v1532
    %v1534 = vadd.f32 %v1524, %v834
    %1536 = vrot.lane.b32.xlu0 %v1534, 64
    %v1537 = vpop.permute.xlu0 %1536
    %v1539 = vmul.f32 %v1533, %v1537
    %1541 = vrot.lane.b32.xlu0 %v1539, 64
    %v1542 = vpop.permute.xlu0 %1541
    %v1544 = vadd.f32 %v1451, %v1542
    %v1545 = vtanh.pop %v1544
    %v1546 = vsub.f32 1.0, %v1533
    %1548 = vrot.lane.b32.xlu0 %v1545, 96
    %v1549 = vpop.permute.xlu0 %1548
    %v1551 = vmul.f32 %v1546, %v1549
    %v1552 = vmul.f32 %v1533, %v1450
    %v1553 = vadd.f32 %v1551, %v1552
    %vm1554 = vcmp.gt.s32.totalorder %v736, 6
    %v1555 = vsel %vm1554, 1, 0
    %1556 = vset.pattern.permute.xlu0 0
    %1557 = vperm.xlu0 %1556, %v1555
    %v1558 = vpop.permute.xlu0 %1557
    %vm1559 = vcmp.eq.s32.totalorder %v1558, 1
    %v1560 = vsel %vm1559, %v1553, 0.0
    %1562 = vrot.lane.b32.xlu0 %v1560, 96
    %v1563 = vpop.permute.xlu0 %1562
    %s1565 = scalar_lea.vmem [#allocation4], 12
    %1566 = vst.msk [vmem:[%s1565] sm:$0x3] %vm867, %v1563
    %v1567 = vsel %vm1559, %v1553, %v1450
    %v1568 = vld [vmem:[#allocation2 + $0xe] sm:$0x3]
    %1570 = vrot.lane.b32.xlu0 %v1567, 96
    %v1571 = vpop.permute.xlu0 %1570
    %v1572 = vsel %vm96, %v1571, 0
    %1574 = vmatprep.subr.mxu0 0.0
    %1575 = vmatpush1.msra.mxu0 0.0
    %1576 = vmatprep.subr.mxu0 0.0
    %1577 = vmatpush1.msra.mxu0 0.0
    %1578 = vmatprep.subr.mxu0 0.0
    %1579 = vmatpush1.msra.mxu0 0.0
    %1580 = vmatprep.subr.mxu0 0.0
    %1581 = vmatpush1.msra.mxu0 0.0
    %1582 = vmatprep.subr.mxu0 0.0
    %1583 = vmatpush1.msra.mxu0 0.0
    %1584 = vmatprep.subr.mxu0 0.0
    %1585 = vmatpush1.msra.mxu0 0.0
    %1586 = vmatprep.subr.mxu0 0.0
    %1587 = vmatpush1.msra.mxu0 0.0
    %1588 = vmatprep.subr.mxu0 0.0
    %1589 = vmatpush1.msra.mxu0 0.0
    %1590 = vmatprep.subr.mxu0 0.0
    %1591 = vmatpush1.msra.mxu0 0.0
    %1592 = vmatprep.subr.mxu0 0.0
    %1593 = vmatpush1.msra.mxu0 0.0
    %1594 = vmatprep.subr.mxu0 0.0
    %1595 = vmatpush1.msra.mxu0 0.0
    %1596 = vmatprep.subr.mxu0 0.0
    %1597 = vmatpush1.msra.mxu0 0.0
    %1598 = vmatprep.subr.mxu0 0.0
    %1599 = vmatpush1.msra.mxu0 %v740
    %1600 = vmatprep.subr.mxu0 0.0
    %1601 = vmatpush1.msra.mxu0 %v739
    %1602 = vmatprep.subr.mxu0 0.0
    %1603 = vmatpush1.msra.mxu0 %v738
    %1604 = vmatprep.subr.mxu0 0.0
    %1605 = vmatpush1.msra.mxu0 %v737
    %1606 = vmatprep.subr.mxu0 0.0
    %1607 = vmatpush2.msra.mxu0 0.0
    %1608 = vmatprep.subr.mxu0 0.0
    %1609 = vmatpush2.msra.mxu0 0.0
    %1610 = vmatprep.subr.mxu0 0.0
    %1611 = vmatpush2.msra.mxu0 0.0
    %1612 = vmatprep.subr.mxu0 0.0
    %1613 = vmatpush2.msra.mxu0 0.0
    %1614 = vmatprep.subr.mxu0 0.0
    %1615 = vmatpush2.msra.mxu0 0.0
    %1616 = vmatprep.subr.mxu0 0.0
    %1617 = vmatpush2.msra.mxu0 0.0
    %1618 = vmatprep.subr.mxu0 0.0
    %1619 = vmatpush2.msra.mxu0 0.0
    %1620 = vmatprep.subr.mxu0 0.0
    %1621 = vmatpush2.msra.mxu0 0.0
    %1622 = vmatprep.subr.mxu0 0.0
    %1623 = vmatpush2.msra.mxu0 0.0
    %1624 = vmatprep.subr.mxu0 0.0
    %1625 = vmatpush2.msra.mxu0 0.0
    %1626 = vmatprep.subr.mxu0 0.0
    %1627 = vmatpush2.msra.mxu0 0.0
    %1628 = vmatprep.subr.mxu0 0.0
    %1629 = vmatpush2.msra.mxu0 0.0
    %1630 = vmatprep.subr.mxu0 0.0
    %1631 = vmatpush2.msra.mxu0 0.0
    %1632 = vmatprep.subr.mxu0 0.0
    %1633 = vmatpush2.msra.mxu0 0.0
    %1634 = vmatprep.subr.mxu0 0.0
    %1635 = vmatpush2.msra.mxu0 0.0
    %1636 = vmatprep.subr.mxu0 0.0
    %1637 = vmatpush2.msra.mxu0 0.0
    %1638 = vmatprep.mubr.f32.mxu0 0.0
    %1639 = vmatmul.mubr.f32.gmra.mxu0 %v1572
    %v1640 = vpop.f32.mrf.mxu0
    %v1641 = vadd.f32 0.0, %v1640
    %v1642 = vpop.f32.mrf.mxu0
    %1643 = vdwg.mxu0
    %v1644 = vadd.f32 %v1568, %v1641
    %v1645 = vxor.u32 %v1644, 2147483648
    %v1646 = vmul.f32 %v1645, 1.442695
    %v1647 = vpow.pop %v1646
    %v1648 = vadd.f32 %v1647, 1.0
    %v1649 = vrcp.pop %v1648
    %v1650 = vmul.f32 1.0, %v1649
    %v1651 = vadd.f32 %v1641, %v834
    %1653 = vrot.lane.b32.xlu0 %v1651, 64
    %v1654 = vpop.permute.xlu0 %1653
    %v1656 = vmul.f32 %v1650, %v1654
    %1658 = vrot.lane.b32.xlu0 %v1656, 64
    %v1659 = vpop.permute.xlu0 %1658
    %v1661 = vadd.f32 %v1568, %v1659
    %v1662 = vtanh.pop %v1661
    %v1663 = vsub.f32 1.0, %v1650
    %1665 = vrot.lane.b32.xlu0 %v1662, 96
    %v1666 = vpop.permute.xlu0 %1665
    %v1668 = vmul.f32 %v1663, %v1666
    %v1669 = vmul.f32 %v1650, %v1567
    %v1670 = vadd.f32 %v1668, %v1669
    %vm1671 = vcmp.gt.s32.totalorder %v736, 7
    %v1672 = vsel %vm1671, 1, 0
    %1673 = vset.pattern.permute.xlu0 0
    %1674 = vperm.xlu0 %1673, %v1672
    %v1675 = vpop.permute.xlu0 %1674
    %vm1676 = vcmp.eq.s32.totalorder %v1675, 1
    %v1677 = vsel %vm1676, %v1670, 0.0
    %1679 = vrot.lane.b32.xlu0 %v1677, 96
    %v1680 = vpop.permute.xlu0 %1679
    %s1682 = scalar_lea.vmem [#allocation4], 14
    %1683 = vst.msk [vmem:[%s1682] sm:$0x3] %vm867, %v1680
    %v1684 = vld [vmem:[#allocation3 + $0xe] sm:$0x3]
    %1685 = vmatprep.subr.mxu0 0.0
    %1686 = vmatpush1.msra.mxu0 0.0
    %1687 = vmatprep.subr.mxu0 0.0
    %1688 = vmatpush1.msra.mxu0 0.0
    %1689 = vmatprep.subr.mxu0 0.0
    %1690 = vmatpush1.msra.mxu0 0.0
    %1691 = vmatprep.subr.mxu0 0.0
    %1692 = vmatpush1.msra.mxu0 0.0
    %1693 = vmatprep.subr.mxu0 0.0
    %1694 = vmatpush1.msra.mxu0 0.0
    %1695 = vmatprep.subr.mxu0 0.0
    %1696 = vmatpush1.msra.mxu0 0.0
    %1697 = vmatprep.subr.mxu0 0.0
    %1698 = vmatpush1.msra.mxu0 0.0
    %1699 = vmatprep.subr.mxu0 0.0
    %1700 = vmatpush1.msra.mxu0 0.0
    %1701 = vmatprep.subr.mxu0 0.0
    %1702 = vmatpush1.msra.mxu0 0.0
    %1703 = vmatprep.subr.mxu0 0.0
    %1704 = vmatpush1.msra.mxu0 0.0
    %1705 = vmatprep.subr.mxu0 0.0
    %1706 = vmatpush1.msra.mxu0 0.0
    %1707 = vmatprep.subr.mxu0 0.0
    %1708 = vmatpush1.msra.mxu0 0.0
    %1709 = vmatprep.subr.mxu0 0.0
    %1710 = vmatpush1.msra.mxu0 %v744
    %1711 = vmatprep.subr.mxu0 0.0
    %1712 = vmatpush1.msra.mxu0 %v743
    %1713 = vmatprep.subr.mxu0 0.0
    %1714 = vmatpush1.msra.mxu0 %v742
    %1715 = vmatprep.subr.mxu0 0.0
    %1716 = vmatpush1.msra.mxu0 %v741
    %1717 = vmatprep.subr.mxu0 0.0
    %1718 = vmatpush2.msra.mxu0 0.0
    %1719 = vmatprep.subr.mxu0 0.0
    %1720 = vmatpush2.msra.mxu0 0.0
    %1721 = vmatprep.subr.mxu0 0.0
    %1722 = vmatpush2.msra.mxu0 0.0
    %1723 = vmatprep.subr.mxu0 0.0
    %1724 = vmatpush2.msra.mxu0 0.0
    %1725 = vmatprep.subr.mxu0 0.0
    %1726 = vmatpush2.msra.mxu0 0.0
    %1727 = vmatprep.subr.mxu0 0.0
    %1728 = vmatpush2.msra.mxu0 0.0
    %1729 = vmatprep.subr.mxu0 0.0
    %1730 = vmatpush2.msra.mxu0 0.0
    %1731 = vmatprep.subr.mxu0 0.0
    %1732 = vmatpush2.msra.mxu0 0.0
    %1733 = vmatprep.subr.mxu0 0.0
    %1734 = vmatpush2.msra.mxu0 0.0
    %1735 = vmatprep.subr.mxu0 0.0
    %1736 = vmatpush2.msra.mxu0 0.0
    %1737 = vmatprep.subr.mxu0 0.0
    %1738 = vmatpush2.msra.mxu0 0.0
    %1739 = vmatprep.subr.mxu0 0.0
    %1740 = vmatpush2.msra.mxu0 0.0
    %1741 = vmatprep.subr.mxu0 0.0
    %1742 = vmatpush2.msra.mxu0 0.0
    %1743 = vmatprep.subr.mxu0 0.0
    %1744 = vmatpush2.msra.mxu0 0.0
    %1745 = vmatprep.subr.mxu0 0.0
    %1746 = vmatpush2.msra.mxu0 0.0
    %1747 = vmatprep.subr.mxu0 0.0
    %1748 = vmatpush2.msra.mxu0 0.0
    %1749 = vmatprep.mubr.f32.mxu0 0.0
    %1750 = vmatmul.mubr.f32.gmra.mxu0 %v749
    %v1751 = vpop.f32.mrf.mxu0
    %v1752 = vadd.f32 0.0, %v1751
    %v1753 = vpop.f32.mrf.mxu0
    %1754 = vdwg.mxu0
    %v1755 = vadd.f32 %v1684, %v1752
    %v1756 = vxor.u32 %v1755, 2147483648
    %v1757 = vmul.f32 %v1756, 1.442695
    %v1758 = vpow.pop %v1757
    %v1759 = vadd.f32 %v1758, 1.0
    %v1760 = vrcp.pop %v1759
    %v1761 = vmul.f32 1.0, %v1760
    %v1762 = vlaneseq
    %v1763 = vshrl.u32 %v1762, 7
    %v1764 = vsub.s32 0, %v1763
    %v1765 = vrot.slane %v746, %v1764
    %1767 = vrot.lane.b32.xlu0 %v1765, 64
    %v1768 = vpop.permute.xlu0 %1767
    %v1770 = vadd.f32 %v1752, %v1768
    %1772 = vrot.lane.b32.xlu0 %v1770, 64
    %v1773 = vpop.permute.xlu0 %1772
    %v1775 = vmul.f32 %v1761, %v1773
    %1777 = vrot.lane.b32.xlu0 %v1775, 64
    %v1778 = vpop.permute.xlu0 %1777
    %v1780 = vadd.f32 %v1684, %v1778
    %v1781 = vtanh.pop %v1780
    %v1782 = vsub.f32 1.0, %v1761
    %1784 = vrot.lane.b32.xlu0 %v1781, 96
    %v1785 = vpop.permute.xlu0 %1784
    %v1787 = vmul.f32 %v1782, %v1785
    %v1788 = vmul.f32 %v1761, 0.0
    %v1789 = vadd.f32 %v1787, %v1788
    %v1790 = vld [vmem:[%s1682] sm:$0x3]
    %v1791 = vsel %vm1676, %v1789, 0.0
    %1793 = vrot.lane.b32.xlu0 %v1791, 96
    %v1794 = vpop.permute.xlu0 %1793
    %v1796 = vadd.f32 %v1790, %v1794
    %1797 = vst.msk [vmem:[%s1682] sm:$0x3] %vm867, %v1796
    %v1798 = vld [vmem:[#allocation3 + $0xc] sm:$0x3]
    %v1799 = vsel %vm96, %v1794, 0
    %1801 = vmatprep.subr.mxu0 0.0
    %1802 = vmatpush1.msra.mxu0 0.0
    %1803 = vmatprep.subr.mxu0 0.0
    %1804 = vmatpush1.msra.mxu0 0.0
    %1805 = vmatprep.subr.mxu0 0.0
    %1806 = vmatpush1.msra.mxu0 0.0
    %1807 = vmatprep.subr.mxu0 0.0
    %1808 = vmatpush1.msra.mxu0 0.0
    %1809 = vmatprep.subr.mxu0 0.0
    %1810 = vmatpush1.msra.mxu0 0.0
    %1811 = vmatprep.subr.mxu0 0.0
    %1812 = vmatpush1.msra.mxu0 0.0
    %1813 = vmatprep.subr.mxu0 0.0
    %1814 = vmatpush1.msra.mxu0 0.0
    %1815 = vmatprep.subr.mxu0 0.0
    %1816 = vmatpush1.msra.mxu0 0.0
    %1817 = vmatprep.subr.mxu0 0.0
    %1818 = vmatpush1.msra.mxu0 0.0
    %1819 = vmatprep.subr.mxu0 0.0
    %1820 = vmatpush1.msra.mxu0 0.0
    %1821 = vmatprep.subr.mxu0 0.0
    %1822 = vmatpush1.msra.mxu0 0.0
    %1823 = vmatprep.subr.mxu0 0.0
    %1824 = vmatpush1.msra.mxu0 0.0
    %1825 = vmatprep.subr.mxu0 0.0
    %1826 = vmatpush1.msra.mxu0 %v744
    %1827 = vmatprep.subr.mxu0 0.0
    %1828 = vmatpush1.msra.mxu0 %v743
    %1829 = vmatprep.subr.mxu0 0.0
    %1830 = vmatpush1.msra.mxu0 %v742
    %1831 = vmatprep.subr.mxu0 0.0
    %1832 = vmatpush1.msra.mxu0 %v741
    %1833 = vmatprep.subr.mxu0 0.0
    %1834 = vmatpush2.msra.mxu0 0.0
    %1835 = vmatprep.subr.mxu0 0.0
    %1836 = vmatpush2.msra.mxu0 0.0
    %1837 = vmatprep.subr.mxu0 0.0
    %1838 = vmatpush2.msra.mxu0 0.0
    %1839 = vmatprep.subr.mxu0 0.0
    %1840 = vmatpush2.msra.mxu0 0.0
    %1841 = vmatprep.subr.mxu0 0.0
    %1842 = vmatpush2.msra.mxu0 0.0
    %1843 = vmatprep.subr.mxu0 0.0
    %1844 = vmatpush2.msra.mxu0 0.0
    %1845 = vmatprep.subr.mxu0 0.0
    %1846 = vmatpush2.msra.mxu0 0.0
    %1847 = vmatprep.subr.mxu0 0.0
    %1848 = vmatpush2.msra.mxu0 0.0
    %1849 = vmatprep.subr.mxu0 0.0
    %1850 = vmatpush2.msra.mxu0 0.0
    %1851 = vmatprep.subr.mxu0 0.0
    %1852 = vmatpush2.msra.mxu0 0.0
    %1853 = vmatprep.subr.mxu0 0.0
    %1854 = vmatpush2.msra.mxu0 0.0
    %1855 = vmatprep.subr.mxu0 0.0
    %1856 = vmatpush2.msra.mxu0 0.0
    %1857 = vmatprep.subr.mxu0 0.0
    %1858 = vmatpush2.msra.mxu0 0.0
    %1859 = vmatprep.subr.mxu0 0.0
    %1860 = vmatpush2.msra.mxu0 0.0
    %1861 = vmatprep.subr.mxu0 0.0
    %1862 = vmatpush2.msra.mxu0 0.0
    %1863 = vmatprep.subr.mxu0 0.0
    %1864 = vmatpush2.msra.mxu0 0.0
    %1865 = vmatprep.mubr.f32.mxu0 0.0
    %1866 = vmatmul.mubr.f32.gmra.mxu0 %v1799
    %v1867 = vpop.f32.mrf.mxu0
    %v1868 = vadd.f32 0.0, %v1867
    %v1869 = vpop.f32.mrf.mxu0
    %1870 = vdwg.mxu0
    %v1871 = vadd.f32 %v1798, %v1868
    %v1872 = vxor.u32 %v1871, 2147483648
    %v1873 = vmul.f32 %v1872, 1.442695
    %v1874 = vpow.pop %v1873
    %v1875 = vadd.f32 %v1874, 1.0
    %v1876 = vrcp.pop %v1875
    %v1877 = vmul.f32 1.0, %v1876
    %v1878 = vadd.f32 %v1868, %v1768
    %1880 = vrot.lane.b32.xlu0 %v1878, 64
    %v1881 = vpop.permute.xlu0 %1880
    %v1883 = vmul.f32 %v1877, %v1881
    %1885 = vrot.lane.b32.xlu0 %v1883, 64
    %v1886 = vpop.permute.xlu0 %1885
    %v1888 = vadd.f32 %v1798, %v1886
    %v1889 = vtanh.pop %v1888
    %v1890 = vsub.f32 1.0, %v1877
    %1892 = vrot.lane.b32.xlu0 %v1889, 96
    %v1893 = vpop.permute.xlu0 %1892
    %v1895 = vmul.f32 %v1890, %v1893
    %v1896 = vmul.f32 %v1877, %v1791
    %v1897 = vadd.f32 %v1895, %v1896
    %v1898 = vld [vmem:[%s1565] sm:$0x3]
    %v1899 = vsel %vm1559, %v1897, 0.0
    %1901 = vrot.lane.b32.xlu0 %v1899, 96
    %v1902 = vpop.permute.xlu0 %1901
    %v1904 = vadd.f32 %v1898, %v1902
    %1905 = vst.msk [vmem:[%s1565] sm:$0x3] %vm867, %v1904
    %v1906 = vsel %vm1559, %v1897, %v1791
    %v1907 = vld [vmem:[#allocation3 + $0xa] sm:$0x3]
    %1909 = vrot.lane.b32.xlu0 %v1906, 96
    %v1910 = vpop.permute.xlu0 %1909
    %v1911 = vsel %vm96, %v1910, 0
    %1913 = vmatprep.subr.mxu0 0.0
    %1914 = vmatpush1.msra.mxu0 0.0
    %1915 = vmatprep.subr.mxu0 0.0
    %1916 = vmatpush1.msra.mxu0 0.0
    %1917 = vmatprep.subr.mxu0 0.0
    %1918 = vmatpush1.msra.mxu0 0.0
    %1919 = vmatprep.subr.mxu0 0.0
    %1920 = vmatpush1.msra.mxu0 0.0
    %1921 = vmatprep.subr.mxu0 0.0
    %1922 = vmatpush1.msra.mxu0 0.0
    %1923 = vmatprep.subr.mxu0 0.0
    %1924 = vmatpush1.msra.mxu0 0.0
    %1925 = vmatprep.subr.mxu0 0.0
    %1926 = vmatpush1.msra.mxu0 0.0
    %1927 = vmatprep.subr.mxu0 0.0
    %1928 = vmatpush1.msra.mxu0 0.0
    %1929 = vmatprep.subr.mxu0 0.0
    %1930 = vmatpush1.msra.mxu0 0.0
    %1931 = vmatprep.subr.mxu0 0.0
    %1932 = vmatpush1.msra.mxu0 0.0
    %1933 = vmatprep.subr.mxu0 0.0
    %1934 = vmatpush1.msra.mxu0 0.0
    %1935 = vmatprep.subr.mxu0 0.0
    %1936 = vmatpush1.msra.mxu0 0.0
    %1937 = vmatprep.subr.mxu0 0.0
    %1938 = vmatpush1.msra.mxu0 %v744
    %1939 = vmatprep.subr.mxu0 0.0
    %1940 = vmatpush1.msra.mxu0 %v743
    %1941 = vmatprep.subr.mxu0 0.0
    %1942 = vmatpush1.msra.mxu0 %v742
    %1943 = vmatprep.subr.mxu0 0.0
    %1944 = vmatpush1.msra.mxu0 %v741
    %1945 = vmatprep.subr.mxu0 0.0
    %1946 = vmatpush2.msra.mxu0 0.0
    %1947 = vmatprep.subr.mxu0 0.0
    %1948 = vmatpush2.msra.mxu0 0.0
    %1949 = vmatprep.subr.mxu0 0.0
    %1950 = vmatpush2.msra.mxu0 0.0
    %1951 = vmatprep.subr.mxu0 0.0
    %1952 = vmatpush2.msra.mxu0 0.0
    %1953 = vmatprep.subr.mxu0 0.0
    %1954 = vmatpush2.msra.mxu0 0.0
    %1955 = vmatprep.subr.mxu0 0.0
    %1956 = vmatpush2.msra.mxu0 0.0
    %1957 = vmatprep.subr.mxu0 0.0
    %1958 = vmatpush2.msra.mxu0 0.0
    %1959 = vmatprep.subr.mxu0 0.0
    %1960 = vmatpush2.msra.mxu0 0.0
    %1961 = vmatprep.subr.mxu0 0.0
    %1962 = vmatpush2.msra.mxu0 0.0
    %1963 = vmatprep.subr.mxu0 0.0
    %1964 = vmatpush2.msra.mxu0 0.0
    %1965 = vmatprep.subr.mxu0 0.0
    %1966 = vmatpush2.msra.mxu0 0.0
    %1967 = vmatprep.subr.mxu0 0.0
    %1968 = vmatpush2.msra.mxu0 0.0
    %1969 = vmatprep.subr.mxu0 0.0
    %1970 = vmatpush2.msra.mxu0 0.0
    %1971 = vmatprep.subr.mxu0 0.0
    %1972 = vmatpush2.msra.mxu0 0.0
    %1973 = vmatprep.subr.mxu0 0.0
    %1974 = vmatpush2.msra.mxu0 0.0
    %1975 = vmatprep.subr.mxu0 0.0
    %1976 = vmatpush2.msra.mxu0 0.0
    %1977 = vmatprep.mubr.f32.mxu0 0.0
    %1978 = vmatmul.mubr.f32.gmra.mxu0 %v1911
    %v1979 = vpop.f32.mrf.mxu0
    %v1980 = vadd.f32 0.0, %v1979
    %v1981 = vpop.f32.mrf.mxu0
    %1982 = vdwg.mxu0
    %v1983 = vadd.f32 %v1907, %v1980
    %v1984 = vxor.u32 %v1983, 2147483648
    %v1985 = vmul.f32 %v1984, 1.442695
    %v1986 = vpow.pop %v1985
    %v1987 = vadd.f32 %v1986, 1.0
    %v1988 = vrcp.pop %v1987
    %v1989 = vmul.f32 1.0, %v1988
    %v1990 = vadd.f32 %v1980, %v1768
    %1992 = vrot.lane.b32.xlu0 %v1990, 64
    %v1993 = vpop.permute.xlu0 %1992
    %v1995 = vmul.f32 %v1989, %v1993
    %1997 = vrot.lane.b32.xlu0 %v1995, 64
    %v1998 = vpop.permute.xlu0 %1997
    %v2000 = vadd.f32 %v1907, %v1998
    %v2001 = vtanh.pop %v2000
    %v2002 = vsub.f32 1.0, %v1989
    %2004 = vrot.lane.b32.xlu0 %v2001, 96
    %v2005 = vpop.permute.xlu0 %2004
    %v2007 = vmul.f32 %v2002, %v2005
    %v2008 = vmul.f32 %v1989, %v1906
    %v2009 = vadd.f32 %v2007, %v2008
    %v2010 = vld [vmem:[%s1448] sm:$0x3]
    %v2011 = vsel %vm1442, %v2009, 0.0
    %2013 = vrot.lane.b32.xlu0 %v2011, 96
    %v2014 = vpop.permute.xlu0 %2013
    %v2016 = vadd.f32 %v2010, %v2014
    %2017 = vst.msk [vmem:[%s1448] sm:$0x3] %vm867, %v2016
    %v2018 = vsel %vm1442, %v2009, %v1906
    %v2019 = vld [vmem:[#allocation3 + $0x8] sm:$0x3]
    %2021 = vrot.lane.b32.xlu0 %v2018, 96
    %v2022 = vpop.permute.xlu0 %2021
    %v2023 = vsel %vm96, %v2022, 0
    %2025 = vmatprep.subr.mxu0 0.0
    %2026 = vmatpush1.msra.mxu0 0.0
    %2027 = vmatprep.subr.mxu0 0.0
    %2028 = vmatpush1.msra.mxu0 0.0
    %2029 = vmatprep.subr.mxu0 0.0
    %2030 = vmatpush1.msra.mxu0 0.0
    %2031 = vmatprep.subr.mxu0 0.0
    %2032 = vmatpush1.msra.mxu0 0.0
    %2033 = vmatprep.subr.mxu0 0.0
    %2034 = vmatpush1.msra.mxu0 0.0
    %2035 = vmatprep.subr.mxu0 0.0
    %2036 = vmatpush1.msra.mxu0 0.0
    %2037 = vmatprep.subr.mxu0 0.0
    %2038 = vmatpush1.msra.mxu0 0.0
    %2039 = vmatprep.subr.mxu0 0.0
    %2040 = vmatpush1.msra.mxu0 0.0
    %2041 = vmatprep.subr.mxu0 0.0
    %2042 = vmatpush1.msra.mxu0 0.0
    %2043 = vmatprep.subr.mxu0 0.0
    %2044 = vmatpush1.msra.mxu0 0.0
    %2045 = vmatprep.subr.mxu0 0.0
    %2046 = vmatpush1.msra.mxu0 0.0
    %2047 = vmatprep.subr.mxu0 0.0
    %2048 = vmatpush1.msra.mxu0 0.0
    %2049 = vmatprep.subr.mxu0 0.0
    %2050 = vmatpush1.msra.mxu0 %v744
    %2051 = vmatprep.subr.mxu0 0.0
    %2052 = vmatpush1.msra.mxu0 %v743
    %2053 = vmatprep.subr.mxu0 0.0
    %2054 = vmatpush1.msra.mxu0 %v742
    %2055 = vmatprep.subr.mxu0 0.0
    %2056 = vmatpush1.msra.mxu0 %v741
    %2057 = vmatprep.subr.mxu0 0.0
    %2058 = vmatpush2.msra.mxu0 0.0
    %2059 = vmatprep.subr.mxu0 0.0
    %2060 = vmatpush2.msra.mxu0 0.0
    %2061 = vmatprep.subr.mxu0 0.0
    %2062 = vmatpush2.msra.mxu0 0.0
    %2063 = vmatprep.subr.mxu0 0.0
    %2064 = vmatpush2.msra.mxu0 0.0
    %2065 = vmatprep.subr.mxu0 0.0
    %2066 = vmatpush2.msra.mxu0 0.0
    %2067 = vmatprep.subr.mxu0 0.0
    %2068 = vmatpush2.msra.mxu0 0.0
    %2069 = vmatprep.subr.mxu0 0.0
    %2070 = vmatpush2.msra.mxu0 0.0
    %2071 = vmatprep.subr.mxu0 0.0
    %2072 = vmatpush2.msra.mxu0 0.0
    %2073 = vmatprep.subr.mxu0 0.0
    %2074 = vmatpush2.msra.mxu0 0.0
    %2075 = vmatprep.subr.mxu0 0.0
    %2076 = vmatpush2.msra.mxu0 0.0
    %2077 = vmatprep.subr.mxu0 0.0
    %2078 = vmatpush2.msra.mxu0 0.0
    %2079 = vmatprep.subr.mxu0 0.0
    %2080 = vmatpush2.msra.mxu0 0.0
    %2081 = vmatprep.subr.mxu0 0.0
    %2082 = vmatpush2.msra.mxu0 0.0
    %2083 = vmatprep.subr.mxu0 0.0
    %2084 = vmatpush2.msra.mxu0 0.0
    %2085 = vmatprep.subr.mxu0 0.0
    %2086 = vmatpush2.msra.mxu0 0.0
    %2087 = vmatprep.subr.mxu0 0.0
    %2088 = vmatpush2.msra.mxu0 0.0
    %2089 = vmatprep.mubr.f32.mxu0 0.0
    %2090 = vmatmul.mubr.f32.gmra.mxu0 %v2023
    %v2091 = vpop.f32.mrf.mxu0
    %v2092 = vadd.f32 0.0, %v2091
    %v2093 = vpop.f32.mrf.mxu0
    %2094 = vdwg.mxu0
    %v2095 = vadd.f32 %v2019, %v2092
    %v2096 = vxor.u32 %v2095, 2147483648
    %v2097 = vmul.f32 %v2096, 1.442695
    %v2098 = vpow.pop %v2097
    %v2099 = vadd.f32 %v2098, 1.0
    %v2100 = vrcp.pop %v2099
    %v2101 = vmul.f32 1.0, %v2100
    %v2102 = vadd.f32 %v2092, %v1768
    %2104 = vrot.lane.b32.xlu0 %v2102, 64
    %v2105 = vpop.permute.xlu0 %2104
    %v2107 = vmul.f32 %v2101, %v2105
    %2109 = vrot.lane.b32.xlu0 %v2107, 64
    %v2110 = vpop.permute.xlu0 %2109
    %v2112 = vadd.f32 %v2019, %v2110
    %v2113 = vtanh.pop %v2112
    %v2114 = vsub.f32 1.0, %v2101
    %2116 = vrot.lane.b32.xlu0 %v2113, 96
    %v2117 = vpop.permute.xlu0 %2116
    %v2119 = vmul.f32 %v2114, %v2117
    %v2120 = vmul.f32 %v2101, %v2018
    %v2121 = vadd.f32 %v2119, %v2120
    %v2122 = vld [vmem:[%s1331] sm:$0x3]
    %v2123 = vsel %vm1325, %v2121, 0.0
    %2125 = vrot.lane.b32.xlu0 %v2123, 96
    %v2126 = vpop.permute.xlu0 %2125
    %v2128 = vadd.f32 %v2122, %v2126
    %2129 = vst.msk [vmem:[%s1331] sm:$0x3] %vm867, %v2128
    %v2130 = vsel %vm1325, %v2121, %v2018
    %v2131 = vld [vmem:[#allocation3 + $0x6] sm:$0x3]
    %2133 = vrot.lane.b32.xlu0 %v2130, 96
    %v2134 = vpop.permute.xlu0 %2133
    %v2135 = vsel %vm96, %v2134, 0
    %2137 = vmatprep.subr.mxu0 0.0
    %2138 = vmatpush1.msra.mxu0 0.0
    %2139 = vmatprep.subr.mxu0 0.0
    %2140 = vmatpush1.msra.mxu0 0.0
    %2141 = vmatprep.subr.mxu0 0.0
    %2142 = vmatpush1.msra.mxu0 0.0
    %2143 = vmatprep.subr.mxu0 0.0
    %2144 = vmatpush1.msra.mxu0 0.0
    %2145 = vmatprep.subr.mxu0 0.0
    %2146 = vmatpush1.msra.mxu0 0.0
    %2147 = vmatprep.subr.mxu0 0.0
    %2148 = vmatpush1.msra.mxu0 0.0
    %2149 = vmatprep.subr.mxu0 0.0
    %2150 = vmatpush1.msra.mxu0 0.0
    %2151 = vmatprep.subr.mxu0 0.0
    %2152 = vmatpush1.msra.mxu0 0.0
    %2153 = vmatprep.subr.mxu0 0.0
    %2154 = vmatpush1.msra.mxu0 0.0
    %2155 = vmatprep.subr.mxu0 0.0
    %2156 = vmatpush1.msra.mxu0 0.0
    %2157 = vmatprep.subr.mxu0 0.0
    %2158 = vmatpush1.msra.mxu0 0.0
    %2159 = vmatprep.subr.mxu0 0.0
    %2160 = vmatpush1.msra.mxu0 0.0
    %2161 = vmatprep.subr.mxu0 0.0
    %2162 = vmatpush1.msra.mxu0 %v744
    %2163 = vmatprep.subr.mxu0 0.0
    %2164 = vmatpush1.msra.mxu0 %v743
    %2165 = vmatprep.subr.mxu0 0.0
    %2166 = vmatpush1.msra.mxu0 %v742
    %2167 = vmatprep.subr.mxu0 0.0
    %2168 = vmatpush1.msra.mxu0 %v741
    %2169 = vmatprep.subr.mxu0 0.0
    %2170 = vmatpush2.msra.mxu0 0.0
    %2171 = vmatprep.subr.mxu0 0.0
    %2172 = vmatpush2.msra.mxu0 0.0
    %2173 = vmatprep.subr.mxu0 0.0
    %2174 = vmatpush2.msra.mxu0 0.0
    %2175 = vmatprep.subr.mxu0 0.0
    %2176 = vmatpush2.msra.mxu0 0.0
    %2177 = vmatprep.subr.mxu0 0.0
    %2178 = vmatpush2.msra.mxu0 0.0
    %2179 = vmatprep.subr.mxu0 0.0
    %2180 = vmatpush2.msra.mxu0 0.0
    %2181 = vmatprep.subr.mxu0 0.0
    %2182 = vmatpush2.msra.mxu0 0.0
    %2183 = vmatprep.subr.mxu0 0.0
    %2184 = vmatpush2.msra.mxu0 0.0
    %2185 = vmatprep.subr.mxu0 0.0
    %2186 = vmatpush2.msra.mxu0 0.0
    %2187 = vmatprep.subr.mxu0 0.0
    %2188 = vmatpush2.msra.mxu0 0.0
    %2189 = vmatprep.subr.mxu0 0.0
    %2190 = vmatpush2.msra.mxu0 0.0
    %2191 = vmatprep.subr.mxu0 0.0
    %2192 = vmatpush2.msra.mxu0 0.0
    %2193 = vmatprep.subr.mxu0 0.0
    %2194 = vmatpush2.msra.mxu0 0.0
    %2195 = vmatprep.subr.mxu0 0.0
    %2196 = vmatpush2.msra.mxu0 0.0
    %2197 = vmatprep.subr.mxu0 0.0
    %2198 = vmatpush2.msra.mxu0 0.0
    %2199 = vmatprep.subr.mxu0 0.0
    %2200 = vmatpush2.msra.mxu0 0.0
    %2201 = vmatprep.mubr.f32.mxu0 0.0
    %2202 = vmatmul.mubr.f32.gmra.mxu0 %v2135
    %v2203 = vpop.f32.mrf.mxu0
    %v2204 = vadd.f32 0.0, %v2203
    %v2205 = vpop.f32.mrf.mxu0
    %2206 = vdwg.mxu0
    %v2207 = vadd.f32 %v2131, %v2204
    %v2208 = vxor.u32 %v2207, 2147483648
    %v2209 = vmul.f32 %v2208, 1.442695
    %v2210 = vpow.pop %v2209
    %v2211 = vadd.f32 %v2210, 1.0
    %v2212 = vrcp.pop %v2211
    %v2213 = vmul.f32 1.0, %v2212
    %v2214 = vadd.f32 %v2204, %v1768
    %2216 = vrot.lane.b32.xlu0 %v2214, 64
    %v2217 = vpop.permute.xlu0 %2216
    %v2219 = vmul.f32 %v2213, %v2217
    %2221 = vrot.lane.b32.xlu0 %v2219, 64
    %v2222 = vpop.permute.xlu0 %2221
    %v2224 = vadd.f32 %v2131, %v2222
    %v2225 = vtanh.pop %v2224
    %v2226 = vsub.f32 1.0, %v2213
    %2228 = vrot.lane.b32.xlu0 %v2225, 96
    %v2229 = vpop.permute.xlu0 %2228
    %v2231 = vmul.f32 %v2226, %v2229
    %v2232 = vmul.f32 %v2213, %v2130
    %v2233 = vadd.f32 %v2231, %v2232
    %v2234 = vld [vmem:[%s1214] sm:$0x3]
    %v2235 = vsel %vm1208, %v2233, 0.0
    %2237 = vrot.lane.b32.xlu0 %v2235, 96
    %v2238 = vpop.permute.xlu0 %2237
    %v2240 = vadd.f32 %v2234, %v2238
    %2241 = vst.msk [vmem:[%s1214] sm:$0x3] %vm867, %v2240
    %v2242 = vsel %vm1208, %v2233, %v2130
    %v2243 = vld [vmem:[#allocation3 + $0x4] sm:$0x3]
    %2245 = vrot.lane.b32.xlu0 %v2242, 96
    %v2246 = vpop.permute.xlu0 %2245
    %v2247 = vsel %vm96, %v2246, 0
    %2249 = vmatprep.subr.mxu0 0.0
    %2250 = vmatpush1.msra.mxu0 0.0
    %2251 = vmatprep.subr.mxu0 0.0
    %2252 = vmatpush1.msra.mxu0 0.0
    %2253 = vmatprep.subr.mxu0 0.0
    %2254 = vmatpush1.msra.mxu0 0.0
    %2255 = vmatprep.subr.mxu0 0.0
    %2256 = vmatpush1.msra.mxu0 0.0
    %2257 = vmatprep.subr.mxu0 0.0
    %2258 = vmatpush1.msra.mxu0 0.0
    %2259 = vmatprep.subr.mxu0 0.0
    %2260 = vmatpush1.msra.mxu0 0.0
    %2261 = vmatprep.subr.mxu0 0.0
    %2262 = vmatpush1.msra.mxu0 0.0
    %2263 = vmatprep.subr.mxu0 0.0
    %2264 = vmatpush1.msra.mxu0 0.0
    %2265 = vmatprep.subr.mxu0 0.0
    %2266 = vmatpush1.msra.mxu0 0.0
    %2267 = vmatprep.subr.mxu0 0.0
    %2268 = vmatpush1.msra.mxu0 0.0
    %2269 = vmatprep.subr.mxu0 0.0
    %2270 = vmatpush1.msra.mxu0 0.0
    %2271 = vmatprep.subr.mxu0 0.0
    %2272 = vmatpush1.msra.mxu0 0.0
    %2273 = vmatprep.subr.mxu0 0.0
    %2274 = vmatpush1.msra.mxu0 %v744
    %2275 = vmatprep.subr.mxu0 0.0
    %2276 = vmatpush1.msra.mxu0 %v743
    %2277 = vmatprep.subr.mxu0 0.0
    %2278 = vmatpush1.msra.mxu0 %v742
    %2279 = vmatprep.subr.mxu0 0.0
    %2280 = vmatpush1.msra.mxu0 %v741
    %2281 = vmatprep.subr.mxu0 0.0
    %2282 = vmatpush2.msra.mxu0 0.0
    %2283 = vmatprep.subr.mxu0 0.0
    %2284 = vmatpush2.msra.mxu0 0.0
    %2285 = vmatprep.subr.mxu0 0.0
    %2286 = vmatpush2.msra.mxu0 0.0
    %2287 = vmatprep.subr.mxu0 0.0
    %2288 = vmatpush2.msra.mxu0 0.0
    %2289 = vmatprep.subr.mxu0 0.0
    %2290 = vmatpush2.msra.mxu0 0.0
    %2291 = vmatprep.subr.mxu0 0.0
    %2292 = vmatpush2.msra.mxu0 0.0
    %2293 = vmatprep.subr.mxu0 0.0
    %2294 = vmatpush2.msra.mxu0 0.0
    %2295 = vmatprep.subr.mxu0 0.0
    %2296 = vmatpush2.msra.mxu0 0.0
    %2297 = vmatprep.subr.mxu0 0.0
    %2298 = vmatpush2.msra.mxu0 0.0
    %2299 = vmatprep.subr.mxu0 0.0
    %2300 = vmatpush2.msra.mxu0 0.0
    %2301 = vmatprep.subr.mxu0 0.0
    %2302 = vmatpush2.msra.mxu0 0.0
    %2303 = vmatprep.subr.mxu0 0.0
    %2304 = vmatpush2.msra.mxu0 0.0
    %2305 = vmatprep.subr.mxu0 0.0
    %2306 = vmatpush2.msra.mxu0 0.0
    %2307 = vmatprep.subr.mxu0 0.0
    %2308 = vmatpush2.msra.mxu0 0.0
    %2309 = vmatprep.subr.mxu0 0.0
    %2310 = vmatpush2.msra.mxu0 0.0
    %2311 = vmatprep.subr.mxu0 0.0
    %2312 = vmatpush2.msra.mxu0 0.0
    %2313 = vmatprep.mubr.f32.mxu0 0.0
    %2314 = vmatmul.mubr.f32.gmra.mxu0 %v2247
    %v2315 = vpop.f32.mrf.mxu0
    %v2316 = vadd.f32 0.0, %v2315
    %v2317 = vpop.f32.mrf.mxu0
    %2318 = vdwg.mxu0
    %v2319 = vadd.f32 %v2243, %v2316
    %v2320 = vxor.u32 %v2319, 2147483648
    %v2321 = vmul.f32 %v2320, 1.442695
    %v2322 = vpow.pop %v2321
    %v2323 = vadd.f32 %v2322, 1.0
    %v2324 = vrcp.pop %v2323
    %v2325 = vmul.f32 1.0, %v2324
    %v2326 = vadd.f32 %v2316, %v1768
    %2328 = vrot.lane.b32.xlu0 %v2326, 64
    %v2329 = vpop.permute.xlu0 %2328
    %v2331 = vmul.f32 %v2325, %v2329
    %2333 = vrot.lane.b32.xlu0 %v2331, 64
    %v2334 = vpop.permute.xlu0 %2333
    %v2336 = vadd.f32 %v2243, %v2334
    %v2337 = vtanh.pop %v2336
    %v2338 = vsub.f32 1.0, %v2325
    %2340 = vrot.lane.b32.xlu0 %v2337, 96
    %v2341 = vpop.permute.xlu0 %2340
    %v2343 = vmul.f32 %v2338, %v2341
    %v2344 = vmul.f32 %v2325, %v2242
    %v2345 = vadd.f32 %v2343, %v2344
    %v2346 = vld [vmem:[%s1097] sm:$0x3]
    %v2347 = vsel %vm1091, %v2345, 0.0
    %2349 = vrot.lane.b32.xlu0 %v2347, 96
    %v2350 = vpop.permute.xlu0 %2349
    %v2352 = vadd.f32 %v2346, %v2350
    %2353 = vst.msk [vmem:[%s1097] sm:$0x3] %vm867, %v2352
    %v2354 = vsel %vm1091, %v2345, %v2242
    %v2355 = vld [vmem:[#allocation3 + $0x2] sm:$0x3]
    %2357 = vrot.lane.b32.xlu0 %v2354, 96
    %v2358 = vpop.permute.xlu0 %2357
    %v2359 = vsel %vm96, %v2358, 0
    %2361 = vmatprep.subr.mxu0 0.0
    %2362 = vmatpush1.msra.mxu0 0.0
    %2363 = vmatprep.subr.mxu0 0.0
    %2364 = vmatpush1.msra.mxu0 0.0
    %2365 = vmatprep.subr.mxu0 0.0
    %2366 = vmatpush1.msra.mxu0 0.0
    %2367 = vmatprep.subr.mxu0 0.0
    %2368 = vmatpush1.msra.mxu0 0.0
    %2369 = vmatprep.subr.mxu0 0.0
    %2370 = vmatpush1.msra.mxu0 0.0
    %2371 = vmatprep.subr.mxu0 0.0
    %2372 = vmatpush1.msra.mxu0 0.0
    %2373 = vmatprep.subr.mxu0 0.0
    %2374 = vmatpush1.msra.mxu0 0.0
    %2375 = vmatprep.subr.mxu0 0.0
    %2376 = vmatpush1.msra.mxu0 0.0
    %2377 = vmatprep.subr.mxu0 0.0
    %2378 = vmatpush1.msra.mxu0 0.0
    %2379 = vmatprep.subr.mxu0 0.0
    %2380 = vmatpush1.msra.mxu0 0.0
    %2381 = vmatprep.subr.mxu0 0.0
    %2382 = vmatpush1.msra.mxu0 0.0
    %2383 = vmatprep.subr.mxu0 0.0
    %2384 = vmatpush1.msra.mxu0 0.0
    %2385 = vmatprep.subr.mxu0 0.0
    %2386 = vmatpush1.msra.mxu0 %v744
    %2387 = vmatprep.subr.mxu0 0.0
    %2388 = vmatpush1.msra.mxu0 %v743
    %2389 = vmatprep.subr.mxu0 0.0
    %2390 = vmatpush1.msra.mxu0 %v742
    %2391 = vmatprep.subr.mxu0 0.0
    %2392 = vmatpush1.msra.mxu0 %v741
    %2393 = vmatprep.subr.mxu0 0.0
    %2394 = vmatpush2.msra.mxu0 0.0
    %2395 = vmatprep.subr.mxu0 0.0
    %2396 = vmatpush2.msra.mxu0 0.0
    %2397 = vmatprep.subr.mxu0 0.0
    %2398 = vmatpush2.msra.mxu0 0.0
    %2399 = vmatprep.subr.mxu0 0.0
    %2400 = vmatpush2.msra.mxu0 0.0
    %2401 = vmatprep.subr.mxu0 0.0
    %2402 = vmatpush2.msra.mxu0 0.0
    %2403 = vmatprep.subr.mxu0 0.0
    %2404 = vmatpush2.msra.mxu0 0.0
    %2405 = vmatprep.subr.mxu0 0.0
    %2406 = vmatpush2.msra.mxu0 0.0
    %2407 = vmatprep.subr.mxu0 0.0
    %2408 = vmatpush2.msra.mxu0 0.0
    %2409 = vmatprep.subr.mxu0 0.0
    %2410 = vmatpush2.msra.mxu0 0.0
    %2411 = vmatprep.subr.mxu0 0.0
    %2412 = vmatpush2.msra.mxu0 0.0
    %2413 = vmatprep.subr.mxu0 0.0
    %2414 = vmatpush2.msra.mxu0 0.0
    %2415 = vmatprep.subr.mxu0 0.0
    %2416 = vmatpush2.msra.mxu0 0.0
    %2417 = vmatprep.subr.mxu0 0.0
    %2418 = vmatpush2.msra.mxu0 0.0
    %2419 = vmatprep.subr.mxu0 0.0
    %2420 = vmatpush2.msra.mxu0 0.0
    %2421 = vmatprep.subr.mxu0 0.0
    %2422 = vmatpush2.msra.mxu0 0.0
    %2423 = vmatprep.subr.mxu0 0.0
    %2424 = vmatpush2.msra.mxu0 0.0
    %2425 = vmatprep.mubr.f32.mxu0 0.0
    %2426 = vmatmul.mubr.f32.gmra.mxu0 %v2359
    %v2427 = vpop.f32.mrf.mxu0
    %v2428 = vadd.f32 0.0, %v2427
    %v2429 = vpop.f32.mrf.mxu0
    %2430 = vdwg.mxu0
    %v2431 = vadd.f32 %v2355, %v2428
    %v2432 = vxor.u32 %v2431, 2147483648
    %v2433 = vmul.f32 %v2432, 1.442695
    %v2434 = vpow.pop %v2433
    %v2435 = vadd.f32 %v2434, 1.0
    %v2436 = vrcp.pop %v2435
    %v2437 = vmul.f32 1.0, %v2436
    %v2438 = vadd.f32 %v2428, %v1768
    %2440 = vrot.lane.b32.xlu0 %v2438, 64
    %v2441 = vpop.permute.xlu0 %2440
    %v2443 = vmul.f32 %v2437, %v2441
    %2445 = vrot.lane.b32.xlu0 %v2443, 64
    %v2446 = vpop.permute.xlu0 %2445
    %v2448 = vadd.f32 %v2355, %v2446
    %v2449 = vtanh.pop %v2448
    %v2450 = vsub.f32 1.0, %v2437
    %2452 = vrot.lane.b32.xlu0 %v2449, 96
    %v2453 = vpop.permute.xlu0 %2452
    %v2455 = vmul.f32 %v2450, %v2453
    %v2456 = vmul.f32 %v2437, %v2354
    %v2457 = vadd.f32 %v2455, %v2456
    %v2458 = vld [vmem:[%s980] sm:$0x3]
    %v2459 = vsel %vm974, %v2457, 0.0
    %2461 = vrot.lane.b32.xlu0 %v2459, 96
    %v2462 = vpop.permute.xlu0 %2461
    %v2464 = vadd.f32 %v2458, %v2462
    %2465 = vst.msk [vmem:[%s980] sm:$0x3] %vm867, %v2464
    %v2466 = vsel %vm974, %v2457, %v2354
    %v2467 = vld [vmem:[#allocation3] sm:$0x3]
    %2469 = vrot.lane.b32.xlu0 %v2466, 96
    %v2470 = vpop.permute.xlu0 %2469
    %v2471 = vsel %vm96, %v2470, 0
    %2473 = vmatprep.subr.mxu0 0.0
    %2474 = vmatpush1.msra.mxu0 0.0
    %2475 = vmatprep.subr.mxu0 0.0
    %2476 = vmatpush1.msra.mxu0 0.0
    %2477 = vmatprep.subr.mxu0 0.0
    %2478 = vmatpush1.msra.mxu0 0.0
    %2479 = vmatprep.subr.mxu0 0.0
    %2480 = vmatpush1.msra.mxu0 0.0
    %2481 = vmatprep.subr.mxu0 0.0
    %2482 = vmatpush1.msra.mxu0 0.0
    %2483 = vmatprep.subr.mxu0 0.0
    %2484 = vmatpush1.msra.mxu0 0.0
    %2485 = vmatprep.subr.mxu0 0.0
    %2486 = vmatpush1.msra.mxu0 0.0
    %2487 = vmatprep.subr.mxu0 0.0
    %2488 = vmatpush1.msra.mxu0 0.0
    %2489 = vmatprep.subr.mxu0 0.0
    %2490 = vmatpush1.msra.mxu0 0.0
    %2491 = vmatprep.subr.mxu0 0.0
    %2492 = vmatpush1.msra.mxu0 0.0
    %2493 = vmatprep.subr.mxu0 0.0
    %2494 = vmatpush1.msra.mxu0 0.0
    %2495 = vmatprep.subr.mxu0 0.0
    %2496 = vmatpush1.msra.mxu0 0.0
    %2497 = vmatprep.subr.mxu0 0.0
    %2498 = vmatpush1.msra.mxu0 %v744
    %2499 = vmatprep.subr.mxu0 0.0
    %2500 = vmatpush1.msra.mxu0 %v743
    %2501 = vmatprep.subr.mxu0 0.0
    %2502 = vmatpush1.msra.mxu0 %v742
    %2503 = vmatprep.subr.mxu0 0.0
    %2504 = vmatpush1.msra.mxu0 %v741
    %2505 = vmatprep.subr.mxu0 0.0
    %2506 = vmatpush2.msra.mxu0 0.0
    %2507 = vmatprep.subr.mxu0 0.0
    %2508 = vmatpush2.msra.mxu0 0.0
    %2509 = vmatprep.subr.mxu0 0.0
    %2510 = vmatpush2.msra.mxu0 0.0
    %2511 = vmatprep.subr.mxu0 0.0
    %2512 = vmatpush2.msra.mxu0 0.0
    %2513 = vmatprep.subr.mxu0 0.0
    %2514 = vmatpush2.msra.mxu0 0.0
    %2515 = vmatprep.subr.mxu0 0.0
    %2516 = vmatpush2.msra.mxu0 0.0
    %2517 = vmatprep.subr.mxu0 0.0
    %2518 = vmatpush2.msra.mxu0 0.0
    %2519 = vmatprep.subr.mxu0 0.0
    %2520 = vmatpush2.msra.mxu0 0.0
    %2521 = vmatprep.subr.mxu0 0.0
    %2522 = vmatpush2.msra.mxu0 0.0
    %2523 = vmatprep.subr.mxu0 0.0
    %2524 = vmatpush2.msra.mxu0 0.0
    %2525 = vmatprep.subr.mxu0 0.0
    %2526 = vmatpush2.msra.mxu0 0.0
    %2527 = vmatprep.subr.mxu0 0.0
    %2528 = vmatpush2.msra.mxu0 0.0
    %2529 = vmatprep.subr.mxu0 0.0
    %2530 = vmatpush2.msra.mxu0 0.0
    %2531 = vmatprep.subr.mxu0 0.0
    %2532 = vmatpush2.msra.mxu0 0.0
    %2533 = vmatprep.subr.mxu0 0.0
    %2534 = vmatpush2.msra.mxu0 0.0
    %2535 = vmatprep.subr.mxu0 0.0
    %2536 = vmatpush2.msra.mxu0 0.0
    %2537 = vmatprep.mubr.f32.mxu0 0.0
    %2538 = vmatmul.mubr.f32.gmra.mxu0 %v2471
    %v2539 = vpop.f32.mrf.mxu0
    %v2540 = vadd.f32 0.0, %v2539
    %v2541 = vpop.f32.mrf.mxu0
    %2542 = vdwg.mxu0
    %v2543 = vadd.f32 %v2467, %v2540
    %v2544 = vxor.u32 %v2543, 2147483648
    %v2545 = vmul.f32 %v2544, 1.442695
    %v2546 = vpow.pop %v2545
    %v2547 = vadd.f32 %v2546, 1.0
    %v2548 = vrcp.pop %v2547
    %v2549 = vmul.f32 1.0, %v2548
    %v2550 = vadd.f32 %v2540, %v1768
    %2552 = vrot.lane.b32.xlu0 %v2550, 64
    %v2553 = vpop.permute.xlu0 %2552
    %v2555 = vmul.f32 %v2549, %v2553
    %2557 = vrot.lane.b32.xlu0 %v2555, 64
    %v2558 = vpop.permute.xlu0 %2557
    %v2560 = vadd.f32 %v2467, %v2558
    %v2561 = vtanh.pop %v2560
    %v2562 = vsub.f32 1.0, %v2549
    %2564 = vrot.lane.b32.xlu0 %v2561, 96
    %v2565 = vpop.permute.xlu0 %2564
    %v2567 = vmul.f32 %v2562, %v2565
    %v2568 = vmul.f32 %v2549, %v2466
    %v2569 = vadd.f32 %v2567, %v2568
    %v2570 = vld [vmem:[#allocation4] sm:$0x3]
    %v2571 = vsel %vm861, %v2569, 0.0
    %2573 = vrot.lane.b32.xlu0 %v2571, 96
    %v2574 = vpop.permute.xlu0 %2573
    %v2576 = vadd.f32 %v2570, %v2574
    %2577 = vst.msk [vmem:[#allocation4] sm:$0x3] %vm867, %v2576
    %v2578 = vld [vmem:[#allocation4] sm:$0x3]
    %v2579 = vld [vmem:[#allocation4 + $0x2] sm:$0x3]
    %v2580 = vld [vmem:[#allocation4 + $0x4] sm:$0x3]
    %v2581 = vld [vmem:[#allocation4 + $0x6] sm:$0x3]
    %v2582 = vld [vmem:[#allocation4 + $0x8] sm:$0x3]
    %v2583 = vld [vmem:[#allocation4 + $0xa] sm:$0x3]
    %v2584 = vld [vmem:[#allocation4 + $0xc] sm:$0x3]
    %v2585 = vld [vmem:[#allocation4 + $0xe] sm:$0x3]
    %v2586 = vcombine.low %v2578, %v2580
    %v2588 = vunpack.c.l.s4 1983009808
    %v2589 = vunpack.c.0.s8 %v2588
    %v2590 = vlaneseq
    %v2591 = vshrl.u32 %v2590, 7
    %v2592 = vsub.s32 %v2589, %v2591
    %v2593 = vrot.slane %v2586, %v2592
    %v2594 = vcombine.low %v2579, %v2581
    %v2596 = vunpack.c.l.s4 1983009808
    %v2597 = vunpack.c.0.s8 %v2596
    %v2598 = vlaneseq
    %v2599 = vshrl.u32 %v2598, 7
    %v2600 = vsub.s32 %v2597, %v2599
    %v2601 = vrot.slane %v2594, %v2600
    %v2602 = vcombine.low %v2582, %v2584
    %v2604 = vunpack.c.l.s4 1983009808
    %v2605 = vunpack.c.0.s8 %v2604
    %v2606 = vlaneseq
    %v2607 = vshrl.u32 %v2606, 7
    %v2608 = vsub.s32 %v2605, %v2607
    %v2609 = vrot.slane %v2602, %v2608
    %v2610 = vcombine.low %v2583, %v2585
    %v2612 = vunpack.c.l.s4 1983009808
    %v2613 = vunpack.c.0.s8 %v2612
    %v2614 = vlaneseq
    %v2615 = vshrl.u32 %v2614, 7
    %v2616 = vsub.s32 %v2613, %v2615
    %v2617 = vrot.slane %v2610, %v2616
    %v2618 = vcombine.low %v2593, %v2601
    %v2620 = vunpack.c.l.s4 1934713408
    %v2621 = vunpack.c.0.s8 %v2620
    %v2622 = vlaneseq
    %v2623 = vshrl.u32 %v2622, 7
    %v2624 = vsub.s32 %v2621, %v2623
    %v2625 = vrot.slane %v2618, %v2624
    %v2626 = vcombine.low %v2609, %v2617
    %v2628 = vunpack.c.l.s4 1934713408
    %v2629 = vunpack.c.0.s8 %v2628
    %v2630 = vlaneseq
    %v2631 = vshrl.u32 %v2630, 7
    %v2632 = vsub.s32 %v2629, %v2631
    %v2633 = vrot.slane %v2626, %v2632
    %v2634 = vcombine.low %v2625, %v2633
    %v2635 = vcombine.high %v2625, %v2633
    %2636 = vst.msk [vmem:[#allocation13] sm:$0xff] %vm96, %v2634
    %2637 = vst.msk [vmem:[#allocation13 + $0x8] sm:$0xff] %vm96, %v2635
    // Predicated region
    $region54: #{tpu_custom_call.1} parent=1 // pred_check
      _
    $region55: #{tpu_custom_call.1} parent=1 // pred_check_branch
      %2639 = sbr.rel (0) target = $region57
    $region56: #{tpu_custom_call.1} parent=1 // pred_region
      %s2641 = ssub.s32 256, 256
      %2642 = vsyncadd [#allocation7], %s2641
      %s2643 = sshll.u32 [#allocation13], 4
      %s2644 = int_to_ptr.vmem [resolvable:$true] %s2643
      %2649 = dma.vmem_to_hbm [thread:$0]  %s2644, 256, %s9, [#allocation7], 128, 128, 8
    $region57: #{tpu_custom_call.1} parent=1 // pred_fallthru
      _
    // Predicated region
    $region58: #{tpu_custom_call.1} parent=1 // pred_check
      _
    $region59: #{tpu_custom_call.1} parent=1 // pred_check_branch
      %2651 = sbr.rel (0) target = $region61
    $region60: #{tpu_custom_call.1} parent=1 // pred_region
      %2652 = dma.done [#allocation7], 256
    $region61: #{tpu_custom_call.1} parent=1 // pred_fallthru
      _
    %2653 = vsyncpa [#allocation6], 1
    %2654 = vsyncpa [#allocation9], 1
    %2655 = vsyncpa [#allocation12], 1
    %2656 = vsyncpa [#allocation7], 1

</llo_original>
